<compile_context>
chip_gen: v6e
topology: v6e:2x2x1
jax: 0.10.0
libtpu: 0.0.40
codegen_flags: <defaults>
</compile_context>

<pallas_src>
import jax
import jax.numpy as jnp
from jax import lax
from jax.experimental import pallas as pl
from jax.experimental.pallas import tpu as pltpu

C = 1.0            # ball curvature
SQRT_C = 1.0
MIN_NORM = 1e-15   # geoopt-style clamp on the norm itself
BALL_EPS = 4e-3    # projection margin


def _round_up(n, m):
    return ((n + m - 1) // m) * m


def mobius_linear_kernel(x_ref, w_ref, hb_ref, hbc_ref, o_ref):
    x = x_ref[...]                 # (TB, F)   f32   (F unpadded)
    w = w_ref[...]                 # (F, Op)   bf16  (= W^T, zero-padded columns)
    hb = hb_ref[...]               # (1, Op)   f32   expmap0(bias), padded lanes 0
    hb_col = hbc_ref[...]          # (Op, 1)   f32   = hb^T (for the MXU dot)

    # ---- MXU work: Mx (bf16 inputs, f32 accumulate) and <Mx, hb>.
    mx = jnp.dot(x.astype(jnp.bfloat16), w,
                 preferred_element_type=jnp.float32)                 # (TB, Op)
    mxhb = jnp.dot(mx, hb_col, preferred_element_type=jnp.float32)   # (TB, 1)

    # ---- per-row scalars (all (TB,1)); reductions kept to the minimum.
    x_sq = jnp.sum(x * x, axis=-1, keepdims=True)        # exact: F unpadded
    mx_sq = jnp.sum(mx * mx, axis=-1, keepdims=True)     # padded lanes are 0
    y2 = jnp.sum(hb * hb, axis=-1, keepdims=True)        # (1,1) constant per call

    zero_row = mx_sq == 0.0
    x_sq_c = jnp.maximum(x_sq, MIN_NORM * MIN_NORM)
    mx_sq_c = jnp.maximum(mx_sq, MIN_NORM * MIN_NORM)

    x_norm = jnp.sqrt(x_sq_c)                 # value needed for artanh argument
    inv_x_norm = lax.rsqrt(x_sq_c)
    inv_mx_norm = lax.rsqrt(mx_sq_c)
    mx_norm = mx_sq_c * inv_mx_norm           # = sqrt(mx_sq_c), no extra EUP sqrt

    # Mobius matvec scale: res = scale * Mx,
    #   scale = tanh(|Mx|/|x| * artanh(sc*|x|)) / (sc*|Mx|)
    z = jnp.clip(SQRT_C * x_norm, -1.0 + 1e-5, 1.0 - 1e-5)
    artanh_z = 0.5 * jnp.log((1.0 + z) / (1.0 - z))
    tanh_val = jnp.tanh(mx_norm * inv_x_norm * artanh_z)
    scale = jnp.where(zero_row, 0.0, tanh_val * inv_mx_norm / SQRT_C)

    # Mobius addition res (+) hb, using analytic |res|^2 and the MXU-computed
    # inner product (no further wide reductions).
    x2 = jnp.where(zero_row, 0.0, (tanh_val / SQRT_C) * (tanh_val / SQRT_C))
    xy = scale * mxhb                                            # <res, hb>

    a_coef = 1.0 + 2.0 * C * xy + C * y2
    b_coef = 1.0 - C * x2
    den = 1.0 + 2.0 * C * xy + (C * C) * x2 * y2
    inv_den = pl.reciprocal(jnp.maximum(den, 1e-15), approx=True)
    A = a_coef * inv_den          # coefficient on res
    Bc = b_coef * inv_den         # coefficient on hb

    # ---- ball projection, |out|^2 from per-row scalars only.
    out_sq = A * A * x2 + 2.0 * A * Bc * xy + Bc * Bc * y2
    maxnorm = (1.0 - BALL_EPS) / SQRT_C
    inv_out_norm = lax.rsqrt(jnp.maximum(out_sq, MIN_NORM * MIN_NORM))
    proj = jnp.where(out_sq > maxnorm * maxnorm, maxnorm * inv_out_norm, 1.0)

    # Final combine: fold scale and projection into two per-row coefficients.
    coef_mx = proj * A * scale    # (TB,1)
    coef_hb = proj * Bc           # (TB,1)
    o_ref[...] = coef_mx * mx + coef_hb * hb


def prepare_mobius_params(weight, bias):
    """One-time parameter prep (module init time).

    weight: (n_output, n_feature) in PyTorch convention; bias: (n_output,).
    Returns W^T in bf16 (F, Op) with Op zero-padded to 128, expmap0(bias) as a
    (1, Op) f32 row and as a (Op, 1) f32 column (for the in-kernel MXU dot).
    """
    n_output, n_feature = weight.shape
    op = _round_up(n_output, 128)

    w_t = jnp.zeros((n_feature, op), jnp.float32)
    w_t = w_t.at[:, :n_output].set(weight.astype(jnp.float32).T)

    b = jnp.zeros((1, op), jnp.float32).at[0, :n_output].set(bias.astype(jnp.float32))
    b_norm = jnp.maximum(jnp.linalg.norm(b, axis=-1, keepdims=True), MIN_NORM)
    hb = jnp.tanh(SQRT_C * b_norm) * b / (SQRT_C * b_norm)      # (1, Op)
    hb_col = hb.reshape(op, 1)                                  # (Op, 1)
    return w_t.astype(jnp.bfloat16), hb, hb_col, n_output


def net_hype_forward(x, w_t, hb, hb_col, n_output, *, tile_b=512):
    """x: (B, n_feature) f32. Returns (B, n_output) points inside the ball."""
    B, F = x.shape
    _, Op = w_t.shape

    tb = max(8, min(tile_b, _round_up(B, 8)))
    tb = (tb // 8) * 8                          # batch tile, multiple of 8

    if B % tb == 0:
        x_in, bp = x.astype(jnp.float32), B     # no per-call copy / padding
    else:
        bp = _round_up(B, tb)
        x_in = jnp.zeros((bp, F), jnp.float32).at[:B].set(x.astype(jnp.float32))

    out = pl.pallas_call(
        mobius_linear_kernel,
        out_shape=jax.ShapeDtypeStruct((bp, Op), jnp.float32),
        grid=(bp // tb,),
        in_specs=[
            pl.BlockSpec((tb, F), lambda i: (i, 0)),    # x tile (F unpadded)
            pl.BlockSpec((F, Op), lambda i: (0, 0)),    # W^T (bf16), grid-invariant
            pl.BlockSpec((1, Op), lambda i: (0, 0)),    # expmap0(bias) row
            pl.BlockSpec((Op, 1), lambda i: (0, 0)),    # expmap0(bias) column
        ],
        out_specs=pl.BlockSpec((tb, Op), lambda i: (i, 0)),
        compiler_params=pltpu.CompilerParams(
            dimension_semantics=("parallel",)),
    )(x_in, w_t, hb, hb_col)
    return out[:B, :n_output]


def mobius_linear_ref(x, weight, bias):
    """Pure-JAX reference (MobiusLinear, c = 1) for correctness checking."""
    mx = x @ weight.T
    x_norm = jnp.maximum(jnp.linalg.norm(x, axis=-1, keepdims=True), MIN_NORM)
    mx_norm = jnp.maximum(jnp.linalg.norm(mx, axis=-1, keepdims=True), MIN_NORM)
    z = jnp.clip(SQRT_C * x_norm, -1.0 + 1e-5, 1.0 - 1e-5)
    artanh_z = 0.5 * jnp.log((1.0 + z) / (1.0 - z))
    res_c = jnp.tanh(mx_norm / x_norm * artanh_z) * mx / (mx_norm * SQRT_C)
    zero_row = jnp.sum(jnp.abs(mx), axis=-1, keepdims=True) == 0.0
    res = jnp.where(zero_row, 0.0, res_c)

    b = bias[None, :]
    b_norm = jnp.maximum(jnp.linalg.norm(b, axis=-1, keepdims=True), MIN_NORM)
    hb = jnp.tanh(SQRT_C * b_norm) * b / (SQRT_C * b_norm)

    x2 = jnp.sum(res * res, axis=-1, keepdims=True)
    y2 = jnp.sum(hb * hb, axis=-1, keepdims=True)
    xy = jnp.sum(res * hb, axis=-1, keepdims=True)
    num = (1.0 + 2.0 * C * xy + C * y2) * res + (1.0 - C * x2) * hb
    den = 1.0 + 2.0 * C * xy + (C * C) * x2 * y2
    out = num / jnp.maximum(den, 1e-15)

    maxnorm = (1.0 - BALL_EPS) / SQRT_C
    out_norm = jnp.maximum(jnp.linalg.norm(out, axis=-1, keepdims=True), MIN_NORM)
    return jnp.where(out_norm > maxnorm, out / out_norm * maxnorm, out)


if __name__ == "__main__":
    n_feature, n_output, batch = 32, 16, 1024   # 4 grid steps with tile_b=256

    key = jax.random.PRNGKey(0)
    kx, kw, kb = jax.random.split(key, 3)

    # Deterministic parameter init (uniform, like torch Linear's scale).
    bound = 1.0 / (n_feature ** 0.5)
    weight = jax.random.uniform(kw, (n_output, n_feature), jnp.float32, -bound, bound)
    bias = jax.random.uniform(kb, (n_output,), jnp.float32, -bound, bound)

    # Input points scaled to lie inside the Poincare ball (|x| < 1).
    x_raw = jax.random.normal(kx, (batch, n_feature), jnp.float32)
    x = 0.3 * x_raw / jnp.maximum(
        jnp.linalg.norm(x_raw, axis=-1, keepdims=True), 1e-6)

    # One-time parameter preparation (transpose + pad + expmap0 of bias).
    w_t, hb, hb_col, n_out = prepare_mobius_params(weight, bias)

    out = net_hype_forward(x, w_t, hb, hb_col, n_out, tile_b=256)
    jax.block_until_ready(out)

    assert out.shape == (batch, n_output)
    assert bool(jnp.all(jnp.isfinite(out)))
    # outputs must stay inside the unit ball after projection
    assert bool(jnp.all(jnp.linalg.norm(out, axis=-1) < 1.0))

    # correctness vs. pure-JAX f32 reference
    # (tolerance accounts for bf16 MXU inputs + approx EUP reciprocals)
    ref = mobius_linear_ref(x, weight, bias)
    max_err = float(jnp.max(jnp.abs(out - ref)))
    assert max_err < 1e-2, f"max abs err {max_err}"

    print("KERNEL_OK")
</pallas_src>

<mosaic_0001>
module attributes {stable_mosaic.version = 11 : i64} {
  func.func @mobius_linear_kernel(%arg0: i32, %arg1: memref<256x32xf32, #tpu.memory_space<vmem>>, %arg2: memref<32x128xbf16, #tpu.memory_space<vmem>>, %arg3: memref<1x128xf32, #tpu.memory_space<vmem>>, %arg4: memref<128x1xf32, #tpu.memory_space<vmem>>, %arg5: memref<256x128xf32, #tpu.memory_space<vmem>>) attributes {dimension_semantics = [#tpu.dimension_semantics<parallel>], iteration_bounds = array<i64: 4>, scalar_prefetch = 0 : i64, scratch_operands = 0 : i64, tpu.core_type = #tpu.core_type<tc>, window_params = [{transform_indices = @transform_0, window_bounds = array<i64: 256, 32>}, {pipeline_mode = #tpu.pipeline_mode<synchronous>, transform_indices = @transform_1, window_bounds = array<i64: 32, 128>}, {pipeline_mode = #tpu.pipeline_mode<synchronous>, transform_indices = @transform_2, window_bounds = array<i64: 1, 128>}, {pipeline_mode = #tpu.pipeline_mode<synchronous>, transform_indices = @transform_3, window_bounds = array<i64: 128, 1>}, {transform_indices = @transform_4, window_bounds = array<i64: 256, 128>}]} {
    %c0 = arith.constant 0 : index
    %c0_0 = arith.constant 0 : index
    %0 = vector.load %arg1[%c0, %c0_0] : memref<256x32xf32, #tpu.memory_space<vmem>>, vector<256x32xf32>
    %c0_1 = arith.constant 0 : index
    %c0_2 = arith.constant 0 : index
    %1 = vector.load %arg2[%c0_1, %c0_2] : memref<32x128xbf16, #tpu.memory_space<vmem>>, vector<32x128xbf16>
    %c0_3 = arith.constant 0 : index
    %c0_4 = arith.constant 0 : index
    %2 = vector.load %arg3[%c0_3, %c0_4] : memref<1x128xf32, #tpu.memory_space<vmem>>, vector<1x128xf32>
    %c0_5 = arith.constant 0 : index
    %c0_6 = arith.constant 0 : index
    %3 = vector.load %arg4[%c0_5, %c0_6] : memref<128x1xf32, #tpu.memory_space<vmem>>, vector<128x1xf32>
    %4 = arith.truncf %0 : vector<256x32xf32> to vector<256x32xbf16>
    %cst = arith.constant dense<0.000000e+00> : vector<256x128xf32>
    %5 = tpu.matmul %4, %1, %cst {dimension_numbers = #tpu.dot_dimension_numbers<[1], [0], [0], [1], [0, 0, 1, 1], [], []>} : vector<256x32xbf16>, vector<32x128xbf16>, vector<256x128xf32> -> vector<256x128xf32>
    %cst_7 = arith.constant dense<0.000000e+00> : vector<256x1xf32>
    %6 = tpu.matmul %5, %3, %cst_7 {dimension_numbers = #tpu.dot_dimension_numbers<[1], [0], [0], [1], [0, 0, 1, 1], [], []>} : vector<256x128xf32>, vector<128x1xf32>, vector<256x1xf32> -> vector<256x1xf32>
    %7 = arith.mulf %0, %0 : vector<256x32xf32>
    %cst_8 = arith.constant dense<0.000000e+00> : vector<256xf32>
    %8 = vector.multi_reduction <add>, %7, %cst_8 [1] : vector<256x32xf32> to vector<256xf32>
    %9 = vector.shape_cast %8 : vector<256xf32> to vector<256x1xf32>
    %10 = arith.mulf %5, %5 : vector<256x128xf32>
    %cst_9 = arith.constant dense<0.000000e+00> : vector<256xf32>
    %11 = vector.multi_reduction <add>, %10, %cst_9 [1] : vector<256x128xf32> to vector<256xf32>
    %12 = vector.shape_cast %11 : vector<256xf32> to vector<256x1xf32>
    %13 = arith.mulf %2, %2 : vector<1x128xf32>
    %cst_10 = arith.constant dense<0.000000e+00> : vector<1xf32>
    %14 = vector.multi_reduction <add>, %13, %cst_10 [1] : vector<1x128xf32> to vector<1xf32>
    %15 = vector.shape_cast %14 : vector<1xf32> to vector<1x1xf32>
    %cst_11 = arith.constant 0.000000e+00 : f32
    %16 = vector.broadcast %cst_11 : f32 to vector<256x1xf32>
    %17 = arith.cmpf oeq, %12, %16 : vector<256x1xf32>
    %cst_12 = arith.constant 1.000000e-30 : f32
    %18 = vector.broadcast %cst_12 : f32 to vector<256x1xf32>
    %19 = arith.maximumf %9, %18 : vector<256x1xf32>
    %cst_13 = arith.constant 1.000000e-30 : f32
    %20 = vector.broadcast %cst_13 : f32 to vector<256x1xf32>
    %21 = arith.maximumf %12, %20 : vector<256x1xf32>
    %22 = math.sqrt %19 : vector<256x1xf32>
    %23 = math.rsqrt %19 : vector<256x1xf32>
    %24 = math.rsqrt %21 : vector<256x1xf32>
    %25 = arith.mulf %21, %24 : vector<256x1xf32>
    %cst_14 = arith.constant 1.000000e+00 : f32
    %26 = vector.broadcast %cst_14 : f32 to vector<256x1xf32>
    %27 = arith.mulf %26, %22 : vector<256x1xf32>
    %cst_15 = arith.constant -0.999989986 : f32
    %cst_16 = arith.constant 0.999989986 : f32
    %28 = vector.broadcast %cst_15 : f32 to vector<256x1xf32>
    %29 = arith.maximumf %28, %27 : vector<256x1xf32>
    %30 = vector.broadcast %cst_16 : f32 to vector<256x1xf32>
    %31 = arith.minimumf %30, %29 : vector<256x1xf32>
    %cst_17 = arith.constant 1.000000e+00 : f32
    %32 = vector.broadcast %cst_17 : f32 to vector<256x1xf32>
    %33 = arith.addf %32, %31 : vector<256x1xf32>
    %cst_18 = arith.constant 1.000000e+00 : f32
    %34 = vector.broadcast %cst_18 : f32 to vector<256x1xf32>
    %35 = arith.subf %34, %31 : vector<256x1xf32>
    %36 = arith.divf %33, %35 : vector<256x1xf32>
    %37 = math.log %36 : vector<256x1xf32>
    %cst_19 = arith.constant 5.000000e-01 : f32
    %38 = vector.broadcast %cst_19 : f32 to vector<256x1xf32>
    %39 = arith.mulf %38, %37 : vector<256x1xf32>
    %40 = arith.mulf %25, %23 : vector<256x1xf32>
    %41 = arith.mulf %40, %39 : vector<256x1xf32>
    %42 = math.tanh %41 : vector<256x1xf32>
    %43 = arith.mulf %42, %24 : vector<256x1xf32>
    %cst_20 = arith.constant 1.000000e+00 : f32
    %44 = vector.broadcast %cst_20 : f32 to vector<256x1xf32>
    %45 = arith.divf %43, %44 : vector<256x1xf32>
    %cst_21 = arith.constant 0.000000e+00 : f32
    %46 = vector.broadcast %cst_21 : f32 to vector<256x1xf32>
    %47 = arith.select %17, %46, %45 : vector<256x1xi1>, vector<256x1xf32>
    %cst_22 = arith.constant 1.000000e+00 : f32
    %48 = vector.broadcast %cst_22 : f32 to vector<256x1xf32>
    %49 = arith.divf %42, %48 : vector<256x1xf32>
    %cst_23 = arith.constant 1.000000e+00 : f32
    %50 = vector.broadcast %cst_23 : f32 to vector<256x1xf32>
    %51 = arith.divf %42, %50 : vector<256x1xf32>
    %52 = arith.mulf %49, %51 : vector<256x1xf32>
    %cst_24 = arith.constant 0.000000e+00 : f32
    %53 = vector.broadcast %cst_24 : f32 to vector<256x1xf32>
    %54 = arith.select %17, %53, %52 : vector<256x1xi1>, vector<256x1xf32>
    %55 = arith.mulf %47, %6 : vector<256x1xf32>
    %cst_25 = arith.constant 2.000000e+00 : f32
    %56 = vector.broadcast %cst_25 : f32 to vector<256x1xf32>
    %57 = arith.mulf %56, %55 : vector<256x1xf32>
    %cst_26 = arith.constant 1.000000e+00 : f32
    %58 = vector.broadcast %cst_26 : f32 to vector<256x1xf32>
    %59 = arith.addf %58, %57 : vector<256x1xf32>
    %cst_27 = arith.constant 1.000000e+00 : f32
    %60 = vector.broadcast %cst_27 : f32 to vector<1x1xf32>
    %61 = arith.mulf %60, %15 : vector<1x1xf32>
    %62 = vector.broadcast %61 : vector<1x1xf32> to vector<256x1xf32>
    %63 = arith.addf %59, %62 : vector<256x1xf32>
    %cst_28 = arith.constant 1.000000e+00 : f32
    %64 = vector.broadcast %cst_28 : f32 to vector<256x1xf32>
    %65 = arith.mulf %64, %54 : vector<256x1xf32>
    %cst_29 = arith.constant 1.000000e+00 : f32
    %66 = vector.broadcast %cst_29 : f32 to vector<256x1xf32>
    %67 = arith.subf %66, %65 : vector<256x1xf32>
    %cst_30 = arith.constant 2.000000e+00 : f32
    %68 = vector.broadcast %cst_30 : f32 to vector<256x1xf32>
    %69 = arith.mulf %68, %55 : vector<256x1xf32>
    %cst_31 = arith.constant 1.000000e+00 : f32
    %70 = vector.broadcast %cst_31 : f32 to vector<256x1xf32>
    %71 = arith.addf %70, %69 : vector<256x1xf32>
    %cst_32 = arith.constant 1.000000e+00 : f32
    %72 = vector.broadcast %cst_32 : f32 to vector<256x1xf32>
    %73 = arith.mulf %72, %54 : vector<256x1xf32>
    %74 = vector.broadcast %15 : vector<1x1xf32> to vector<256x1xf32>
    %75 = arith.mulf %73, %74 : vector<256x1xf32>
    %76 = arith.addf %71, %75 : vector<256x1xf32>
    %cst_33 = arith.constant 1.000000e-15 : f32
    %77 = vector.broadcast %cst_33 : f32 to vector<256x1xf32>
    %78 = arith.maximumf %76, %77 : vector<256x1xf32>
    %79 = tpu.reciprocal %78 {approx = true} : vector<256x1xf32> -> vector<256x1xf32>
    %80 = arith.mulf %63, %79 : vector<256x1xf32>
    %81 = arith.mulf %67, %79 : vector<256x1xf32>
    %82 = arith.mulf %80, %80 : vector<256x1xf32>
    %83 = arith.mulf %82, %54 : vector<256x1xf32>
    %cst_34 = arith.constant 2.000000e+00 : f32
    %84 = vector.broadcast %cst_34 : f32 to vector<256x1xf32>
    %85 = arith.mulf %84, %80 : vector<256x1xf32>
    %86 = arith.mulf %85, %81 : vector<256x1xf32>
    %87 = arith.mulf %86, %55 : vector<256x1xf32>
    %88 = arith.addf %83, %87 : vector<256x1xf32>
    %89 = arith.mulf %81, %81 : vector<256x1xf32>
    %90 = vector.broadcast %15 : vector<1x1xf32> to vector<256x1xf32>
    %91 = arith.mulf %89, %90 : vector<256x1xf32>
    %92 = arith.addf %88, %91 : vector<256x1xf32>
    %cst_35 = arith.constant 1.000000e-30 : f32
    %93 = vector.broadcast %cst_35 : f32 to vector<256x1xf32>
    %94 = arith.maximumf %92, %93 : vector<256x1xf32>
    %95 = math.rsqrt %94 : vector<256x1xf32>
    %cst_36 = arith.constant 9.920160e-01 : f32
    %96 = vector.broadcast %cst_36 : f32 to vector<256x1xf32>
    %97 = arith.cmpf ogt, %92, %96 : vector<256x1xf32>
    %cst_37 = arith.constant 0.995999991 : f32
    %98 = vector.broadcast %cst_37 : f32 to vector<256x1xf32>
    %99 = arith.mulf %98, %95 : vector<256x1xf32>
    %cst_38 = arith.constant 1.000000e+00 : f32
    %100 = vector.broadcast %cst_38 : f32 to vector<256x1xf32>
    %101 = arith.select %97, %99, %100 : vector<256x1xi1>, vector<256x1xf32>
    %102 = arith.mulf %101, %80 : vector<256x1xf32>
    %103 = arith.mulf %102, %47 : vector<256x1xf32>
    %104 = arith.mulf %101, %81 : vector<256x1xf32>
    %105 = vector.broadcast %103 : vector<256x1xf32> to vector<256x128xf32>
    %106 = arith.mulf %105, %5 : vector<256x128xf32>
    %107 = vector.broadcast %104 : vector<256x1xf32> to vector<256x128xf32>
    %108 = vector.broadcast %2 : vector<1x128xf32> to vector<256x128xf32>
    %109 = arith.mulf %107, %108 : vector<256x128xf32>
    %110 = arith.addf %106, %109 : vector<256x128xf32>
    %c0_39 = arith.constant 0 : index
    %c0_40 = arith.constant 0 : index
    %111 = vector.load %arg5[%c0_39, %c0_40] : memref<256x128xf32, #tpu.memory_space<vmem>>, vector<256x128xf32>
    tpu.vector_store %arg5[%c0_39, %c0_40], %110 {strides = array<i32>} : memref<256x128xf32, #tpu.memory_space<vmem>>, vector<256x128xf32>,
    return
  }
  func.func @transform_0(%arg0: i32) -> (i32, i32) {
    %c0_i32 = arith.constant 0 : i32
    %c0_i32_0 = arith.constant 0 : i32
    return %arg0, %c0_i32 : i32, i32
  }
  func.func @transform_1(%arg0: i32) -> (i32, i32) {
    %c0_i32 = arith.constant 0 : i32
    %c0_i32_0 = arith.constant 0 : i32
    %c0_i32_1 = arith.constant 0 : i32
    return %c0_i32, %c0_i32_0 : i32, i32
  }
  func.func @transform_2(%arg0: i32) -> (i32, i32) {
    %c0_i32 = arith.constant 0 : i32
    %c0_i32_0 = arith.constant 0 : i32
    %c0_i32_1 = arith.constant 0 : i32
    return %c0_i32, %c0_i32_0 : i32, i32
  }
  func.func @transform_3(%arg0: i32) -> (i32, i32) {
    %c0_i32 = arith.constant 0 : i32
    %c0_i32_0 = arith.constant 0 : i32
    %c0_i32_1 = arith.constant 0 : i32
    return %c0_i32, %c0_i32_0 : i32, i32
  }
  func.func @transform_4(%arg0: i32) -> (i32, i32) {
    %c0_i32 = arith.constant 0 : i32
    %c0_i32_0 = arith.constant 0 : i32
    return %arg0, %c0_i32 : i32, i32
  }
}

</mosaic_0001>

<llo_original>
// kernel: tpu_custom_call.1
$region0: #{tpu_custom_call.1}
  #allocation0 [shape = 'u32[]', space=smem, size = 0x4, offset = 0x4, fixed_abs, tag = 'smem constant byte address 0x4 - core index']
  #allocation1 [shape = 'u32[144,128]{1,0:T(1,128)}', space=vmem, size = 0x12000, scoped, tag = 'internal scratch']
  %s0 = inlined_call_operand.vmem [shape: f32[1024,32], index: 0, kind: input, shape index: {}]
  %s1 = inlined_call_operand.vmem [shape: bf16[32,128], index: 1, kind: input, shape index: {}]
  %s2 = inlined_call_operand.vmem [shape: f32[1,128], index: 2, kind: input, shape index: {}]
  %s3 = inlined_call_operand.vmem [shape: f32[128,1], index: 3, kind: input, shape index: {}]
  %s4 = inlined_call_operand.hbm [shape: f32[1024,128], index: 4, kind: output, shape index: {}]
  %s5 = sld [smem:[#allocation0]]
  $region49: #{tpu_custom_call.1} parent=0
    _
  %s7 = ssub.s32 1, %s5
  %s8 = scalar_select 0, %s7, %s5
  $region1: #{tpu_custom_call.1} parent=0
    #allocation2 [shape = 'u8[262144]{0}', space=vmem, size = 0x40000, scoped, tag = 'output window, operand 0']
    #allocation3 [shape = 's32[2]{0}', space=sflag, size = 0x8, scoped, tag = 'scoped memory for tpu_custom_call.1']
    %9 = vsyncpa [#allocation3], 0
    %s10 = scalar_lea.sflag [#allocation3], 1
    %11 = vsyncpa %s10, 0
    loop: start=0, step=1, limit=6
    $region2: #{tpu_custom_call.1} parent=1 // loop_pre_header
      _
    $region3: #{tpu_custom_call.1} parent=1 // loop_header
      %s13 = sphi 0, %s17
      %p14 = scmp.ge.s32.totalorder %s13, 6
      %s23 = sphi 0, %s25
      %s26 = sphi 0, %s23
      %s27 = sphi 0, %s26
      %s43 = sphi 0, %s27
      %s47 = sphi 0, %s47
      %s49 = sphi 0, %s47
      %s50 = sphi 0, %s49
      %s64 = sphi 0, %s50
      %s68 = sphi 0, %s68
      %s70 = sphi 0, %s68
      %s71 = sphi 0, %s70
      %s85 = sphi 0, %s71
      %s89 = sphi 0, %s89
      %s91 = sphi 0, %s89
      %s92 = sphi 0, %s91
      %s106 = sphi 0, %s92
      %s112 = sphi 0, %s114
      %s115 = sphi 0, %s112
      %s116 = sphi 0, %s115
      %s132 = sphi 0, %s116
    $region4: #{tpu_custom_call.1} parent=1 // loop_header_branch
      %16 = sbr.rel (%p14) target = $region8
    $region5: #{tpu_custom_call.1} parent=1 // loop_body
      %s18 = ssub.s32 %s13, 1
      %s19 = ssub.s32 %s13, 2
      %s20 = sadd.s32 %s13, 1
      %s21 = ssub.s32 %s13, %s20
      %p22 = scmp.eq.s32.totalorder %s21, 0
      %s24 = sadd.s32 %s23, 1
      %s25 = scalar_select %p22, %s23, %s24
      %p28 = pneg %p22
      %p29 = scmp.eq.s32.totalorder %s13, 3
      %p30 = por %p28, %p29
      %p31 = scmp.ne.s32.totalorder %s23, %s26
      %p32 = scmp.eq.s32.totalorder %s13, 0
      %p33 = por %p31, %p32
      %p34 = scmp.ne.s32.totalorder %s23, %s26
      %p35 = scmp.eq.s32.totalorder %s18, 3
      %p36 = por %p34, %p35
      %p37 = scmp.ne.s32.totalorder %s26, %s27
      %p38 = scmp.eq.s32.totalorder %s18, 0
      %p39 = por %p37, %p38
      %p40 = scmp.ne.s32.totalorder %s26, %s27
      %p41 = scmp.eq.s32.totalorder %s19, 3
      %p42 = por %p40, %p41
      %p44 = scmp.ne.s32.totalorder %s27, %s43
      %p45 = scmp.eq.s32.totalorder %s19, 0
      %p46 = por %p44, %p45
      %s48 = sadd.s32 %s47, 1
      %p51 = scmp.eq.s32.totalorder %s13, 3
      %p52 = scmp.ne.s32.totalorder %s47, %s49
      %p53 = scmp.eq.s32.totalorder %s13, 0
      %p54 = por %p52, %p53
      %p55 = scmp.ne.s32.totalorder %s47, %s49
      %p56 = scmp.eq.s32.totalorder %s18, 3
      %p57 = por %p55, %p56
      %p58 = scmp.ne.s32.totalorder %s49, %s50
      %p59 = scmp.eq.s32.totalorder %s18, 0
      %p60 = por %p58, %p59
      %p61 = scmp.ne.s32.totalorder %s49, %s50
      %p62 = scmp.eq.s32.totalorder %s19, 3
      %p63 = por %p61, %p62
      %p65 = scmp.ne.s32.totalorder %s50, %s64
      %p66 = scmp.eq.s32.totalorder %s19, 0
      %p67 = por %p65, %p66
      %s69 = sadd.s32 %s68, 1
      %p72 = scmp.eq.s32.totalorder %s13, 3
      %p73 = scmp.ne.s32.totalorder %s68, %s70
      %p74 = scmp.eq.s32.totalorder %s13, 0
      %p75 = por %p73, %p74
      %p76 = scmp.ne.s32.totalorder %s68, %s70
      %p77 = scmp.eq.s32.totalorder %s18, 3
      %p78 = por %p76, %p77
      %p79 = scmp.ne.s32.totalorder %s70, %s71
      %p80 = scmp.eq.s32.totalorder %s18, 0
      %p81 = por %p79, %p80
      %p82 = scmp.ne.s32.totalorder %s70, %s71
      %p83 = scmp.eq.s32.totalorder %s19, 3
      %p84 = por %p82, %p83
      %p86 = scmp.ne.s32.totalorder %s71, %s85
      %p87 = scmp.eq.s32.totalorder %s19, 0
      %p88 = por %p86, %p87
      %s90 = sadd.s32 %s89, 1
      %p93 = scmp.eq.s32.totalorder %s13, 3
      %p94 = scmp.ne.s32.totalorder %s89, %s91
      %p95 = scmp.eq.s32.totalorder %s13, 0
      %p96 = por %p94, %p95
      %p97 = scmp.ne.s32.totalorder %s89, %s91
      %p98 = scmp.eq.s32.totalorder %s18, 3
      %p99 = por %p97, %p98
      %p100 = scmp.ne.s32.totalorder %s91, %s92
      %p101 = scmp.eq.s32.totalorder %s18, 0
      %p102 = por %p100, %p101
      %p103 = scmp.ne.s32.totalorder %s91, %s92
      %p104 = scmp.eq.s32.totalorder %s19, 3
      %p105 = por %p103, %p104
      %p107 = scmp.ne.s32.totalorder %s92, %s106
      %p108 = scmp.eq.s32.totalorder %s19, 0
      %p109 = por %p107, %p108
      %s110 = ssub.s32 %s13, %s20
      %p111 = scmp.eq.s32.totalorder %s110, 0
      %s113 = sadd.s32 %s112, 1
      %s114 = scalar_select %p111, %s112, %s113
      %p117 = pneg %p111
      %p118 = scmp.eq.s32.totalorder %s13, 3
      %p119 = por %p117, %p118
      %p120 = scmp.ne.s32.totalorder %s112, %s115
      %p121 = scmp.eq.s32.totalorder %s13, 0
      %p122 = por %p120, %p121
      %p123 = scmp.ne.s32.totalorder %s112, %s115
      %p124 = scmp.eq.s32.totalorder %s18, 3
      %p125 = por %p123, %p124
      %p126 = scmp.ne.s32.totalorder %s115, %s116
      %p127 = scmp.eq.s32.totalorder %s18, 0
      %p128 = por %p126, %p127
      %p129 = scmp.ne.s32.totalorder %s115, %s116
      %p130 = scmp.eq.s32.totalorder %s19, 3
      %p131 = por %p129, %p130
      %p133 = scmp.ne.s32.totalorder %s116, %s132
      %p134 = scmp.eq.s32.totalorder %s19, 0
      %p135 = por %p133, %p134
      %p136 = scmp.le.s32.totalorder 1, %s13
      %p137 = scmp.lt.s32.totalorder %s13, 5
      %p138 = pnand %p136, %p137
      %p139 = pneg %p138
      // Predicated region
      $region9: #{tpu_custom_call.1} parent=5 // pred_check
        _
      $region10: #{tpu_custom_call.1} parent=5 // pred_check_branch
        %141 = sbr.rel (%p138) target = $region12
      $region11: #{tpu_custom_call.1} parent=5 // pred_region
        %s142 = ssub.s32 %s13, 1
        // Predicated region
        $region13: #{tpu_custom_call.1} parent=11 // pred_check
          %p143 = pneg %p60
        $region14: #{tpu_custom_call.1} parent=11 // pred_check_branch
          %145 = sbr.rel (%p143) target = $region16
        $region15: #{tpu_custom_call.1} parent=11 // pred_region
          _
        $region16: #{tpu_custom_call.1} parent=11 // pred_fallthru
          _
        // Predicated region
        $region17: #{tpu_custom_call.1} parent=11 // pred_check
          %p146 = pneg %p81
        $region18: #{tpu_custom_call.1} parent=11 // pred_check_branch
          %148 = sbr.rel (%p146) target = $region20
        $region19: #{tpu_custom_call.1} parent=11 // pred_region
          _
        $region20: #{tpu_custom_call.1} parent=11 // pred_fallthru
          _
        // Predicated region
        $region21: #{tpu_custom_call.1} parent=11 // pred_check
          %p149 = pneg %p102
        $region22: #{tpu_custom_call.1} parent=11 // pred_check_branch
          %151 = sbr.rel (%p149) target = $region24
        $region23: #{tpu_custom_call.1} parent=11 // pred_region
          _
        $region24: #{tpu_custom_call.1} parent=11 // pred_fallthru
          _
      $region12: #{tpu_custom_call.1} parent=5 // pred_fallthru
        _
      %p152 = scmp.lt.s32.totalorder %s13, 4
      // Predicated region
      $region25: #{tpu_custom_call.1} parent=5 // pred_check
        %p153 = pneg %p152
      $region26: #{tpu_custom_call.1} parent=5 // pred_check_branch
        %155 = sbr.rel (%p153) target = $region28
      $region27: #{tpu_custom_call.1} parent=5 // pred_region
        // Predicated region
        $region29: #{tpu_custom_call.1} parent=27 // pred_check
          %p156 = pneg %p33
        $region30: #{tpu_custom_call.1} parent=27 // pred_check_branch
          %158 = sbr.rel (%p156) target = $region32
        $region31: #{tpu_custom_call.1} parent=27 // pred_region
          %s159 = smul.u32 32, %s13
          %p160 = scmp.lt.s32.totalorder %s159, 127
          %s161 = scalar_select %p160, %s159, 127
          %s162 = smul.addr %s161, 8
          %s163 = scalar_lea.vmem %s0, %s162
          %s164 = smul.u32 32, %s13
        $region32: #{tpu_custom_call.1} parent=27 // pred_fallthru
          _
      $region28: #{tpu_custom_call.1} parent=5 // pred_fallthru
        _
      %p165 = scmp.le.s32.totalorder 1, %s13
      %p166 = scmp.lt.s32.totalorder %s13, 5
      %p167 = pnand %p165, %p166
      %p168 = pneg %p167
      // Predicated region
      $region33: #{tpu_custom_call.1} parent=5 // pred_check
        _
      $region34: #{tpu_custom_call.1} parent=5 // pred_check_branch
        %170 = sbr.rel (%p167) target = $region36
      $region35: #{tpu_custom_call.1} parent=5 // pred_region
        %s171 = ssub.s32 %s13, 1
        %s172 = smul.u32 32, %s18
        %p173 = scmp.lt.s32.totalorder %s172, 127
        %s174 = scalar_select %p173, %s172, 127
        %s175 = smul.addr %s174, 8
        %s176 = scalar_lea.vmem %s0, %s175
        %p177 = pneg %p39
        %p178 = pneg %p36
        %p179 = pneg %p60
        %p180 = pneg %p57
        %p181 = pneg %p81
        %p182 = pneg %p78
        %p183 = pneg %p102
        %p184 = pneg %p99
        %p185 = pneg %p128
        %p186 = pneg %p125
        %s187 = sand.u32 %s115, 1
        %s188 = scalar_lea.sflag [#allocation3], %s187
        %s189 = sand.u32 %s115, 1
        %s190 = smul.addr %s189, 256
        %s191 = scalar_lea.vmem [#allocation2], %s190
        %s192 = smul.u32 32, %s18
        %p193 = scmp.lt.s32.totalorder %s192, 127
        %s194 = scalar_select %p193, %s192, 127
        %s195 = smul.addr %s194, 8
        %s196 = scalar_lea.vmem %s0, %s195
        %s197 = smul.u32 32, %s18
        %s198 = smul.u32 32, %s18
        %v200 = vld [vmem:[%s196] sm:$0xff]
        %v201 = vld [vmem:[%s196 + $0x8] sm:$0xff]
        %v202 = vld [vmem:[%s196 + $0x10] sm:$0xff]
        %v203 = vld [vmem:[%s196 + $0x18] sm:$0xff]
        %v204 = vld [vmem:[%s196 + $0x20] sm:$0xff]
        %v205 = vld [vmem:[%s196 + $0x28] sm:$0xff]
        %v206 = vld [vmem:[%s196 + $0x30] sm:$0xff]
        %v207 = vld [vmem:[%s196 + $0x38] sm:$0xff]
        %v208 = vld [vmem:[%s196 + $0x40] sm:$0xff]
        %v209 = vld [vmem:[%s196 + $0x48] sm:$0xff]
        %v210 = vld [vmem:[%s196 + $0x50] sm:$0xff]
        %v211 = vld [vmem:[%s196 + $0x58] sm:$0xff]
        %v212 = vld [vmem:[%s196 + $0x60] sm:$0xff]
        %v213 = vld [vmem:[%s196 + $0x68] sm:$0xff]
        %v214 = vld [vmem:[%s196 + $0x70] sm:$0xff]
        %v215 = vld [vmem:[%s196 + $0x78] sm:$0xff]
        %v216 = vld [vmem:[%s196 + $0x80] sm:$0xff]
        %v217 = vld [vmem:[%s196 + $0x88] sm:$0xff]
        %v218 = vld [vmem:[%s196 + $0x90] sm:$0xff]
        %v219 = vld [vmem:[%s196 + $0x98] sm:$0xff]
        %v220 = vld [vmem:[%s196 + $0xa0] sm:$0xff]
        %v221 = vld [vmem:[%s196 + $0xa8] sm:$0xff]
        %v222 = vld [vmem:[%s196 + $0xb0] sm:$0xff]
        %v223 = vld [vmem:[%s196 + $0xb8] sm:$0xff]
        %v224 = vld [vmem:[%s196 + $0xc0] sm:$0xff]
        %v225 = vld [vmem:[%s196 + $0xc8] sm:$0xff]
        %v226 = vld [vmem:[%s196 + $0xd0] sm:$0xff]
        %v227 = vld [vmem:[%s196 + $0xd8] sm:$0xff]
        %v228 = vld [vmem:[%s196 + $0xe0] sm:$0xff]
        %v229 = vld [vmem:[%s196 + $0xe8] sm:$0xff]
        %v230 = vld [vmem:[%s196 + $0xf0] sm:$0xff]
        %v231 = vld [vmem:[%s196 + $0xf8] sm:$0xff]
        %v232 = vld [vmem:[%s1] sm:$0xf]
        %v233 = vld [vmem:[%s1 + $0x4] sm:$0xf]
        %v234 = vld [vmem:[%s1 + $0x8] sm:$0xf]
        %v235 = vld [vmem:[%s1 + $0xc] sm:$0xf]
        %v236 = vld [vmem:[%s2] sm:$0x1]
        %v237 = vld [vmem:[%s3] sm:$0xff]
        %v238 = vld [vmem:[%s3 + $0x8] sm:$0xff]
        %v239 = vld [vmem:[%s3 + $0x10] sm:$0xff]
        %v240 = vld [vmem:[%s3 + $0x18] sm:$0xff]
        %v241 = vld [vmem:[%s3 + $0x20] sm:$0xff]
        %v242 = vld [vmem:[%s3 + $0x28] sm:$0xff]
        %v243 = vld [vmem:[%s3 + $0x30] sm:$0xff]
        %v244 = vld [vmem:[%s3 + $0x38] sm:$0xff]
        %v245 = vld [vmem:[%s3 + $0x40] sm:$0xff]
        %v246 = vld [vmem:[%s3 + $0x48] sm:$0xff]
        %v247 = vld [vmem:[%s3 + $0x50] sm:$0xff]
        %v248 = vld [vmem:[%s3 + $0x58] sm:$0xff]
        %v249 = vld [vmem:[%s3 + $0x60] sm:$0xff]
        %v250 = vld [vmem:[%s3 + $0x68] sm:$0xff]
        %v251 = vld [vmem:[%s3 + $0x70] sm:$0xff]
        %v252 = vld [vmem:[%s3 + $0x78] sm:$0xff]
        %v253 = vpack.c.bf16 %v201, %v200
        %v254 = vpack.c.bf16 %v203, %v202
        %v255 = vpack.c.bf16 %v205, %v204
        %v256 = vpack.c.bf16 %v207, %v206
        %v257 = vpack.c.bf16 %v209, %v208
        %v258 = vpack.c.bf16 %v211, %v210
        %v259 = vpack.c.bf16 %v213, %v212
        %v260 = vpack.c.bf16 %v215, %v214
        %v261 = vpack.c.bf16 %v217, %v216
        %v262 = vpack.c.bf16 %v219, %v218
        %v263 = vpack.c.bf16 %v221, %v220
        %v264 = vpack.c.bf16 %v223, %v222
        %v265 = vpack.c.bf16 %v225, %v224
        %v266 = vpack.c.bf16 %v227, %v226
        %v267 = vpack.c.bf16 %v229, %v228
        %v268 = vpack.c.bf16 %v231, %v230
        %v273 = vunpack.c.l.b16 %v232
        %v274 = vunpack.c.l.b16 %v233
        %v275 = vunpack.c.l.b16 %v234
        %v276 = vunpack.c.l.b16 %v235
        %v277 = vpack.c.b16 %v274, %v273
        %v278 = vpack.c.b16 %v276, %v275
        %vm281 = vcmask 261120
        %v283 = vsel %vm281, %v253, 0
        %v286 = vsel %vm281, %v254, 0
        %v289 = vsel %vm281, %v255, 0
        %v292 = vsel %vm281, %v256, 0
        %v295 = vsel %vm281, %v257, 0
        %v298 = vsel %vm281, %v258, 0
        %v301 = vsel %vm281, %v259, 0
        %v304 = vsel %vm281, %v260, 0
        %v307 = vsel %vm281, %v261, 0
        %v310 = vsel %vm281, %v262, 0
        %v313 = vsel %vm281, %v263, 0
        %v316 = vsel %vm281, %v264, 0
        %v319 = vsel %vm281, %v265, 0
        %v322 = vsel %vm281, %v266, 0
        %v325 = vsel %vm281, %v267, 0
        %v328 = vsel %vm281, %v268, 0
        %330 = vmatprep.subr.bf16.mxu0 0
        %331 = vmatpush1.bf16.msra.mxu0 0
        %332 = vmatprep.subr.bf16.mxu0 0
        %333 = vmatpush1.bf16.msra.mxu0 0
        %334 = vmatprep.subr.bf16.mxu0 0
        %335 = vmatpush1.bf16.msra.mxu0 0
        %336 = vmatprep.subr.bf16.mxu0 0
        %337 = vmatpush1.bf16.msra.mxu0 0
        %338 = vmatprep.subr.bf16.mxu0 0
        %339 = vmatpush1.bf16.msra.mxu0 0
        %340 = vmatprep.subr.bf16.mxu0 0
        %341 = vmatpush1.bf16.msra.mxu0 0
        %342 = vmatprep.subr.bf16.mxu0 0
        %343 = vmatpush1.bf16.msra.mxu0 %v278
        %344 = vmatprep.subr.bf16.mxu0 0
        %345 = vmatpush1.bf16.msra.mxu0 %v277
        %346 = vmatprep.subr.bf16.mxu0 0
        %347 = vmatpush2.bf16.msra.mxu0 0
        %348 = vmatprep.subr.bf16.mxu0 0
        %349 = vmatpush2.bf16.msra.mxu0 0
        %350 = vmatprep.subr.bf16.mxu0 0
        %351 = vmatpush2.bf16.msra.mxu0 0
        %352 = vmatprep.subr.bf16.mxu0 0
        %353 = vmatpush2.bf16.msra.mxu0 0
        %354 = vmatprep.subr.bf16.mxu0 0
        %355 = vmatpush2.bf16.msra.mxu0 0
        %356 = vmatprep.subr.bf16.mxu0 0
        %357 = vmatpush2.bf16.msra.mxu0 0
        %358 = vmatprep.subr.bf16.mxu0 0
        %359 = vmatpush2.bf16.msra.mxu0 0
        %360 = vmatprep.subr.bf16.mxu0 0
        %361 = vmatpush2.bf16.msra.mxu0 0
        %362 = vmatprep.mubr.bf16.mxu0 0
        %363 = vmatmul.mubr.bf16.gmra.mxu0 %v283
        %v364 = vpop.f32.mrf.mxu0
        %v365 = vadd.f32 0.0, %v364
        %v366 = vpop.f32.mrf.mxu0
        %v367 = vpop.f32.mrf.mxu0
        %v368 = vadd.f32 0.0, %v367
        %v369 = vpop.f32.mrf.mxu0
        %370 = vmatprep.mubr.bf16.mxu0 0
        %371 = vmatmul.mubr.bf16.gmra.mxu0 %v286
        %v372 = vpop.f32.mrf.mxu0
        %v373 = vadd.f32 0.0, %v372
        %v374 = vpop.f32.mrf.mxu0
        %v375 = vpop.f32.mrf.mxu0
        %v376 = vadd.f32 0.0, %v375
        %v377 = vpop.f32.mrf.mxu0
        %378 = vmatprep.mubr.bf16.mxu0 0
        %379 = vmatmul.mubr.bf16.gmra.mxu0 %v289
        %v380 = vpop.f32.mrf.mxu0
        %v381 = vadd.f32 0.0, %v380
        %v382 = vpop.f32.mrf.mxu0
        %v383 = vpop.f32.mrf.mxu0
        %v384 = vadd.f32 0.0, %v383
        %v385 = vpop.f32.mrf.mxu0
        %386 = vmatprep.mubr.bf16.mxu0 0
        %387 = vmatmul.mubr.bf16.gmra.mxu0 %v292
        %v388 = vpop.f32.mrf.mxu0
        %v389 = vadd.f32 0.0, %v388
        %v390 = vpop.f32.mrf.mxu0
        %v391 = vpop.f32.mrf.mxu0
        %v392 = vadd.f32 0.0, %v391
        %v393 = vpop.f32.mrf.mxu0
        %394 = vmatprep.mubr.bf16.mxu0 0
        %395 = vmatmul.mubr.bf16.gmra.mxu0 %v295
        %v396 = vpop.f32.mrf.mxu0
        %v397 = vadd.f32 0.0, %v396
        %v398 = vpop.f32.mrf.mxu0
        %v399 = vpop.f32.mrf.mxu0
        %v400 = vadd.f32 0.0, %v399
        %v401 = vpop.f32.mrf.mxu0
        %402 = vmatprep.mubr.bf16.mxu0 0
        %403 = vmatmul.mubr.bf16.gmra.mxu0 %v298
        %v404 = vpop.f32.mrf.mxu0
        %v405 = vadd.f32 0.0, %v404
        %v406 = vpop.f32.mrf.mxu0
        %v407 = vpop.f32.mrf.mxu0
        %v408 = vadd.f32 0.0, %v407
        %v409 = vpop.f32.mrf.mxu0
        %410 = vmatprep.mubr.bf16.mxu0 0
        %411 = vmatmul.mubr.bf16.gmra.mxu0 %v301
        %v412 = vpop.f32.mrf.mxu0
        %v413 = vadd.f32 0.0, %v412
        %v414 = vpop.f32.mrf.mxu0
        %v415 = vpop.f32.mrf.mxu0
        %v416 = vadd.f32 0.0, %v415
        %v417 = vpop.f32.mrf.mxu0
        %418 = vmatprep.mubr.bf16.mxu0 0
        %419 = vmatmul.mubr.bf16.gmra.mxu0 %v304
        %v420 = vpop.f32.mrf.mxu0
        %v421 = vadd.f32 0.0, %v420
        %v422 = vpop.f32.mrf.mxu0
        %v423 = vpop.f32.mrf.mxu0
        %v424 = vadd.f32 0.0, %v423
        %v425 = vpop.f32.mrf.mxu0
        %426 = vmatprep.mubr.bf16.mxu0 0
        %427 = vmatmul.mubr.bf16.gmra.mxu0 %v307
        %v428 = vpop.f32.mrf.mxu0
        %v429 = vadd.f32 0.0, %v428
        %v430 = vpop.f32.mrf.mxu0
        %v431 = vpop.f32.mrf.mxu0
        %v432 = vadd.f32 0.0, %v431
        %v433 = vpop.f32.mrf.mxu0
        %434 = vmatprep.mubr.bf16.mxu0 0
        %435 = vmatmul.mubr.bf16.gmra.mxu0 %v310
        %v436 = vpop.f32.mrf.mxu0
        %v437 = vadd.f32 0.0, %v436
        %v438 = vpop.f32.mrf.mxu0
        %v439 = vpop.f32.mrf.mxu0
        %v440 = vadd.f32 0.0, %v439
        %v441 = vpop.f32.mrf.mxu0
        %442 = vmatprep.mubr.bf16.mxu0 0
        %443 = vmatmul.mubr.bf16.gmra.mxu0 %v313
        %v444 = vpop.f32.mrf.mxu0
        %v445 = vadd.f32 0.0, %v444
        %v446 = vpop.f32.mrf.mxu0
        %v447 = vpop.f32.mrf.mxu0
        %v448 = vadd.f32 0.0, %v447
        %v449 = vpop.f32.mrf.mxu0
        %450 = vmatprep.mubr.bf16.mxu0 0
        %451 = vmatmul.mubr.bf16.gmra.mxu0 %v316
        %v452 = vpop.f32.mrf.mxu0
        %v453 = vadd.f32 0.0, %v452
        %v454 = vpop.f32.mrf.mxu0
        %v455 = vpop.f32.mrf.mxu0
        %v456 = vadd.f32 0.0, %v455
        %v457 = vpop.f32.mrf.mxu0
        %458 = vmatprep.mubr.bf16.mxu0 0
        %459 = vmatmul.mubr.bf16.gmra.mxu0 %v319
        %v460 = vpop.f32.mrf.mxu0
        %v461 = vadd.f32 0.0, %v460
        %v462 = vpop.f32.mrf.mxu0
        %v463 = vpop.f32.mrf.mxu0
        %v464 = vadd.f32 0.0, %v463
        %v465 = vpop.f32.mrf.mxu0
        %466 = vmatprep.mubr.bf16.mxu0 0
        %467 = vmatmul.mubr.bf16.gmra.mxu0 %v322
        %v468 = vpop.f32.mrf.mxu0
        %v469 = vadd.f32 0.0, %v468
        %v470 = vpop.f32.mrf.mxu0
        %v471 = vpop.f32.mrf.mxu0
        %v472 = vadd.f32 0.0, %v471
        %v473 = vpop.f32.mrf.mxu0
        %474 = vmatprep.mubr.bf16.mxu0 0
        %475 = vmatmul.mubr.bf16.gmra.mxu0 %v325
        %v476 = vpop.f32.mrf.mxu0
        %v477 = vadd.f32 0.0, %v476
        %v478 = vpop.f32.mrf.mxu0
        %v479 = vpop.f32.mrf.mxu0
        %v480 = vadd.f32 0.0, %v479
        %v481 = vpop.f32.mrf.mxu0
        %482 = vmatprep.mubr.bf16.mxu0 0
        %483 = vmatmul.mubr.bf16.gmra.mxu0 %v328
        %v484 = vpop.f32.mrf.mxu0
        %v485 = vadd.f32 0.0, %v484
        %v486 = vpop.f32.mrf.mxu0
        %v487 = vpop.f32.mrf.mxu0
        %v488 = vadd.f32 0.0, %v487
        %v489 = vpop.f32.mrf.mxu0
        %490 = vdwg.mxu0
        %491 = vmatprep.subr.mxu0 0.0
        %492 = vmatpush1.msra.mxu0 %v252
        %493 = vmatprep.subr.mxu0 0.0
        %494 = vmatpush1.msra.mxu0 %v251
        %495 = vmatprep.subr.mxu0 0.0
        %496 = vmatpush1.msra.mxu0 %v250
        %497 = vmatprep.subr.mxu0 0.0
        %498 = vmatpush1.msra.mxu0 %v249
        %499 = vmatprep.subr.mxu0 0.0
        %500 = vmatpush1.msra.mxu0 %v248
        %501 = vmatprep.subr.mxu0 0.0
        %502 = vmatpush1.msra.mxu0 %v247
        %503 = vmatprep.subr.mxu0 0.0
        %504 = vmatpush1.msra.mxu0 %v246
        %505 = vmatprep.subr.mxu0 0.0
        %506 = vmatpush1.msra.mxu0 %v245
        %507 = vmatprep.subr.mxu0 0.0
        %508 = vmatpush1.msra.mxu0 %v244
        %509 = vmatprep.subr.mxu0 0.0
        %510 = vmatpush1.msra.mxu0 %v243
        %511 = vmatprep.subr.mxu0 0.0
        %512 = vmatpush1.msra.mxu0 %v242
        %513 = vmatprep.subr.mxu0 0.0
        %514 = vmatpush1.msra.mxu0 %v241
        %515 = vmatprep.subr.mxu0 0.0
        %516 = vmatpush1.msra.mxu0 %v240
        %517 = vmatprep.subr.mxu0 0.0
        %518 = vmatpush1.msra.mxu0 %v239
        %519 = vmatprep.subr.mxu0 0.0
        %520 = vmatpush1.msra.mxu0 %v238
        %521 = vmatprep.subr.mxu0 0.0
        %522 = vmatpush1.msra.mxu0 %v237
        %523 = vmatprep.subr.mxu0 0.0
        %524 = vmatpush2.msra.mxu0 0.0
        %525 = vmatprep.subr.mxu0 0.0
        %526 = vmatpush2.msra.mxu0 0.0
        %527 = vmatprep.subr.mxu0 0.0
        %528 = vmatpush2.msra.mxu0 0.0
        %529 = vmatprep.subr.mxu0 0.0
        %530 = vmatpush2.msra.mxu0 0.0
        %531 = vmatprep.subr.mxu0 0.0
        %532 = vmatpush2.msra.mxu0 0.0
        %533 = vmatprep.subr.mxu0 0.0
        %534 = vmatpush2.msra.mxu0 0.0
        %535 = vmatprep.subr.mxu0 0.0
        %536 = vmatpush2.msra.mxu0 0.0
        %537 = vmatprep.subr.mxu0 0.0
        %538 = vmatpush2.msra.mxu0 0.0
        %539 = vmatprep.subr.mxu0 0.0
        %540 = vmatpush2.msra.mxu0 0.0
        %541 = vmatprep.subr.mxu0 0.0
        %542 = vmatpush2.msra.mxu0 0.0
        %543 = vmatprep.subr.mxu0 0.0
        %544 = vmatpush2.msra.mxu0 0.0
        %545 = vmatprep.subr.mxu0 0.0
        %546 = vmatpush2.msra.mxu0 0.0
        %547 = vmatprep.subr.mxu0 0.0
        %548 = vmatpush2.msra.mxu0 0.0
        %549 = vmatprep.subr.mxu0 0.0
        %550 = vmatpush2.msra.mxu0 0.0
        %551 = vmatprep.subr.mxu0 0.0
        %552 = vmatpush2.msra.mxu0 0.0
        %553 = vmatprep.subr.mxu0 0.0
        %554 = vmatpush2.msra.mxu0 0.0
        %555 = vmatprep.mubr.f32.mxu0 0.0
        %556 = vmatmul.mubr.f32.gmra.mxu0 %v365
        %v557 = vpop.f32.mrf.mxu0
        %v558 = vadd.f32 0.0, %v557
        %v559 = vpop.f32.mrf.mxu0
        %560 = vmatprep.mubr.f32.mxu0 0.0
        %561 = vmatmul.mubr.f32.gmra.mxu0 %v368
        %v562 = vpop.f32.mrf.mxu0
        %v563 = vadd.f32 0.0, %v562
        %v564 = vpop.f32.mrf.mxu0
        %565 = vmatprep.mubr.f32.mxu0 0.0
        %566 = vmatmul.mubr.f32.gmra.mxu0 %v373
        %v567 = vpop.f32.mrf.mxu0
        %v568 = vadd.f32 0.0, %v567
        %v569 = vpop.f32.mrf.mxu0
        %570 = vmatprep.mubr.f32.mxu0 0.0
        %571 = vmatmul.mubr.f32.gmra.mxu0 %v376
        %v572 = vpop.f32.mrf.mxu0
        %v573 = vadd.f32 0.0, %v572
        %v574 = vpop.f32.mrf.mxu0
        %575 = vmatprep.mubr.f32.mxu0 0.0
        %576 = vmatmul.mubr.f32.gmra.mxu0 %v381
        %v577 = vpop.f32.mrf.mxu0
        %v578 = vadd.f32 0.0, %v577
        %v579 = vpop.f32.mrf.mxu0
        %580 = vmatprep.mubr.f32.mxu0 0.0
        %581 = vmatmul.mubr.f32.gmra.mxu0 %v384
        %v582 = vpop.f32.mrf.mxu0
        %v583 = vadd.f32 0.0, %v582
        %v584 = vpop.f32.mrf.mxu0
        %585 = vmatprep.mubr.f32.mxu0 0.0
        %586 = vmatmul.mubr.f32.gmra.mxu0 %v389
        %v587 = vpop.f32.mrf.mxu0
        %v588 = vadd.f32 0.0, %v587
        %v589 = vpop.f32.mrf.mxu0
        %590 = vmatprep.mubr.f32.mxu0 0.0
        %591 = vmatmul.mubr.f32.gmra.mxu0 %v392
        %v592 = vpop.f32.mrf.mxu0
        %v593 = vadd.f32 0.0, %v592
        %v594 = vpop.f32.mrf.mxu0
        %595 = vmatprep.mubr.f32.mxu0 0.0
        %596 = vmatmul.mubr.f32.gmra.mxu0 %v397
        %v597 = vpop.f32.mrf.mxu0
        %v598 = vadd.f32 0.0, %v597
        %v599 = vpop.f32.mrf.mxu0
        %600 = vmatprep.mubr.f32.mxu0 0.0
        %601 = vmatmul.mubr.f32.gmra.mxu0 %v400
        %v602 = vpop.f32.mrf.mxu0
        %v603 = vadd.f32 0.0, %v602
        %v604 = vpop.f32.mrf.mxu0
        %605 = vmatprep.mubr.f32.mxu0 0.0
        %606 = vmatmul.mubr.f32.gmra.mxu0 %v405
        %v607 = vpop.f32.mrf.mxu0
        %v608 = vadd.f32 0.0, %v607
        %v609 = vpop.f32.mrf.mxu0
        %610 = vmatprep.mubr.f32.mxu0 0.0
        %611 = vmatmul.mubr.f32.gmra.mxu0 %v408
        %v612 = vpop.f32.mrf.mxu0
        %v613 = vadd.f32 0.0, %v612
        %v614 = vpop.f32.mrf.mxu0
        %615 = vmatprep.mubr.f32.mxu0 0.0
        %616 = vmatmul.mubr.f32.gmra.mxu0 %v413
        %v617 = vpop.f32.mrf.mxu0
        %v618 = vadd.f32 0.0, %v617
        %v619 = vpop.f32.mrf.mxu0
        %620 = vmatprep.mubr.f32.mxu0 0.0
        %621 = vmatmul.mubr.f32.gmra.mxu0 %v416
        %v622 = vpop.f32.mrf.mxu0
        %v623 = vadd.f32 0.0, %v622
        %v624 = vpop.f32.mrf.mxu0
        %625 = vmatprep.mubr.f32.mxu0 0.0
        %626 = vmatmul.mubr.f32.gmra.mxu0 %v421
        %v627 = vpop.f32.mrf.mxu0
        %v628 = vadd.f32 0.0, %v627
        %v629 = vpop.f32.mrf.mxu0
        %630 = vmatprep.mubr.f32.mxu0 0.0
        %631 = vmatmul.mubr.f32.gmra.mxu0 %v424
        %v632 = vpop.f32.mrf.mxu0
        %v633 = vadd.f32 0.0, %v632
        %v634 = vpop.f32.mrf.mxu0
        %635 = vmatprep.mubr.f32.mxu0 0.0
        %636 = vmatmul.mubr.f32.gmra.mxu0 %v429
        %v637 = vpop.f32.mrf.mxu0
        %v638 = vadd.f32 0.0, %v637
        %v639 = vpop.f32.mrf.mxu0
        %640 = vmatprep.mubr.f32.mxu0 0.0
        %641 = vmatmul.mubr.f32.gmra.mxu0 %v432
        %v642 = vpop.f32.mrf.mxu0
        %v643 = vadd.f32 0.0, %v642
        %v644 = vpop.f32.mrf.mxu0
        %645 = vmatprep.mubr.f32.mxu0 0.0
        %646 = vmatmul.mubr.f32.gmra.mxu0 %v437
        %v647 = vpop.f32.mrf.mxu0
        %v648 = vadd.f32 0.0, %v647
        %v649 = vpop.f32.mrf.mxu0
        %650 = vmatprep.mubr.f32.mxu0 0.0
        %651 = vmatmul.mubr.f32.gmra.mxu0 %v440
        %v652 = vpop.f32.mrf.mxu0
        %v653 = vadd.f32 0.0, %v652
        %v654 = vpop.f32.mrf.mxu0
        %655 = vmatprep.mubr.f32.mxu0 0.0
        %656 = vmatmul.mubr.f32.gmra.mxu0 %v445
        %v657 = vpop.f32.mrf.mxu0
        %v658 = vadd.f32 0.0, %v657
        %v659 = vpop.f32.mrf.mxu0
        %660 = vmatprep.mubr.f32.mxu0 0.0
        %661 = vmatmul.mubr.f32.gmra.mxu0 %v448
        %v662 = vpop.f32.mrf.mxu0
        %v663 = vadd.f32 0.0, %v662
        %v664 = vpop.f32.mrf.mxu0
        %665 = vmatprep.mubr.f32.mxu0 0.0
        %666 = vmatmul.mubr.f32.gmra.mxu0 %v453
        %v667 = vpop.f32.mrf.mxu0
        %v668 = vadd.f32 0.0, %v667
        %v669 = vpop.f32.mrf.mxu0
        %670 = vmatprep.mubr.f32.mxu0 0.0
        %671 = vmatmul.mubr.f32.gmra.mxu0 %v456
        %v672 = vpop.f32.mrf.mxu0
        %v673 = vadd.f32 0.0, %v672
        %v674 = vpop.f32.mrf.mxu0
        %675 = vmatprep.mubr.f32.mxu0 0.0
        %676 = vmatmul.mubr.f32.gmra.mxu0 %v461
        %v677 = vpop.f32.mrf.mxu0
        %v678 = vadd.f32 0.0, %v677
        %v679 = vpop.f32.mrf.mxu0
        %680 = vmatprep.mubr.f32.mxu0 0.0
        %681 = vmatmul.mubr.f32.gmra.mxu0 %v464
        %v682 = vpop.f32.mrf.mxu0
        %v683 = vadd.f32 0.0, %v682
        %v684 = vpop.f32.mrf.mxu0
        %685 = vmatprep.mubr.f32.mxu0 0.0
        %686 = vmatmul.mubr.f32.gmra.mxu0 %v469
        %v687 = vpop.f32.mrf.mxu0
        %v688 = vadd.f32 0.0, %v687
        %v689 = vpop.f32.mrf.mxu0
        %690 = vmatprep.mubr.f32.mxu0 0.0
        %691 = vmatmul.mubr.f32.gmra.mxu0 %v472
        %v692 = vpop.f32.mrf.mxu0
        %v693 = vadd.f32 0.0, %v692
        %v694 = vpop.f32.mrf.mxu0
        %695 = vmatprep.mubr.f32.mxu0 0.0
        %696 = vmatmul.mubr.f32.gmra.mxu0 %v477
        %v697 = vpop.f32.mrf.mxu0
        %v698 = vadd.f32 0.0, %v697
        %v699 = vpop.f32.mrf.mxu0
        %700 = vmatprep.mubr.f32.mxu0 0.0
        %701 = vmatmul.mubr.f32.gmra.mxu0 %v480
        %v702 = vpop.f32.mrf.mxu0
        %v703 = vadd.f32 0.0, %v702
        %v704 = vpop.f32.mrf.mxu0
        %705 = vmatprep.mubr.f32.mxu0 0.0
        %706 = vmatmul.mubr.f32.gmra.mxu0 %v485
        %v707 = vpop.f32.mrf.mxu0
        %v708 = vadd.f32 0.0, %v707
        %v709 = vpop.f32.mrf.mxu0
        %710 = vmatprep.mubr.f32.mxu0 0.0
        %711 = vmatmul.mubr.f32.gmra.mxu0 %v488
        %v712 = vpop.f32.mrf.mxu0
        %v713 = vadd.f32 0.0, %v712
        %v714 = vpop.f32.mrf.mxu0
        %715 = vdwg.mxu0
        %v716 = vmul.f32 %v200, %v200
        %v717 = vmul.f32 %v201, %v201
        %v718 = vmul.f32 %v202, %v202
        %v719 = vmul.f32 %v203, %v203
        %v720 = vmul.f32 %v204, %v204
        %v721 = vmul.f32 %v205, %v205
        %v722 = vmul.f32 %v206, %v206
        %v723 = vmul.f32 %v207, %v207
        %v724 = vmul.f32 %v208, %v208
        %v725 = vmul.f32 %v209, %v209
        %v726 = vmul.f32 %v210, %v210
        %v727 = vmul.f32 %v211, %v211
        %v728 = vmul.f32 %v212, %v212
        %v729 = vmul.f32 %v213, %v213
        %v730 = vmul.f32 %v214, %v214
        %v731 = vmul.f32 %v215, %v215
        %v732 = vmul.f32 %v216, %v216
        %v733 = vmul.f32 %v217, %v217
        %v734 = vmul.f32 %v218, %v218
        %v735 = vmul.f32 %v219, %v219
        %v736 = vmul.f32 %v220, %v220
        %v737 = vmul.f32 %v221, %v221
        %v738 = vmul.f32 %v222, %v222
        %v739 = vmul.f32 %v223, %v223
        %v740 = vmul.f32 %v224, %v224
        %v741 = vmul.f32 %v225, %v225
        %v742 = vmul.f32 %v226, %v226
        %v743 = vmul.f32 %v227, %v227
        %v744 = vmul.f32 %v228, %v228
        %v745 = vmul.f32 %v229, %v229
        %v746 = vmul.f32 %v230, %v230
        %v747 = vmul.f32 %v231, %v231
        %v748 = vsel %vm281, %v716, 0.0
        %749 = vadd.xlane.f32.xlu0 %v748
        %v750 = vpop.xlane.xlu0 %749
        %v751 = vsel %vm281, %v717, 0.0
        %752 = vadd.xlane.f32.xlu0 %v751
        %v753 = vpop.xlane.xlu0 %752
        %v754 = vsel %vm281, %v718, 0.0
        %755 = vadd.xlane.f32.xlu0 %v754
        %v756 = vpop.xlane.xlu0 %755
        %v757 = vsel %vm281, %v719, 0.0
        %758 = vadd.xlane.f32.xlu0 %v757
        %v759 = vpop.xlane.xlu0 %758
        %v760 = vsel %vm281, %v720, 0.0
        %761 = vadd.xlane.f32.xlu0 %v760
        %v762 = vpop.xlane.xlu0 %761
        %v763 = vsel %vm281, %v721, 0.0
        %764 = vadd.xlane.f32.xlu0 %v763
        %v765 = vpop.xlane.xlu0 %764
        %v766 = vsel %vm281, %v722, 0.0
        %767 = vadd.xlane.f32.xlu0 %v766
        %v768 = vpop.xlane.xlu0 %767
        %v769 = vsel %vm281, %v723, 0.0
        %770 = vadd.xlane.f32.xlu0 %v769
        %v771 = vpop.xlane.xlu0 %770
        %v772 = vsel %vm281, %v724, 0.0
        %773 = vadd.xlane.f32.xlu0 %v772
        %v774 = vpop.xlane.xlu0 %773
        %v775 = vsel %vm281, %v725, 0.0
        %776 = vadd.xlane.f32.xlu0 %v775
        %v777 = vpop.xlane.xlu0 %776
        %v778 = vsel %vm281, %v726, 0.0
        %779 = vadd.xlane.f32.xlu0 %v778
        %v780 = vpop.xlane.xlu0 %779
        %v781 = vsel %vm281, %v727, 0.0
        %782 = vadd.xlane.f32.xlu0 %v781
        %v783 = vpop.xlane.xlu0 %782
        %v784 = vsel %vm281, %v728, 0.0
        %785 = vadd.xlane.f32.xlu0 %v784
        %v786 = vpop.xlane.xlu0 %785
        %v787 = vsel %vm281, %v729, 0.0
        %788 = vadd.xlane.f32.xlu0 %v787
        %v789 = vpop.xlane.xlu0 %788
        %v790 = vsel %vm281, %v730, 0.0
        %791 = vadd.xlane.f32.xlu0 %v790
        %v792 = vpop.xlane.xlu0 %791
        %v793 = vsel %vm281, %v731, 0.0
        %794 = vadd.xlane.f32.xlu0 %v793
        %v795 = vpop.xlane.xlu0 %794
        %v796 = vsel %vm281, %v732, 0.0
        %797 = vadd.xlane.f32.xlu0 %v796
        %v798 = vpop.xlane.xlu0 %797
        %v799 = vsel %vm281, %v733, 0.0
        %800 = vadd.xlane.f32.xlu0 %v799
        %v801 = vpop.xlane.xlu0 %800
        %v802 = vsel %vm281, %v734, 0.0
        %803 = vadd.xlane.f32.xlu0 %v802
        %v804 = vpop.xlane.xlu0 %803
        %v805 = vsel %vm281, %v735, 0.0
        %806 = vadd.xlane.f32.xlu0 %v805
        %v807 = vpop.xlane.xlu0 %806
        %v808 = vsel %vm281, %v736, 0.0
        %809 = vadd.xlane.f32.xlu0 %v808
        %v810 = vpop.xlane.xlu0 %809
        %v811 = vsel %vm281, %v737, 0.0
        %812 = vadd.xlane.f32.xlu0 %v811
        %v813 = vpop.xlane.xlu0 %812
        %v814 = vsel %vm281, %v738, 0.0
        %815 = vadd.xlane.f32.xlu0 %v814
        %v816 = vpop.xlane.xlu0 %815
        %v817 = vsel %vm281, %v739, 0.0
        %818 = vadd.xlane.f32.xlu0 %v817
        %v819 = vpop.xlane.xlu0 %818
        %v820 = vsel %vm281, %v740, 0.0
        %821 = vadd.xlane.f32.xlu0 %v820
        %v822 = vpop.xlane.xlu0 %821
        %v823 = vsel %vm281, %v741, 0.0
        %824 = vadd.xlane.f32.xlu0 %v823
        %v825 = vpop.xlane.xlu0 %824
        %v826 = vsel %vm281, %v742, 0.0
        %827 = vadd.xlane.f32.xlu0 %v826
        %v828 = vpop.xlane.xlu0 %827
        %v829 = vsel %vm281, %v743, 0.0
        %830 = vadd.xlane.f32.xlu0 %v829
        %v831 = vpop.xlane.xlu0 %830
        %v832 = vsel %vm281, %v744, 0.0
        %833 = vadd.xlane.f32.xlu0 %v832
        %v834 = vpop.xlane.xlu0 %833
        %v835 = vsel %vm281, %v745, 0.0
        %836 = vadd.xlane.f32.xlu0 %v835
        %v837 = vpop.xlane.xlu0 %836
        %v838 = vsel %vm281, %v746, 0.0
        %839 = vadd.xlane.f32.xlu0 %v838
        %v840 = vpop.xlane.xlu0 %839
        %v841 = vsel %vm281, %v747, 0.0
        %842 = vadd.xlane.f32.xlu0 %v841
        %v843 = vpop.xlane.xlu0 %842
        %v844 = vmul.f32 %v365, %v365
        %v845 = vmul.f32 %v368, %v368
        %v846 = vmul.f32 %v373, %v373
        %v847 = vmul.f32 %v376, %v376
        %v848 = vmul.f32 %v381, %v381
        %v849 = vmul.f32 %v384, %v384
        %v850 = vmul.f32 %v389, %v389
        %v851 = vmul.f32 %v392, %v392
        %v852 = vmul.f32 %v397, %v397
        %v853 = vmul.f32 %v400, %v400
        %v854 = vmul.f32 %v405, %v405
        %v855 = vmul.f32 %v408, %v408
        %v856 = vmul.f32 %v413, %v413
        %v857 = vmul.f32 %v416, %v416
        %v858 = vmul.f32 %v421, %v421
        %v859 = vmul.f32 %v424, %v424
        %v860 = vmul.f32 %v429, %v429
        %v861 = vmul.f32 %v432, %v432
        %v862 = vmul.f32 %v437, %v437
        %v863 = vmul.f32 %v440, %v440
        %v864 = vmul.f32 %v445, %v445
        %v865 = vmul.f32 %v448, %v448
        %v866 = vmul.f32 %v453, %v453
        %v867 = vmul.f32 %v456, %v456
        %v868 = vmul.f32 %v461, %v461
        %v869 = vmul.f32 %v464, %v464
        %v870 = vmul.f32 %v469, %v469
        %v871 = vmul.f32 %v472, %v472
        %v872 = vmul.f32 %v477, %v477
        %v873 = vmul.f32 %v480, %v480
        %v874 = vmul.f32 %v485, %v485
        %v875 = vmul.f32 %v488, %v488
        %876 = vadd.xlane.f32.xlu0 %v844
        %v877 = vpop.xlane.xlu0 %876
        %878 = vadd.xlane.f32.xlu0 %v845
        %v879 = vpop.xlane.xlu0 %878
        %880 = vadd.xlane.f32.xlu0 %v846
        %v881 = vpop.xlane.xlu0 %880
        %882 = vadd.xlane.f32.xlu0 %v847
        %v883 = vpop.xlane.xlu0 %882
        %884 = vadd.xlane.f32.xlu0 %v848
        %v885 = vpop.xlane.xlu0 %884
        %886 = vadd.xlane.f32.xlu0 %v849
        %v887 = vpop.xlane.xlu0 %886
        %888 = vadd.xlane.f32.xlu0 %v850
        %v889 = vpop.xlane.xlu0 %888
        %890 = vadd.xlane.f32.xlu0 %v851
        %v891 = vpop.xlane.xlu0 %890
        %892 = vadd.xlane.f32.xlu0 %v852
        %v893 = vpop.xlane.xlu0 %892
        %894 = vadd.xlane.f32.xlu0 %v853
        %v895 = vpop.xlane.xlu0 %894
        %896 = vadd.xlane.f32.xlu0 %v854
        %v897 = vpop.xlane.xlu0 %896
        %898 = vadd.xlane.f32.xlu0 %v855
        %v899 = vpop.xlane.xlu0 %898
        %900 = vadd.xlane.f32.xlu0 %v856
        %v901 = vpop.xlane.xlu0 %900
        %902 = vadd.xlane.f32.xlu0 %v857
        %v903 = vpop.xlane.xlu0 %902
        %904 = vadd.xlane.f32.xlu0 %v858
        %v905 = vpop.xlane.xlu0 %904
        %906 = vadd.xlane.f32.xlu0 %v859
        %v907 = vpop.xlane.xlu0 %906
        %908 = vadd.xlane.f32.xlu0 %v860
        %v909 = vpop.xlane.xlu0 %908
        %910 = vadd.xlane.f32.xlu0 %v861
        %v911 = vpop.xlane.xlu0 %910
        %912 = vadd.xlane.f32.xlu0 %v862
        %v913 = vpop.xlane.xlu0 %912
        %914 = vadd.xlane.f32.xlu0 %v863
        %v915 = vpop.xlane.xlu0 %914
        %916 = vadd.xlane.f32.xlu0 %v864
        %v917 = vpop.xlane.xlu0 %916
        %918 = vadd.xlane.f32.xlu0 %v865
        %v919 = vpop.xlane.xlu0 %918
        %920 = vadd.xlane.f32.xlu0 %v866
        %v921 = vpop.xlane.xlu0 %920
        %922 = vadd.xlane.f32.xlu0 %v867
        %v923 = vpop.xlane.xlu0 %922
        %924 = vadd.xlane.f32.xlu0 %v868
        %v925 = vpop.xlane.xlu0 %924
        %926 = vadd.xlane.f32.xlu0 %v869
        %v927 = vpop.xlane.xlu0 %926
        %928 = vadd.xlane.f32.xlu0 %v870
        %v929 = vpop.xlane.xlu0 %928
        %930 = vadd.xlane.f32.xlu0 %v871
        %v931 = vpop.xlane.xlu0 %930
        %932 = vadd.xlane.f32.xlu0 %v872
        %v933 = vpop.xlane.xlu0 %932
        %934 = vadd.xlane.f32.xlu0 %v873
        %v935 = vpop.xlane.xlu0 %934
        %936 = vadd.xlane.f32.xlu0 %v874
        %v937 = vpop.xlane.xlu0 %936
        %938 = vadd.xlane.f32.xlu0 %v875
        %v939 = vpop.xlane.xlu0 %938
        %v940 = vmul.f32 %v236, %v236
        %vm941 = vcmask 1040384
        %v942 = vsel %vm941, %v940, 0.0
        %943 = vadd.xlane.f32.xlu0 %v942
        %v944 = vpop.xlane.xlu0 %943
        %vm945 = vcmp.eq.f32.partialorder %v877, 0.0
        %vm946 = vcmp.eq.f32.partialorder %v879, 0.0
        %vm947 = vcmp.eq.f32.partialorder %v881, 0.0
        %vm948 = vcmp.eq.f32.partialorder %v883, 0.0
        %vm949 = vcmp.eq.f32.partialorder %v885, 0.0
        %vm950 = vcmp.eq.f32.partialorder %v887, 0.0
        %vm951 = vcmp.eq.f32.partialorder %v889, 0.0
        %vm952 = vcmp.eq.f32.partialorder %v891, 0.0
        %vm953 = vcmp.eq.f32.partialorder %v893, 0.0
        %vm954 = vcmp.eq.f32.partialorder %v895, 0.0
        %vm955 = vcmp.eq.f32.partialorder %v897, 0.0
        %vm956 = vcmp.eq.f32.partialorder %v899, 0.0
        %vm957 = vcmp.eq.f32.partialorder %v901, 0.0
        %vm958 = vcmp.eq.f32.partialorder %v903, 0.0
        %vm959 = vcmp.eq.f32.partialorder %v905, 0.0
        %vm960 = vcmp.eq.f32.partialorder %v907, 0.0
        %vm961 = vcmp.eq.f32.partialorder %v909, 0.0
        %vm962 = vcmp.eq.f32.partialorder %v911, 0.0
        %vm963 = vcmp.eq.f32.partialorder %v913, 0.0
        %vm964 = vcmp.eq.f32.partialorder %v915, 0.0
        %vm965 = vcmp.eq.f32.partialorder %v917, 0.0
        %vm966 = vcmp.eq.f32.partialorder %v919, 0.0
        %vm967 = vcmp.eq.f32.partialorder %v921, 0.0
        %vm968 = vcmp.eq.f32.partialorder %v923, 0.0
        %vm969 = vcmp.eq.f32.partialorder %v925, 0.0
        %vm970 = vcmp.eq.f32.partialorder %v927, 0.0
        %vm971 = vcmp.eq.f32.partialorder %v929, 0.0
        %vm972 = vcmp.eq.f32.partialorder %v931, 0.0
        %vm973 = vcmp.eq.f32.partialorder %v933, 0.0
        %vm974 = vcmp.eq.f32.partialorder %v935, 0.0
        %vm975 = vcmp.eq.f32.partialorder %v937, 0.0
        %vm976 = vcmp.eq.f32.partialorder %v939, 0.0
        %v977 = vmax.f32 %v750, 1e-30
        %v978 = vmax.f32 %v753, 1e-30
        %v979 = vmax.f32 %v756, 1e-30
        %v980 = vmax.f32 %v759, 1e-30
        %v981 = vmax.f32 %v762, 1e-30
        %v982 = vmax.f32 %v765, 1e-30
        %v983 = vmax.f32 %v768, 1e-30
        %v984 = vmax.f32 %v771, 1e-30
        %v985 = vmax.f32 %v774, 1e-30
        %v986 = vmax.f32 %v777, 1e-30
        %v987 = vmax.f32 %v780, 1e-30
        %v988 = vmax.f32 %v783, 1e-30
        %v989 = vmax.f32 %v786, 1e-30
        %v990 = vmax.f32 %v789, 1e-30
        %v991 = vmax.f32 %v792, 1e-30
        %v992 = vmax.f32 %v795, 1e-30
        %v993 = vmax.f32 %v798, 1e-30
        %v994 = vmax.f32 %v801, 1e-30
        %v995 = vmax.f32 %v804, 1e-30
        %v996 = vmax.f32 %v807, 1e-30
        %v997 = vmax.f32 %v810, 1e-30
        %v998 = vmax.f32 %v813, 1e-30
        %v999 = vmax.f32 %v816, 1e-30
        %v1000 = vmax.f32 %v819, 1e-30
        %v1001 = vmax.f32 %v822, 1e-30
        %v1002 = vmax.f32 %v825, 1e-30
        %v1003 = vmax.f32 %v828, 1e-30
        %v1004 = vmax.f32 %v831, 1e-30
        %v1005 = vmax.f32 %v834, 1e-30
        %v1006 = vmax.f32 %v837, 1e-30
        %v1007 = vmax.f32 %v840, 1e-30
        %v1008 = vmax.f32 %v843, 1e-30
        %v1009 = vmax.f32 %v877, 1e-30
        %v1010 = vmax.f32 %v879, 1e-30
        %v1011 = vmax.f32 %v881, 1e-30
        %v1012 = vmax.f32 %v883, 1e-30
        %v1013 = vmax.f32 %v885, 1e-30
        %v1014 = vmax.f32 %v887, 1e-30
        %v1015 = vmax.f32 %v889, 1e-30
        %v1016 = vmax.f32 %v891, 1e-30
        %v1017 = vmax.f32 %v893, 1e-30
        %v1018 = vmax.f32 %v895, 1e-30
        %v1019 = vmax.f32 %v897, 1e-30
        %v1020 = vmax.f32 %v899, 1e-30
        %v1021 = vmax.f32 %v901, 1e-30
        %v1022 = vmax.f32 %v903, 1e-30
        %v1023 = vmax.f32 %v905, 1e-30
        %v1024 = vmax.f32 %v907, 1e-30
        %v1025 = vmax.f32 %v909, 1e-30
        %v1026 = vmax.f32 %v911, 1e-30
        %v1027 = vmax.f32 %v913, 1e-30
        %v1028 = vmax.f32 %v915, 1e-30
        %v1029 = vmax.f32 %v917, 1e-30
        %v1030 = vmax.f32 %v919, 1e-30
        %v1031 = vmax.f32 %v921, 1e-30
        %v1032 = vmax.f32 %v923, 1e-30
        %v1033 = vmax.f32 %v925, 1e-30
        %v1034 = vmax.f32 %v927, 1e-30
        %v1035 = vmax.f32 %v929, 1e-30
        %v1036 = vmax.f32 %v931, 1e-30
        %v1037 = vmax.f32 %v933, 1e-30
        %v1038 = vmax.f32 %v935, 1e-30
        %v1039 = vmax.f32 %v937, 1e-30
        %v1040 = vmax.f32 %v939, 1e-30
        %v1041 = vrsqrt.pop %v977
        %v1042 = vmul.f32 %v977, %v1041
        %vm1043 = vcmp.eq.f32.partialorder %v977, inf
        %v1044 = vsel %vm1043, %v977, %v1042
        %vm1045 = vcmp.eq.f32.partialorder %v977, 0.0
        %v1046 = vand.u32 %v977, 2147483648
        %v1047 = vsel %vm1045, %v1046, %v1044
        %v1048 = vrsqrt.pop %v978
        %v1049 = vmul.f32 %v978, %v1048
        %vm1050 = vcmp.eq.f32.partialorder %v978, inf
        %v1051 = vsel %vm1050, %v978, %v1049
        %vm1052 = vcmp.eq.f32.partialorder %v978, 0.0
        %v1053 = vand.u32 %v978, 2147483648
        %v1054 = vsel %vm1052, %v1053, %v1051
        %v1055 = vrsqrt.pop %v979
        %v1056 = vmul.f32 %v979, %v1055
        %vm1057 = vcmp.eq.f32.partialorder %v979, inf
        %v1058 = vsel %vm1057, %v979, %v1056
        %vm1059 = vcmp.eq.f32.partialorder %v979, 0.0
        %v1060 = vand.u32 %v979, 2147483648
        %v1061 = vsel %vm1059, %v1060, %v1058
        %v1062 = vrsqrt.pop %v980
        %v1063 = vmul.f32 %v980, %v1062
        %vm1064 = vcmp.eq.f32.partialorder %v980, inf
        %v1065 = vsel %vm1064, %v980, %v1063
        %vm1066 = vcmp.eq.f32.partialorder %v980, 0.0
        %v1067 = vand.u32 %v980, 2147483648
        %v1068 = vsel %vm1066, %v1067, %v1065
        %v1069 = vrsqrt.pop %v981
        %v1070 = vmul.f32 %v981, %v1069
        %vm1071 = vcmp.eq.f32.partialorder %v981, inf
        %v1072 = vsel %vm1071, %v981, %v1070
        %vm1073 = vcmp.eq.f32.partialorder %v981, 0.0
        %v1074 = vand.u32 %v981, 2147483648
        %v1075 = vsel %vm1073, %v1074, %v1072
        %v1076 = vrsqrt.pop %v982
        %v1077 = vmul.f32 %v982, %v1076
        %vm1078 = vcmp.eq.f32.partialorder %v982, inf
        %v1079 = vsel %vm1078, %v982, %v1077
        %vm1080 = vcmp.eq.f32.partialorder %v982, 0.0
        %v1081 = vand.u32 %v982, 2147483648
        %v1082 = vsel %vm1080, %v1081, %v1079
        %v1083 = vrsqrt.pop %v983
        %v1084 = vmul.f32 %v983, %v1083
        %vm1085 = vcmp.eq.f32.partialorder %v983, inf
        %v1086 = vsel %vm1085, %v983, %v1084
        %vm1087 = vcmp.eq.f32.partialorder %v983, 0.0
        %v1088 = vand.u32 %v983, 2147483648
        %v1089 = vsel %vm1087, %v1088, %v1086
        %v1090 = vrsqrt.pop %v984
        %v1091 = vmul.f32 %v984, %v1090
        %vm1092 = vcmp.eq.f32.partialorder %v984, inf
        %v1093 = vsel %vm1092, %v984, %v1091
        %vm1094 = vcmp.eq.f32.partialorder %v984, 0.0
        %v1095 = vand.u32 %v984, 2147483648
        %v1096 = vsel %vm1094, %v1095, %v1093
        %v1097 = vrsqrt.pop %v985
        %v1098 = vmul.f32 %v985, %v1097
        %vm1099 = vcmp.eq.f32.partialorder %v985, inf
        %v1100 = vsel %vm1099, %v985, %v1098
        %vm1101 = vcmp.eq.f32.partialorder %v985, 0.0
        %v1102 = vand.u32 %v985, 2147483648
        %v1103 = vsel %vm1101, %v1102, %v1100
        %v1104 = vrsqrt.pop %v986
        %v1105 = vmul.f32 %v986, %v1104
        %vm1106 = vcmp.eq.f32.partialorder %v986, inf
        %v1107 = vsel %vm1106, %v986, %v1105
        %vm1108 = vcmp.eq.f32.partialorder %v986, 0.0
        %v1109 = vand.u32 %v986, 2147483648
        %v1110 = vsel %vm1108, %v1109, %v1107
        %v1111 = vrsqrt.pop %v987
        %v1112 = vmul.f32 %v987, %v1111
        %vm1113 = vcmp.eq.f32.partialorder %v987, inf
        %v1114 = vsel %vm1113, %v987, %v1112
        %vm1115 = vcmp.eq.f32.partialorder %v987, 0.0
        %v1116 = vand.u32 %v987, 2147483648
        %v1117 = vsel %vm1115, %v1116, %v1114
        %v1118 = vrsqrt.pop %v988
        %v1119 = vmul.f32 %v988, %v1118
        %vm1120 = vcmp.eq.f32.partialorder %v988, inf
        %v1121 = vsel %vm1120, %v988, %v1119
        %vm1122 = vcmp.eq.f32.partialorder %v988, 0.0
        %v1123 = vand.u32 %v988, 2147483648
        %v1124 = vsel %vm1122, %v1123, %v1121
        %v1125 = vrsqrt.pop %v989
        %v1126 = vmul.f32 %v989, %v1125
        %vm1127 = vcmp.eq.f32.partialorder %v989, inf
        %v1128 = vsel %vm1127, %v989, %v1126
        %vm1129 = vcmp.eq.f32.partialorder %v989, 0.0
        %v1130 = vand.u32 %v989, 2147483648
        %v1131 = vsel %vm1129, %v1130, %v1128
        %v1132 = vrsqrt.pop %v990
        %v1133 = vmul.f32 %v990, %v1132
        %vm1134 = vcmp.eq.f32.partialorder %v990, inf
        %v1135 = vsel %vm1134, %v990, %v1133
        %vm1136 = vcmp.eq.f32.partialorder %v990, 0.0
        %v1137 = vand.u32 %v990, 2147483648
        %v1138 = vsel %vm1136, %v1137, %v1135
        %v1139 = vrsqrt.pop %v991
        %v1140 = vmul.f32 %v991, %v1139
        %vm1141 = vcmp.eq.f32.partialorder %v991, inf
        %v1142 = vsel %vm1141, %v991, %v1140
        %vm1143 = vcmp.eq.f32.partialorder %v991, 0.0
        %v1144 = vand.u32 %v991, 2147483648
        %v1145 = vsel %vm1143, %v1144, %v1142
        %v1146 = vrsqrt.pop %v992
        %v1147 = vmul.f32 %v992, %v1146
        %vm1148 = vcmp.eq.f32.partialorder %v992, inf
        %v1149 = vsel %vm1148, %v992, %v1147
        %vm1150 = vcmp.eq.f32.partialorder %v992, 0.0
        %v1151 = vand.u32 %v992, 2147483648
        %v1152 = vsel %vm1150, %v1151, %v1149
        %v1153 = vrsqrt.pop %v993
        %v1154 = vmul.f32 %v993, %v1153
        %vm1155 = vcmp.eq.f32.partialorder %v993, inf
        %v1156 = vsel %vm1155, %v993, %v1154
        %vm1157 = vcmp.eq.f32.partialorder %v993, 0.0
        %v1158 = vand.u32 %v993, 2147483648
        %v1159 = vsel %vm1157, %v1158, %v1156
        %v1160 = vrsqrt.pop %v994
        %v1161 = vmul.f32 %v994, %v1160
        %vm1162 = vcmp.eq.f32.partialorder %v994, inf
        %v1163 = vsel %vm1162, %v994, %v1161
        %vm1164 = vcmp.eq.f32.partialorder %v994, 0.0
        %v1165 = vand.u32 %v994, 2147483648
        %v1166 = vsel %vm1164, %v1165, %v1163
        %v1167 = vrsqrt.pop %v995
        %v1168 = vmul.f32 %v995, %v1167
        %vm1169 = vcmp.eq.f32.partialorder %v995, inf
        %v1170 = vsel %vm1169, %v995, %v1168
        %vm1171 = vcmp.eq.f32.partialorder %v995, 0.0
        %v1172 = vand.u32 %v995, 2147483648
        %v1173 = vsel %vm1171, %v1172, %v1170
        %v1174 = vrsqrt.pop %v996
        %v1175 = vmul.f32 %v996, %v1174
        %vm1176 = vcmp.eq.f32.partialorder %v996, inf
        %v1177 = vsel %vm1176, %v996, %v1175
        %vm1178 = vcmp.eq.f32.partialorder %v996, 0.0
        %v1179 = vand.u32 %v996, 2147483648
        %v1180 = vsel %vm1178, %v1179, %v1177
        %v1181 = vrsqrt.pop %v997
        %v1182 = vmul.f32 %v997, %v1181
        %vm1183 = vcmp.eq.f32.partialorder %v997, inf
        %v1184 = vsel %vm1183, %v997, %v1182
        %vm1185 = vcmp.eq.f32.partialorder %v997, 0.0
        %v1186 = vand.u32 %v997, 2147483648
        %v1187 = vsel %vm1185, %v1186, %v1184
        %v1188 = vrsqrt.pop %v998
        %v1189 = vmul.f32 %v998, %v1188
        %vm1190 = vcmp.eq.f32.partialorder %v998, inf
        %v1191 = vsel %vm1190, %v998, %v1189
        %vm1192 = vcmp.eq.f32.partialorder %v998, 0.0
        %v1193 = vand.u32 %v998, 2147483648
        %v1194 = vsel %vm1192, %v1193, %v1191
        %v1195 = vrsqrt.pop %v999
        %v1196 = vmul.f32 %v999, %v1195
        %vm1197 = vcmp.eq.f32.partialorder %v999, inf
        %v1198 = vsel %vm1197, %v999, %v1196
        %vm1199 = vcmp.eq.f32.partialorder %v999, 0.0
        %v1200 = vand.u32 %v999, 2147483648
        %v1201 = vsel %vm1199, %v1200, %v1198
        %v1202 = vrsqrt.pop %v1000
        %v1203 = vmul.f32 %v1000, %v1202
        %vm1204 = vcmp.eq.f32.partialorder %v1000, inf
        %v1205 = vsel %vm1204, %v1000, %v1203
        %vm1206 = vcmp.eq.f32.partialorder %v1000, 0.0
        %v1207 = vand.u32 %v1000, 2147483648
        %v1208 = vsel %vm1206, %v1207, %v1205
        %v1209 = vrsqrt.pop %v1001
        %v1210 = vmul.f32 %v1001, %v1209
        %vm1211 = vcmp.eq.f32.partialorder %v1001, inf
        %v1212 = vsel %vm1211, %v1001, %v1210
        %vm1213 = vcmp.eq.f32.partialorder %v1001, 0.0
        %v1214 = vand.u32 %v1001, 2147483648
        %v1215 = vsel %vm1213, %v1214, %v1212
        %v1216 = vrsqrt.pop %v1002
        %v1217 = vmul.f32 %v1002, %v1216
        %vm1218 = vcmp.eq.f32.partialorder %v1002, inf
        %v1219 = vsel %vm1218, %v1002, %v1217
        %vm1220 = vcmp.eq.f32.partialorder %v1002, 0.0
        %v1221 = vand.u32 %v1002, 2147483648
        %v1222 = vsel %vm1220, %v1221, %v1219
        %v1223 = vrsqrt.pop %v1003
        %v1224 = vmul.f32 %v1003, %v1223
        %vm1225 = vcmp.eq.f32.partialorder %v1003, inf
        %v1226 = vsel %vm1225, %v1003, %v1224
        %vm1227 = vcmp.eq.f32.partialorder %v1003, 0.0
        %v1228 = vand.u32 %v1003, 2147483648
        %v1229 = vsel %vm1227, %v1228, %v1226
        %v1230 = vrsqrt.pop %v1004
        %v1231 = vmul.f32 %v1004, %v1230
        %vm1232 = vcmp.eq.f32.partialorder %v1004, inf
        %v1233 = vsel %vm1232, %v1004, %v1231
        %vm1234 = vcmp.eq.f32.partialorder %v1004, 0.0
        %v1235 = vand.u32 %v1004, 2147483648
        %v1236 = vsel %vm1234, %v1235, %v1233
        %v1237 = vrsqrt.pop %v1005
        %v1238 = vmul.f32 %v1005, %v1237
        %vm1239 = vcmp.eq.f32.partialorder %v1005, inf
        %v1240 = vsel %vm1239, %v1005, %v1238
        %vm1241 = vcmp.eq.f32.partialorder %v1005, 0.0
        %v1242 = vand.u32 %v1005, 2147483648
        %v1243 = vsel %vm1241, %v1242, %v1240
        %v1244 = vrsqrt.pop %v1006
        %v1245 = vmul.f32 %v1006, %v1244
        %vm1246 = vcmp.eq.f32.partialorder %v1006, inf
        %v1247 = vsel %vm1246, %v1006, %v1245
        %vm1248 = vcmp.eq.f32.partialorder %v1006, 0.0
        %v1249 = vand.u32 %v1006, 2147483648
        %v1250 = vsel %vm1248, %v1249, %v1247
        %v1251 = vrsqrt.pop %v1007
        %v1252 = vmul.f32 %v1007, %v1251
        %vm1253 = vcmp.eq.f32.partialorder %v1007, inf
        %v1254 = vsel %vm1253, %v1007, %v1252
        %vm1255 = vcmp.eq.f32.partialorder %v1007, 0.0
        %v1256 = vand.u32 %v1007, 2147483648
        %v1257 = vsel %vm1255, %v1256, %v1254
        %v1258 = vrsqrt.pop %v1008
        %v1259 = vmul.f32 %v1008, %v1258
        %vm1260 = vcmp.eq.f32.partialorder %v1008, inf
        %v1261 = vsel %vm1260, %v1008, %v1259
        %vm1262 = vcmp.eq.f32.partialorder %v1008, 0.0
        %v1263 = vand.u32 %v1008, 2147483648
        %v1264 = vsel %vm1262, %v1263, %v1261
        %v1265 = vrsqrt.pop %v977
        %v1266 = vrsqrt.pop %v978
        %v1267 = vrsqrt.pop %v979
        %v1268 = vrsqrt.pop %v980
        %v1269 = vrsqrt.pop %v981
        %v1270 = vrsqrt.pop %v982
        %v1271 = vrsqrt.pop %v983
        %v1272 = vrsqrt.pop %v984
        %v1273 = vrsqrt.pop %v985
        %v1274 = vrsqrt.pop %v986
        %v1275 = vrsqrt.pop %v987
        %v1276 = vrsqrt.pop %v988
        %v1277 = vrsqrt.pop %v989
        %v1278 = vrsqrt.pop %v990
        %v1279 = vrsqrt.pop %v991
        %v1280 = vrsqrt.pop %v992
        %v1281 = vrsqrt.pop %v993
        %v1282 = vrsqrt.pop %v994
        %v1283 = vrsqrt.pop %v995
        %v1284 = vrsqrt.pop %v996
        %v1285 = vrsqrt.pop %v997
        %v1286 = vrsqrt.pop %v998
        %v1287 = vrsqrt.pop %v999
        %v1288 = vrsqrt.pop %v1000
        %v1289 = vrsqrt.pop %v1001
        %v1290 = vrsqrt.pop %v1002
        %v1291 = vrsqrt.pop %v1003
        %v1292 = vrsqrt.pop %v1004
        %v1293 = vrsqrt.pop %v1005
        %v1294 = vrsqrt.pop %v1006
        %v1295 = vrsqrt.pop %v1007
        %v1296 = vrsqrt.pop %v1008
        %v1297 = vrsqrt.pop %v1009
        %v1298 = vrsqrt.pop %v1010
        %v1299 = vrsqrt.pop %v1011
        %v1300 = vrsqrt.pop %v1012
        %v1301 = vrsqrt.pop %v1013
        %v1302 = vrsqrt.pop %v1014
        %v1303 = vrsqrt.pop %v1015
        %v1304 = vrsqrt.pop %v1016
        %v1305 = vrsqrt.pop %v1017
        %v1306 = vrsqrt.pop %v1018
        %v1307 = vrsqrt.pop %v1019
        %v1308 = vrsqrt.pop %v1020
        %v1309 = vrsqrt.pop %v1021
        %v1310 = vrsqrt.pop %v1022
        %v1311 = vrsqrt.pop %v1023
        %v1312 = vrsqrt.pop %v1024
        %v1313 = vrsqrt.pop %v1025
        %v1314 = vrsqrt.pop %v1026
        %v1315 = vrsqrt.pop %v1027
        %v1316 = vrsqrt.pop %v1028
        %v1317 = vrsqrt.pop %v1029
        %v1318 = vrsqrt.pop %v1030
        %v1319 = vrsqrt.pop %v1031
        %v1320 = vrsqrt.pop %v1032
        %v1321 = vrsqrt.pop %v1033
        %v1322 = vrsqrt.pop %v1034
        %v1323 = vrsqrt.pop %v1035
        %v1324 = vrsqrt.pop %v1036
        %v1325 = vrsqrt.pop %v1037
        %v1326 = vrsqrt.pop %v1038
        %v1327 = vrsqrt.pop %v1039
        %v1328 = vrsqrt.pop %v1040
        %v1329 = vmul.f32 %v1009, %v1297
        %v1330 = vmul.f32 %v1010, %v1298
        %v1331 = vmul.f32 %v1011, %v1299
        %v1332 = vmul.f32 %v1012, %v1300
        %v1333 = vmul.f32 %v1013, %v1301
        %v1334 = vmul.f32 %v1014, %v1302
        %v1335 = vmul.f32 %v1015, %v1303
        %v1336 = vmul.f32 %v1016, %v1304
        %v1337 = vmul.f32 %v1017, %v1305
        %v1338 = vmul.f32 %v1018, %v1306
        %v1339 = vmul.f32 %v1019, %v1307
        %v1340 = vmul.f32 %v1020, %v1308
        %v1341 = vmul.f32 %v1021, %v1309
        %v1342 = vmul.f32 %v1022, %v1310
        %v1343 = vmul.f32 %v1023, %v1311
        %v1344 = vmul.f32 %v1024, %v1312
        %v1345 = vmul.f32 %v1025, %v1313
        %v1346 = vmul.f32 %v1026, %v1314
        %v1347 = vmul.f32 %v1027, %v1315
        %v1348 = vmul.f32 %v1028, %v1316
        %v1349 = vmul.f32 %v1029, %v1317
        %v1350 = vmul.f32 %v1030, %v1318
        %v1351 = vmul.f32 %v1031, %v1319
        %v1352 = vmul.f32 %v1032, %v1320
        %v1353 = vmul.f32 %v1033, %v1321
        %v1354 = vmul.f32 %v1034, %v1322
        %v1355 = vmul.f32 %v1035, %v1323
        %v1356 = vmul.f32 %v1036, %v1324
        %v1357 = vmul.f32 %v1037, %v1325
        %v1358 = vmul.f32 %v1038, %v1326
        %v1359 = vmul.f32 %v1039, %v1327
        %v1360 = vmul.f32 %v1040, %v1328
        %v1361 = vmax.f32 %v1047, -0.99999
        %v1362 = vmax.f32 %v1054, -0.99999
        %v1363 = vmax.f32 %v1061, -0.99999
        %v1364 = vmax.f32 %v1068, -0.99999
        %v1365 = vmax.f32 %v1075, -0.99999
        %v1366 = vmax.f32 %v1082, -0.99999
        %v1367 = vmax.f32 %v1089, -0.99999
        %v1368 = vmax.f32 %v1096, -0.99999
        %v1369 = vmax.f32 %v1103, -0.99999
        %v1370 = vmax.f32 %v1110, -0.99999
        %v1371 = vmax.f32 %v1117, -0.99999
        %v1372 = vmax.f32 %v1124, -0.99999
        %v1373 = vmax.f32 %v1131, -0.99999
        %v1374 = vmax.f32 %v1138, -0.99999
        %v1375 = vmax.f32 %v1145, -0.99999
        %v1376 = vmax.f32 %v1152, -0.99999
        %v1377 = vmax.f32 %v1159, -0.99999
        %v1378 = vmax.f32 %v1166, -0.99999
        %v1379 = vmax.f32 %v1173, -0.99999
        %v1380 = vmax.f32 %v1180, -0.99999
        %v1381 = vmax.f32 %v1187, -0.99999
        %v1382 = vmax.f32 %v1194, -0.99999
        %v1383 = vmax.f32 %v1201, -0.99999
        %v1384 = vmax.f32 %v1208, -0.99999
        %v1385 = vmax.f32 %v1215, -0.99999
        %v1386 = vmax.f32 %v1222, -0.99999
        %v1387 = vmax.f32 %v1229, -0.99999
        %v1388 = vmax.f32 %v1236, -0.99999
        %v1389 = vmax.f32 %v1243, -0.99999
        %v1390 = vmax.f32 %v1250, -0.99999
        %v1391 = vmax.f32 %v1257, -0.99999
        %v1392 = vmax.f32 %v1264, -0.99999
        %v1393 = vmin.f32 %v1361, 0.99999
        %v1394 = vmin.f32 %v1362, 0.99999
        %v1395 = vmin.f32 %v1363, 0.99999
        %v1396 = vmin.f32 %v1364, 0.99999
        %v1397 = vmin.f32 %v1365, 0.99999
        %v1398 = vmin.f32 %v1366, 0.99999
        %v1399 = vmin.f32 %v1367, 0.99999
        %v1400 = vmin.f32 %v1368, 0.99999
        %v1401 = vmin.f32 %v1369, 0.99999
        %v1402 = vmin.f32 %v1370, 0.99999
        %v1403 = vmin.f32 %v1371, 0.99999
        %v1404 = vmin.f32 %v1372, 0.99999
        %v1405 = vmin.f32 %v1373, 0.99999
        %v1406 = vmin.f32 %v1374, 0.99999
        %v1407 = vmin.f32 %v1375, 0.99999
        %v1408 = vmin.f32 %v1376, 0.99999
        %v1409 = vmin.f32 %v1377, 0.99999
        %v1410 = vmin.f32 %v1378, 0.99999
        %v1411 = vmin.f32 %v1379, 0.99999
        %v1412 = vmin.f32 %v1380, 0.99999
        %v1413 = vmin.f32 %v1381, 0.99999
        %v1414 = vmin.f32 %v1382, 0.99999
        %v1415 = vmin.f32 %v1383, 0.99999
        %v1416 = vmin.f32 %v1384, 0.99999
        %v1417 = vmin.f32 %v1385, 0.99999
        %v1418 = vmin.f32 %v1386, 0.99999
        %v1419 = vmin.f32 %v1387, 0.99999
        %v1420 = vmin.f32 %v1388, 0.99999
        %v1421 = vmin.f32 %v1389, 0.99999
        %v1422 = vmin.f32 %v1390, 0.99999
        %v1423 = vmin.f32 %v1391, 0.99999
        %v1424 = vmin.f32 %v1392, 0.99999
        %v1425 = vadd.f32 %v1393, 1.0
        %v1426 = vadd.f32 %v1394, 1.0
        %v1427 = vadd.f32 %v1395, 1.0
        %v1428 = vadd.f32 %v1396, 1.0
        %v1429 = vadd.f32 %v1397, 1.0
        %v1430 = vadd.f32 %v1398, 1.0
        %v1431 = vadd.f32 %v1399, 1.0
        %v1432 = vadd.f32 %v1400, 1.0
        %v1433 = vadd.f32 %v1401, 1.0
        %v1434 = vadd.f32 %v1402, 1.0
        %v1435 = vadd.f32 %v1403, 1.0
        %v1436 = vadd.f32 %v1404, 1.0
        %v1437 = vadd.f32 %v1405, 1.0
        %v1438 = vadd.f32 %v1406, 1.0
        %v1439 = vadd.f32 %v1407, 1.0
        %v1440 = vadd.f32 %v1408, 1.0
        %v1441 = vadd.f32 %v1409, 1.0
        %v1442 = vadd.f32 %v1410, 1.0
        %v1443 = vadd.f32 %v1411, 1.0
        %v1444 = vadd.f32 %v1412, 1.0
        %v1445 = vadd.f32 %v1413, 1.0
        %v1446 = vadd.f32 %v1414, 1.0
        %v1447 = vadd.f32 %v1415, 1.0
        %v1448 = vadd.f32 %v1416, 1.0
        %v1449 = vadd.f32 %v1417, 1.0
        %v1450 = vadd.f32 %v1418, 1.0
        %v1451 = vadd.f32 %v1419, 1.0
        %v1452 = vadd.f32 %v1420, 1.0
        %v1453 = vadd.f32 %v1421, 1.0
        %v1454 = vadd.f32 %v1422, 1.0
        %v1455 = vadd.f32 %v1423, 1.0
        %v1456 = vadd.f32 %v1424, 1.0
        %v1457 = vsub.f32 1.0, %v1393
        %v1458 = vsub.f32 1.0, %v1394
        %v1459 = vsub.f32 1.0, %v1395
        %v1460 = vsub.f32 1.0, %v1396
        %v1461 = vsub.f32 1.0, %v1397
        %v1462 = vsub.f32 1.0, %v1398
        %v1463 = vsub.f32 1.0, %v1399
        %v1464 = vsub.f32 1.0, %v1400
        %v1465 = vsub.f32 1.0, %v1401
        %v1466 = vsub.f32 1.0, %v1402
        %v1467 = vsub.f32 1.0, %v1403
        %v1468 = vsub.f32 1.0, %v1404
        %v1469 = vsub.f32 1.0, %v1405
        %v1470 = vsub.f32 1.0, %v1406
        %v1471 = vsub.f32 1.0, %v1407
        %v1472 = vsub.f32 1.0, %v1408
        %v1473 = vsub.f32 1.0, %v1409
        %v1474 = vsub.f32 1.0, %v1410
        %v1475 = vsub.f32 1.0, %v1411
        %v1476 = vsub.f32 1.0, %v1412
        %v1477 = vsub.f32 1.0, %v1413
        %v1478 = vsub.f32 1.0, %v1414
        %v1479 = vsub.f32 1.0, %v1415
        %v1480 = vsub.f32 1.0, %v1416
        %v1481 = vsub.f32 1.0, %v1417
        %v1482 = vsub.f32 1.0, %v1418
        %v1483 = vsub.f32 1.0, %v1419
        %v1484 = vsub.f32 1.0, %v1420
        %v1485 = vsub.f32 1.0, %v1421
        %v1486 = vsub.f32 1.0, %v1422
        %v1487 = vsub.f32 1.0, %v1423
        %v1488 = vsub.f32 1.0, %v1424
        %v1489 = vrcp.pop %v1457
        %v1490 = vmul.f32 %v1425, %v1489
        %v1491 = vrcp.pop %v1458
        %v1492 = vmul.f32 %v1426, %v1491
        %v1493 = vrcp.pop %v1459
        %v1494 = vmul.f32 %v1427, %v1493
        %v1495 = vrcp.pop %v1460
        %v1496 = vmul.f32 %v1428, %v1495
        %v1497 = vrcp.pop %v1461
        %v1498 = vmul.f32 %v1429, %v1497
        %v1499 = vrcp.pop %v1462
        %v1500 = vmul.f32 %v1430, %v1499
        %v1501 = vrcp.pop %v1463
        %v1502 = vmul.f32 %v1431, %v1501
        %v1503 = vrcp.pop %v1464
        %v1504 = vmul.f32 %v1432, %v1503
        %v1505 = vrcp.pop %v1465
        %v1506 = vmul.f32 %v1433, %v1505
        %v1507 = vrcp.pop %v1466
        %v1508 = vmul.f32 %v1434, %v1507
        %v1509 = vrcp.pop %v1467
        %v1510 = vmul.f32 %v1435, %v1509
        %v1511 = vrcp.pop %v1468
        %v1512 = vmul.f32 %v1436, %v1511
        %v1513 = vrcp.pop %v1469
        %v1514 = vmul.f32 %v1437, %v1513
        %v1515 = vrcp.pop %v1470
        %v1516 = vmul.f32 %v1438, %v1515
        %v1517 = vrcp.pop %v1471
        %v1518 = vmul.f32 %v1439, %v1517
        %v1519 = vrcp.pop %v1472
        %v1520 = vmul.f32 %v1440, %v1519
        %v1521 = vrcp.pop %v1473
        %v1522 = vmul.f32 %v1441, %v1521
        %v1523 = vrcp.pop %v1474
        %v1524 = vmul.f32 %v1442, %v1523
        %v1525 = vrcp.pop %v1475
        %v1526 = vmul.f32 %v1443, %v1525
        %v1527 = vrcp.pop %v1476
        %v1528 = vmul.f32 %v1444, %v1527
        %v1529 = vrcp.pop %v1477
        %v1530 = vmul.f32 %v1445, %v1529
        %v1531 = vrcp.pop %v1478
        %v1532 = vmul.f32 %v1446, %v1531
        %v1533 = vrcp.pop %v1479
        %v1534 = vmul.f32 %v1447, %v1533
        %v1535 = vrcp.pop %v1480
        %v1536 = vmul.f32 %v1448, %v1535
        %v1537 = vrcp.pop %v1481
        %v1538 = vmul.f32 %v1449, %v1537
        %v1539 = vrcp.pop %v1482
        %v1540 = vmul.f32 %v1450, %v1539
        %v1541 = vrcp.pop %v1483
        %v1542 = vmul.f32 %v1451, %v1541
        %v1543 = vrcp.pop %v1484
        %v1544 = vmul.f32 %v1452, %v1543
        %v1545 = vrcp.pop %v1485
        %v1546 = vmul.f32 %v1453, %v1545
        %v1547 = vrcp.pop %v1486
        %v1548 = vmul.f32 %v1454, %v1547
        %v1549 = vrcp.pop %v1487
        %v1550 = vmul.f32 %v1455, %v1549
        %v1551 = vrcp.pop %v1488
        %v1552 = vmul.f32 %v1456, %v1551
        %v1553 = vlog2.pop %v1490
        %v1554 = vmul.f32 %v1553, 0.6931472
        %v1555 = vlog2.pop %v1492
        %v1556 = vmul.f32 %v1555, 0.6931472
        %v1557 = vlog2.pop %v1494
        %v1558 = vmul.f32 %v1557, 0.6931472
        %v1559 = vlog2.pop %v1496
        %v1560 = vmul.f32 %v1559, 0.6931472
        %v1561 = vlog2.pop %v1498
        %v1562 = vmul.f32 %v1561, 0.6931472
        %v1563 = vlog2.pop %v1500
        %v1564 = vmul.f32 %v1563, 0.6931472
        %v1565 = vlog2.pop %v1502
        %v1566 = vmul.f32 %v1565, 0.6931472
        %v1567 = vlog2.pop %v1504
        %v1568 = vmul.f32 %v1567, 0.6931472
        %v1569 = vlog2.pop %v1506
        %v1570 = vmul.f32 %v1569, 0.6931472
        %v1571 = vlog2.pop %v1508
        %v1572 = vmul.f32 %v1571, 0.6931472
        %v1573 = vlog2.pop %v1510
        %v1574 = vmul.f32 %v1573, 0.6931472
        %v1575 = vlog2.pop %v1512
        %v1576 = vmul.f32 %v1575, 0.6931472
        %v1577 = vlog2.pop %v1514
        %v1578 = vmul.f32 %v1577, 0.6931472
        %v1579 = vlog2.pop %v1516
        %v1580 = vmul.f32 %v1579, 0.6931472
        %v1581 = vlog2.pop %v1518
        %v1582 = vmul.f32 %v1581, 0.6931472
        %v1583 = vlog2.pop %v1520
        %v1584 = vmul.f32 %v1583, 0.6931472
        %v1585 = vlog2.pop %v1522
        %v1586 = vmul.f32 %v1585, 0.6931472
        %v1587 = vlog2.pop %v1524
        %v1588 = vmul.f32 %v1587, 0.6931472
        %v1589 = vlog2.pop %v1526
        %v1590 = vmul.f32 %v1589, 0.6931472
        %v1591 = vlog2.pop %v1528
        %v1592 = vmul.f32 %v1591, 0.6931472
        %v1593 = vlog2.pop %v1530
        %v1594 = vmul.f32 %v1593, 0.6931472
        %v1595 = vlog2.pop %v1532
        %v1596 = vmul.f32 %v1595, 0.6931472
        %v1597 = vlog2.pop %v1534
        %v1598 = vmul.f32 %v1597, 0.6931472
        %v1599 = vlog2.pop %v1536
        %v1600 = vmul.f32 %v1599, 0.6931472
        %v1601 = vlog2.pop %v1538
        %v1602 = vmul.f32 %v1601, 0.6931472
        %v1603 = vlog2.pop %v1540
        %v1604 = vmul.f32 %v1603, 0.6931472
        %v1605 = vlog2.pop %v1542
        %v1606 = vmul.f32 %v1605, 0.6931472
        %v1607 = vlog2.pop %v1544
        %v1608 = vmul.f32 %v1607, 0.6931472
        %v1609 = vlog2.pop %v1546
        %v1610 = vmul.f32 %v1609, 0.6931472
        %v1611 = vlog2.pop %v1548
        %v1612 = vmul.f32 %v1611, 0.6931472
        %v1613 = vlog2.pop %v1550
        %v1614 = vmul.f32 %v1613, 0.6931472
        %v1615 = vlog2.pop %v1552
        %v1616 = vmul.f32 %v1615, 0.6931472
        %v1617 = vmul.f32 %v1554, 0.5
        %v1618 = vmul.f32 %v1556, 0.5
        %v1619 = vmul.f32 %v1558, 0.5
        %v1620 = vmul.f32 %v1560, 0.5
        %v1621 = vmul.f32 %v1562, 0.5
        %v1622 = vmul.f32 %v1564, 0.5
        %v1623 = vmul.f32 %v1566, 0.5
        %v1624 = vmul.f32 %v1568, 0.5
        %v1625 = vmul.f32 %v1570, 0.5
        %v1626 = vmul.f32 %v1572, 0.5
        %v1627 = vmul.f32 %v1574, 0.5
        %v1628 = vmul.f32 %v1576, 0.5
        %v1629 = vmul.f32 %v1578, 0.5
        %v1630 = vmul.f32 %v1580, 0.5
        %v1631 = vmul.f32 %v1582, 0.5
        %v1632 = vmul.f32 %v1584, 0.5
        %v1633 = vmul.f32 %v1586, 0.5
        %v1634 = vmul.f32 %v1588, 0.5
        %v1635 = vmul.f32 %v1590, 0.5
        %v1636 = vmul.f32 %v1592, 0.5
        %v1637 = vmul.f32 %v1594, 0.5
        %v1638 = vmul.f32 %v1596, 0.5
        %v1639 = vmul.f32 %v1598, 0.5
        %v1640 = vmul.f32 %v1600, 0.5
        %v1641 = vmul.f32 %v1602, 0.5
        %v1642 = vmul.f32 %v1604, 0.5
        %v1643 = vmul.f32 %v1606, 0.5
        %v1644 = vmul.f32 %v1608, 0.5
        %v1645 = vmul.f32 %v1610, 0.5
        %v1646 = vmul.f32 %v1612, 0.5
        %v1647 = vmul.f32 %v1614, 0.5
        %v1648 = vmul.f32 %v1616, 0.5
        %v1649 = vmul.f32 %v1329, %v1265
        %v1650 = vmul.f32 %v1330, %v1266
        %v1651 = vmul.f32 %v1331, %v1267
        %v1652 = vmul.f32 %v1332, %v1268
        %v1653 = vmul.f32 %v1333, %v1269
        %v1654 = vmul.f32 %v1334, %v1270
        %v1655 = vmul.f32 %v1335, %v1271
        %v1656 = vmul.f32 %v1336, %v1272
        %v1657 = vmul.f32 %v1337, %v1273
        %v1658 = vmul.f32 %v1338, %v1274
        %v1659 = vmul.f32 %v1339, %v1275
        %v1660 = vmul.f32 %v1340, %v1276
        %v1661 = vmul.f32 %v1341, %v1277
        %v1662 = vmul.f32 %v1342, %v1278
        %v1663 = vmul.f32 %v1343, %v1279
        %v1664 = vmul.f32 %v1344, %v1280
        %v1665 = vmul.f32 %v1345, %v1281
        %v1666 = vmul.f32 %v1346, %v1282
        %v1667 = vmul.f32 %v1347, %v1283
        %v1668 = vmul.f32 %v1348, %v1284
        %v1669 = vmul.f32 %v1349, %v1285
        %v1670 = vmul.f32 %v1350, %v1286
        %v1671 = vmul.f32 %v1351, %v1287
        %v1672 = vmul.f32 %v1352, %v1288
        %v1673 = vmul.f32 %v1353, %v1289
        %v1674 = vmul.f32 %v1354, %v1290
        %v1675 = vmul.f32 %v1355, %v1291
        %v1676 = vmul.f32 %v1356, %v1292
        %v1677 = vmul.f32 %v1357, %v1293
        %v1678 = vmul.f32 %v1358, %v1294
        %v1679 = vmul.f32 %v1359, %v1295
        %v1680 = vmul.f32 %v1360, %v1296
        %v1681 = vmul.f32 %v1649, %v1617
        %v1682 = vmul.f32 %v1650, %v1618
        %v1683 = vmul.f32 %v1651, %v1619
        %v1684 = vmul.f32 %v1652, %v1620
        %v1685 = vmul.f32 %v1653, %v1621
        %v1686 = vmul.f32 %v1654, %v1622
        %v1687 = vmul.f32 %v1655, %v1623
        %v1688 = vmul.f32 %v1656, %v1624
        %v1689 = vmul.f32 %v1657, %v1625
        %v1690 = vmul.f32 %v1658, %v1626
        %v1691 = vmul.f32 %v1659, %v1627
        %v1692 = vmul.f32 %v1660, %v1628
        %v1693 = vmul.f32 %v1661, %v1629
        %v1694 = vmul.f32 %v1662, %v1630
        %v1695 = vmul.f32 %v1663, %v1631
        %v1696 = vmul.f32 %v1664, %v1632
        %v1697 = vmul.f32 %v1665, %v1633
        %v1698 = vmul.f32 %v1666, %v1634
        %v1699 = vmul.f32 %v1667, %v1635
        %v1700 = vmul.f32 %v1668, %v1636
        %v1701 = vmul.f32 %v1669, %v1637
        %v1702 = vmul.f32 %v1670, %v1638
        %v1703 = vmul.f32 %v1671, %v1639
        %v1704 = vmul.f32 %v1672, %v1640
        %v1705 = vmul.f32 %v1673, %v1641
        %v1706 = vmul.f32 %v1674, %v1642
        %v1707 = vmul.f32 %v1675, %v1643
        %v1708 = vmul.f32 %v1676, %v1644
        %v1709 = vmul.f32 %v1677, %v1645
        %v1710 = vmul.f32 %v1678, %v1646
        %v1711 = vmul.f32 %v1679, %v1647
        %v1712 = vmul.f32 %v1680, %v1648
        %v1713 = vtanh.pop %v1681
        %v1714 = vtanh.pop %v1682
        %v1715 = vtanh.pop %v1683
        %v1716 = vtanh.pop %v1684
        %v1717 = vtanh.pop %v1685
        %v1718 = vtanh.pop %v1686
        %v1719 = vtanh.pop %v1687
        %v1720 = vtanh.pop %v1688
        %v1721 = vtanh.pop %v1689
        %v1722 = vtanh.pop %v1690
        %v1723 = vtanh.pop %v1691
        %v1724 = vtanh.pop %v1692
        %v1725 = vtanh.pop %v1693
        %v1726 = vtanh.pop %v1694
        %v1727 = vtanh.pop %v1695
        %v1728 = vtanh.pop %v1696
        %v1729 = vtanh.pop %v1697
        %v1730 = vtanh.pop %v1698
        %v1731 = vtanh.pop %v1699
        %v1732 = vtanh.pop %v1700
        %v1733 = vtanh.pop %v1701
        %v1734 = vtanh.pop %v1702
        %v1735 = vtanh.pop %v1703
        %v1736 = vtanh.pop %v1704
        %v1737 = vtanh.pop %v1705
        %v1738 = vtanh.pop %v1706
        %v1739 = vtanh.pop %v1707
        %v1740 = vtanh.pop %v1708
        %v1741 = vtanh.pop %v1709
        %v1742 = vtanh.pop %v1710
        %v1743 = vtanh.pop %v1711
        %v1744 = vtanh.pop %v1712
        %v1745 = vmul.f32 %v1713, %v1297
        %v1746 = vmul.f32 %v1714, %v1298
        %v1747 = vmul.f32 %v1715, %v1299
        %v1748 = vmul.f32 %v1716, %v1300
        %v1749 = vmul.f32 %v1717, %v1301
        %v1750 = vmul.f32 %v1718, %v1302
        %v1751 = vmul.f32 %v1719, %v1303
        %v1752 = vmul.f32 %v1720, %v1304
        %v1753 = vmul.f32 %v1721, %v1305
        %v1754 = vmul.f32 %v1722, %v1306
        %v1755 = vmul.f32 %v1723, %v1307
        %v1756 = vmul.f32 %v1724, %v1308
        %v1757 = vmul.f32 %v1725, %v1309
        %v1758 = vmul.f32 %v1726, %v1310
        %v1759 = vmul.f32 %v1727, %v1311
        %v1760 = vmul.f32 %v1728, %v1312
        %v1761 = vmul.f32 %v1729, %v1313
        %v1762 = vmul.f32 %v1730, %v1314
        %v1763 = vmul.f32 %v1731, %v1315
        %v1764 = vmul.f32 %v1732, %v1316
        %v1765 = vmul.f32 %v1733, %v1317
        %v1766 = vmul.f32 %v1734, %v1318
        %v1767 = vmul.f32 %v1735, %v1319
        %v1768 = vmul.f32 %v1736, %v1320
        %v1769 = vmul.f32 %v1737, %v1321
        %v1770 = vmul.f32 %v1738, %v1322
        %v1771 = vmul.f32 %v1739, %v1323
        %v1772 = vmul.f32 %v1740, %v1324
        %v1773 = vmul.f32 %v1741, %v1325
        %v1774 = vmul.f32 %v1742, %v1326
        %v1775 = vmul.f32 %v1743, %v1327
        %v1776 = vmul.f32 %v1744, %v1328
        %v1777 = vsel %vm945, 0.0, %v1745
        %v1778 = vsel %vm946, 0.0, %v1746
        %v1779 = vsel %vm947, 0.0, %v1747
        %v1780 = vsel %vm948, 0.0, %v1748
        %v1781 = vsel %vm949, 0.0, %v1749
        %v1782 = vsel %vm950, 0.0, %v1750
        %v1783 = vsel %vm951, 0.0, %v1751
        %v1784 = vsel %vm952, 0.0, %v1752
        %v1785 = vsel %vm953, 0.0, %v1753
        %v1786 = vsel %vm954, 0.0, %v1754
        %v1787 = vsel %vm955, 0.0, %v1755
        %v1788 = vsel %vm956, 0.0, %v1756
        %v1789 = vsel %vm957, 0.0, %v1757
        %v1790 = vsel %vm958, 0.0, %v1758
        %v1791 = vsel %vm959, 0.0, %v1759
        %v1792 = vsel %vm960, 0.0, %v1760
        %v1793 = vsel %vm961, 0.0, %v1761
        %v1794 = vsel %vm962, 0.0, %v1762
        %v1795 = vsel %vm963, 0.0, %v1763
        %v1796 = vsel %vm964, 0.0, %v1764
        %v1797 = vsel %vm965, 0.0, %v1765
        %v1798 = vsel %vm966, 0.0, %v1766
        %v1799 = vsel %vm967, 0.0, %v1767
        %v1800 = vsel %vm968, 0.0, %v1768
        %v1801 = vsel %vm969, 0.0, %v1769
        %v1802 = vsel %vm970, 0.0, %v1770
        %v1803 = vsel %vm971, 0.0, %v1771
        %v1804 = vsel %vm972, 0.0, %v1772
        %v1805 = vsel %vm973, 0.0, %v1773
        %v1806 = vsel %vm974, 0.0, %v1774
        %v1807 = vsel %vm975, 0.0, %v1775
        %v1808 = vsel %vm976, 0.0, %v1776
        %v1809 = vmul.f32 %v1713, %v1713
        %v1810 = vmul.f32 %v1714, %v1714
        %v1811 = vmul.f32 %v1715, %v1715
        %v1812 = vmul.f32 %v1716, %v1716
        %v1813 = vmul.f32 %v1717, %v1717
        %v1814 = vmul.f32 %v1718, %v1718
        %v1815 = vmul.f32 %v1719, %v1719
        %v1816 = vmul.f32 %v1720, %v1720
        %v1817 = vmul.f32 %v1721, %v1721
        %v1818 = vmul.f32 %v1722, %v1722
        %v1819 = vmul.f32 %v1723, %v1723
        %v1820 = vmul.f32 %v1724, %v1724
        %v1821 = vmul.f32 %v1725, %v1725
        %v1822 = vmul.f32 %v1726, %v1726
        %v1823 = vmul.f32 %v1727, %v1727
        %v1824 = vmul.f32 %v1728, %v1728
        %v1825 = vmul.f32 %v1729, %v1729
        %v1826 = vmul.f32 %v1730, %v1730
        %v1827 = vmul.f32 %v1731, %v1731
        %v1828 = vmul.f32 %v1732, %v1732
        %v1829 = vmul.f32 %v1733, %v1733
        %v1830 = vmul.f32 %v1734, %v1734
        %v1831 = vmul.f32 %v1735, %v1735
        %v1832 = vmul.f32 %v1736, %v1736
        %v1833 = vmul.f32 %v1737, %v1737
        %v1834 = vmul.f32 %v1738, %v1738
        %v1835 = vmul.f32 %v1739, %v1739
        %v1836 = vmul.f32 %v1740, %v1740
        %v1837 = vmul.f32 %v1741, %v1741
        %v1838 = vmul.f32 %v1742, %v1742
        %v1839 = vmul.f32 %v1743, %v1743
        %v1840 = vmul.f32 %v1744, %v1744
        %v1841 = vsel %vm945, 0.0, %v1809
        %v1842 = vsel %vm946, 0.0, %v1810
        %v1843 = vsel %vm947, 0.0, %v1811
        %v1844 = vsel %vm948, 0.0, %v1812
        %v1845 = vsel %vm949, 0.0, %v1813
        %v1846 = vsel %vm950, 0.0, %v1814
        %v1847 = vsel %vm951, 0.0, %v1815
        %v1848 = vsel %vm952, 0.0, %v1816
        %v1849 = vsel %vm953, 0.0, %v1817
        %v1850 = vsel %vm954, 0.0, %v1818
        %v1851 = vsel %vm955, 0.0, %v1819
        %v1852 = vsel %vm956, 0.0, %v1820
        %v1853 = vsel %vm957, 0.0, %v1821
        %v1854 = vsel %vm958, 0.0, %v1822
        %v1855 = vsel %vm959, 0.0, %v1823
        %v1856 = vsel %vm960, 0.0, %v1824
        %v1857 = vsel %vm961, 0.0, %v1825
        %v1858 = vsel %vm962, 0.0, %v1826
        %v1859 = vsel %vm963, 0.0, %v1827
        %v1860 = vsel %vm964, 0.0, %v1828
        %v1861 = vsel %vm965, 0.0, %v1829
        %v1862 = vsel %vm966, 0.0, %v1830
        %v1863 = vsel %vm967, 0.0, %v1831
        %v1864 = vsel %vm968, 0.0, %v1832
        %v1865 = vsel %vm969, 0.0, %v1833
        %v1866 = vsel %vm970, 0.0, %v1834
        %v1867 = vsel %vm971, 0.0, %v1835
        %v1868 = vsel %vm972, 0.0, %v1836
        %v1869 = vsel %vm973, 0.0, %v1837
        %v1870 = vsel %vm974, 0.0, %v1838
        %v1871 = vsel %vm975, 0.0, %v1839
        %v1872 = vsel %vm976, 0.0, %v1840
        %v1873 = vmul.f32 %v1777, %v558
        %v1874 = vmul.f32 %v1778, %v563
        %v1875 = vmul.f32 %v1779, %v568
        %v1876 = vmul.f32 %v1780, %v573
        %v1877 = vmul.f32 %v1781, %v578
        %v1878 = vmul.f32 %v1782, %v583
        %v1879 = vmul.f32 %v1783, %v588
        %v1880 = vmul.f32 %v1784, %v593
        %v1881 = vmul.f32 %v1785, %v598
        %v1882 = vmul.f32 %v1786, %v603
        %v1883 = vmul.f32 %v1787, %v608
        %v1884 = vmul.f32 %v1788, %v613
        %v1885 = vmul.f32 %v1789, %v618
        %v1886 = vmul.f32 %v1790, %v623
        %v1887 = vmul.f32 %v1791, %v628
        %v1888 = vmul.f32 %v1792, %v633
        %v1889 = vmul.f32 %v1793, %v638
        %v1890 = vmul.f32 %v1794, %v643
        %v1891 = vmul.f32 %v1795, %v648
        %v1892 = vmul.f32 %v1796, %v653
        %v1893 = vmul.f32 %v1797, %v658
        %v1894 = vmul.f32 %v1798, %v663
        %v1895 = vmul.f32 %v1799, %v668
        %v1896 = vmul.f32 %v1800, %v673
        %v1897 = vmul.f32 %v1801, %v678
        %v1898 = vmul.f32 %v1802, %v683
        %v1899 = vmul.f32 %v1803, %v688
        %v1900 = vmul.f32 %v1804, %v693
        %v1901 = vmul.f32 %v1805, %v698
        %v1902 = vmul.f32 %v1806, %v703
        %v1903 = vmul.f32 %v1807, %v708
        %v1904 = vmul.f32 %v1808, %v713
        %v1905 = vmul.f32 %v1873, 2.0
        %v1906 = vmul.f32 %v1874, 2.0
        %v1907 = vmul.f32 %v1875, 2.0
        %v1908 = vmul.f32 %v1876, 2.0
        %v1909 = vmul.f32 %v1877, 2.0
        %v1910 = vmul.f32 %v1878, 2.0
        %v1911 = vmul.f32 %v1879, 2.0
        %v1912 = vmul.f32 %v1880, 2.0
        %v1913 = vmul.f32 %v1881, 2.0
        %v1914 = vmul.f32 %v1882, 2.0
        %v1915 = vmul.f32 %v1883, 2.0
        %v1916 = vmul.f32 %v1884, 2.0
        %v1917 = vmul.f32 %v1885, 2.0
        %v1918 = vmul.f32 %v1886, 2.0
        %v1919 = vmul.f32 %v1887, 2.0
        %v1920 = vmul.f32 %v1888, 2.0
        %v1921 = vmul.f32 %v1889, 2.0
        %v1922 = vmul.f32 %v1890, 2.0
        %v1923 = vmul.f32 %v1891, 2.0
        %v1924 = vmul.f32 %v1892, 2.0
        %v1925 = vmul.f32 %v1893, 2.0
        %v1926 = vmul.f32 %v1894, 2.0
        %v1927 = vmul.f32 %v1895, 2.0
        %v1928 = vmul.f32 %v1896, 2.0
        %v1929 = vmul.f32 %v1897, 2.0
        %v1930 = vmul.f32 %v1898, 2.0
        %v1931 = vmul.f32 %v1899, 2.0
        %v1932 = vmul.f32 %v1900, 2.0
        %v1933 = vmul.f32 %v1901, 2.0
        %v1934 = vmul.f32 %v1902, 2.0
        %v1935 = vmul.f32 %v1903, 2.0
        %v1936 = vmul.f32 %v1904, 2.0
        %v1937 = vadd.f32 %v1905, 1.0
        %v1938 = vadd.f32 %v1906, 1.0
        %v1939 = vadd.f32 %v1907, 1.0
        %v1940 = vadd.f32 %v1908, 1.0
        %v1941 = vadd.f32 %v1909, 1.0
        %v1942 = vadd.f32 %v1910, 1.0
        %v1943 = vadd.f32 %v1911, 1.0
        %v1944 = vadd.f32 %v1912, 1.0
        %v1945 = vadd.f32 %v1913, 1.0
        %v1946 = vadd.f32 %v1914, 1.0
        %v1947 = vadd.f32 %v1915, 1.0
        %v1948 = vadd.f32 %v1916, 1.0
        %v1949 = vadd.f32 %v1917, 1.0
        %v1950 = vadd.f32 %v1918, 1.0
        %v1951 = vadd.f32 %v1919, 1.0
        %v1952 = vadd.f32 %v1920, 1.0
        %v1953 = vadd.f32 %v1921, 1.0
        %v1954 = vadd.f32 %v1922, 1.0
        %v1955 = vadd.f32 %v1923, 1.0
        %v1956 = vadd.f32 %v1924, 1.0
        %v1957 = vadd.f32 %v1925, 1.0
        %v1958 = vadd.f32 %v1926, 1.0
        %v1959 = vadd.f32 %v1927, 1.0
        %v1960 = vadd.f32 %v1928, 1.0
        %v1961 = vadd.f32 %v1929, 1.0
        %v1962 = vadd.f32 %v1930, 1.0
        %v1963 = vadd.f32 %v1931, 1.0
        %v1964 = vadd.f32 %v1932, 1.0
        %v1965 = vadd.f32 %v1933, 1.0
        %v1966 = vadd.f32 %v1934, 1.0
        %v1967 = vadd.f32 %v1935, 1.0
        %v1968 = vadd.f32 %v1936, 1.0
        %v1969 = vlaneseq
        %v1970 = vshrl.u32 %v1969, 7
        %v1971 = vsub.s32 0, %v1970
        %v1972 = vrot.slane %v944, %v1971
        %v1973 = vadd.f32 %v1937, %v1972
        %v1974 = vadd.f32 %v1938, %v1972
        %v1975 = vadd.f32 %v1939, %v1972
        %v1976 = vadd.f32 %v1940, %v1972
        %v1977 = vadd.f32 %v1941, %v1972
        %v1978 = vadd.f32 %v1942, %v1972
        %v1979 = vadd.f32 %v1943, %v1972
        %v1980 = vadd.f32 %v1944, %v1972
        %v1981 = vadd.f32 %v1945, %v1972
        %v1982 = vadd.f32 %v1946, %v1972
        %v1983 = vadd.f32 %v1947, %v1972
        %v1984 = vadd.f32 %v1948, %v1972
        %v1985 = vadd.f32 %v1949, %v1972
        %v1986 = vadd.f32 %v1950, %v1972
        %v1987 = vadd.f32 %v1951, %v1972
        %v1988 = vadd.f32 %v1952, %v1972
        %v1989 = vadd.f32 %v1953, %v1972
        %v1990 = vadd.f32 %v1954, %v1972
        %v1991 = vadd.f32 %v1955, %v1972
        %v1992 = vadd.f32 %v1956, %v1972
        %v1993 = vadd.f32 %v1957, %v1972
        %v1994 = vadd.f32 %v1958, %v1972
        %v1995 = vadd.f32 %v1959, %v1972
        %v1996 = vadd.f32 %v1960, %v1972
        %v1997 = vadd.f32 %v1961, %v1972
        %v1998 = vadd.f32 %v1962, %v1972
        %v1999 = vadd.f32 %v1963, %v1972
        %v2000 = vadd.f32 %v1964, %v1972
        %v2001 = vadd.f32 %v1965, %v1972
        %v2002 = vadd.f32 %v1966, %v1972
        %v2003 = vadd.f32 %v1967, %v1972
        %v2004 = vadd.f32 %v1968, %v1972
        %v2005 = vsub.f32 1.0, %v1841
        %v2006 = vsub.f32 1.0, %v1842
        %v2007 = vsub.f32 1.0, %v1843
        %v2008 = vsub.f32 1.0, %v1844
        %v2009 = vsub.f32 1.0, %v1845
        %v2010 = vsub.f32 1.0, %v1846
        %v2011 = vsub.f32 1.0, %v1847
        %v2012 = vsub.f32 1.0, %v1848
        %v2013 = vsub.f32 1.0, %v1849
        %v2014 = vsub.f32 1.0, %v1850
        %v2015 = vsub.f32 1.0, %v1851
        %v2016 = vsub.f32 1.0, %v1852
        %v2017 = vsub.f32 1.0, %v1853
        %v2018 = vsub.f32 1.0, %v1854
        %v2019 = vsub.f32 1.0, %v1855
        %v2020 = vsub.f32 1.0, %v1856
        %v2021 = vsub.f32 1.0, %v1857
        %v2022 = vsub.f32 1.0, %v1858
        %v2023 = vsub.f32 1.0, %v1859
        %v2024 = vsub.f32 1.0, %v1860
        %v2025 = vsub.f32 1.0, %v1861
        %v2026 = vsub.f32 1.0, %v1862
        %v2027 = vsub.f32 1.0, %v1863
        %v2028 = vsub.f32 1.0, %v1864
        %v2029 = vsub.f32 1.0, %v1865
        %v2030 = vsub.f32 1.0, %v1866
        %v2031 = vsub.f32 1.0, %v1867
        %v2032 = vsub.f32 1.0, %v1868
        %v2033 = vsub.f32 1.0, %v1869
        %v2034 = vsub.f32 1.0, %v1870
        %v2035 = vsub.f32 1.0, %v1871
        %v2036 = vsub.f32 1.0, %v1872
        %v2037 = vmul.f32 %v1841, %v1972
        %v2038 = vmul.f32 %v1842, %v1972
        %v2039 = vmul.f32 %v1843, %v1972
        %v2040 = vmul.f32 %v1844, %v1972
        %v2041 = vmul.f32 %v1845, %v1972
        %v2042 = vmul.f32 %v1846, %v1972
        %v2043 = vmul.f32 %v1847, %v1972
        %v2044 = vmul.f32 %v1848, %v1972
        %v2045 = vmul.f32 %v1849, %v1972
        %v2046 = vmul.f32 %v1850, %v1972
        %v2047 = vmul.f32 %v1851, %v1972
        %v2048 = vmul.f32 %v1852, %v1972
        %v2049 = vmul.f32 %v1853, %v1972
        %v2050 = vmul.f32 %v1854, %v1972
        %v2051 = vmul.f32 %v1855, %v1972
        %v2052 = vmul.f32 %v1856, %v1972
        %v2053 = vmul.f32 %v1857, %v1972
        %v2054 = vmul.f32 %v1858, %v1972
        %v2055 = vmul.f32 %v1859, %v1972
        %v2056 = vmul.f32 %v1860, %v1972
        %v2057 = vmul.f32 %v1861, %v1972
        %v2058 = vmul.f32 %v1862, %v1972
        %v2059 = vmul.f32 %v1863, %v1972
        %v2060 = vmul.f32 %v1864, %v1972
        %v2061 = vmul.f32 %v1865, %v1972
        %v2062 = vmul.f32 %v1866, %v1972
        %v2063 = vmul.f32 %v1867, %v1972
        %v2064 = vmul.f32 %v1868, %v1972
        %v2065 = vmul.f32 %v1869, %v1972
        %v2066 = vmul.f32 %v1870, %v1972
        %v2067 = vmul.f32 %v1871, %v1972
        %v2068 = vmul.f32 %v1872, %v1972
        %v2069 = vadd.f32 %v1937, %v2037
        %v2070 = vadd.f32 %v1938, %v2038
        %v2071 = vadd.f32 %v1939, %v2039
        %v2072 = vadd.f32 %v1940, %v2040
        %v2073 = vadd.f32 %v1941, %v2041
        %v2074 = vadd.f32 %v1942, %v2042
        %v2075 = vadd.f32 %v1943, %v2043
        %v2076 = vadd.f32 %v1944, %v2044
        %v2077 = vadd.f32 %v1945, %v2045
        %v2078 = vadd.f32 %v1946, %v2046
        %v2079 = vadd.f32 %v1947, %v2047
        %v2080 = vadd.f32 %v1948, %v2048
        %v2081 = vadd.f32 %v1949, %v2049
        %v2082 = vadd.f32 %v1950, %v2050
        %v2083 = vadd.f32 %v1951, %v2051
        %v2084 = vadd.f32 %v1952, %v2052
        %v2085 = vadd.f32 %v1953, %v2053
        %v2086 = vadd.f32 %v1954, %v2054
        %v2087 = vadd.f32 %v1955, %v2055
        %v2088 = vadd.f32 %v1956, %v2056
        %v2089 = vadd.f32 %v1957, %v2057
        %v2090 = vadd.f32 %v1958, %v2058
        %v2091 = vadd.f32 %v1959, %v2059
        %v2092 = vadd.f32 %v1960, %v2060
        %v2093 = vadd.f32 %v1961, %v2061
        %v2094 = vadd.f32 %v1962, %v2062
        %v2095 = vadd.f32 %v1963, %v2063
        %v2096 = vadd.f32 %v1964, %v2064
        %v2097 = vadd.f32 %v1965, %v2065
        %v2098 = vadd.f32 %v1966, %v2066
        %v2099 = vadd.f32 %v1967, %v2067
        %v2100 = vadd.f32 %v1968, %v2068
        %v2101 = vmax.f32 %v2069, 1e-15
        %v2102 = vmax.f32 %v2070, 1e-15
        %v2103 = vmax.f32 %v2071, 1e-15
        %v2104 = vmax.f32 %v2072, 1e-15
        %v2105 = vmax.f32 %v2073, 1e-15
        %v2106 = vmax.f32 %v2074, 1e-15
        %v2107 = vmax.f32 %v2075, 1e-15
        %v2108 = vmax.f32 %v2076, 1e-15
        %v2109 = vmax.f32 %v2077, 1e-15
        %v2110 = vmax.f32 %v2078, 1e-15
        %v2111 = vmax.f32 %v2079, 1e-15
        %v2112 = vmax.f32 %v2080, 1e-15
        %v2113 = vmax.f32 %v2081, 1e-15
        %v2114 = vmax.f32 %v2082, 1e-15
        %v2115 = vmax.f32 %v2083, 1e-15
        %v2116 = vmax.f32 %v2084, 1e-15
        %v2117 = vmax.f32 %v2085, 1e-15
        %v2118 = vmax.f32 %v2086, 1e-15
        %v2119 = vmax.f32 %v2087, 1e-15
        %v2120 = vmax.f32 %v2088, 1e-15
        %v2121 = vmax.f32 %v2089, 1e-15
        %v2122 = vmax.f32 %v2090, 1e-15
        %v2123 = vmax.f32 %v2091, 1e-15
        %v2124 = vmax.f32 %v2092, 1e-15
        %v2125 = vmax.f32 %v2093, 1e-15
        %v2126 = vmax.f32 %v2094, 1e-15
        %v2127 = vmax.f32 %v2095, 1e-15
        %v2128 = vmax.f32 %v2096, 1e-15
        %v2129 = vmax.f32 %v2097, 1e-15
        %v2130 = vmax.f32 %v2098, 1e-15
        %v2131 = vmax.f32 %v2099, 1e-15
        %v2132 = vmax.f32 %v2100, 1e-15
        %v2133 = vrcp.pop %v2101
        %v2134 = vrcp.pop %v2102
        %v2135 = vrcp.pop %v2103
        %v2136 = vrcp.pop %v2104
        %v2137 = vrcp.pop %v2105
        %v2138 = vrcp.pop %v2106
        %v2139 = vrcp.pop %v2107
        %v2140 = vrcp.pop %v2108
        %v2141 = vrcp.pop %v2109
        %v2142 = vrcp.pop %v2110
        %v2143 = vrcp.pop %v2111
        %v2144 = vrcp.pop %v2112
        %v2145 = vrcp.pop %v2113
        %v2146 = vrcp.pop %v2114
        %v2147 = vrcp.pop %v2115
        %v2148 = vrcp.pop %v2116
        %v2149 = vrcp.pop %v2117
        %v2150 = vrcp.pop %v2118
        %v2151 = vrcp.pop %v2119
        %v2152 = vrcp.pop %v2120
        %v2153 = vrcp.pop %v2121
        %v2154 = vrcp.pop %v2122
        %v2155 = vrcp.pop %v2123
        %v2156 = vrcp.pop %v2124
        %v2157 = vrcp.pop %v2125
        %v2158 = vrcp.pop %v2126
        %v2159 = vrcp.pop %v2127
        %v2160 = vrcp.pop %v2128
        %v2161 = vrcp.pop %v2129
        %v2162 = vrcp.pop %v2130
        %v2163 = vrcp.pop %v2131
        %v2164 = vrcp.pop %v2132
        %v2165 = vmul.f32 %v1973, %v2133
        %v2166 = vmul.f32 %v1974, %v2134
        %v2167 = vmul.f32 %v1975, %v2135
        %v2168 = vmul.f32 %v1976, %v2136
        %v2169 = vmul.f32 %v1977, %v2137
        %v2170 = vmul.f32 %v1978, %v2138
        %v2171 = vmul.f32 %v1979, %v2139
        %v2172 = vmul.f32 %v1980, %v2140
        %v2173 = vmul.f32 %v1981, %v2141
        %v2174 = vmul.f32 %v1982, %v2142
        %v2175 = vmul.f32 %v1983, %v2143
        %v2176 = vmul.f32 %v1984, %v2144
        %v2177 = vmul.f32 %v1985, %v2145
        %v2178 = vmul.f32 %v1986, %v2146
        %v2179 = vmul.f32 %v1987, %v2147
        %v2180 = vmul.f32 %v1988, %v2148
        %v2181 = vmul.f32 %v1989, %v2149
        %v2182 = vmul.f32 %v1990, %v2150
        %v2183 = vmul.f32 %v1991, %v2151
        %v2184 = vmul.f32 %v1992, %v2152
        %v2185 = vmul.f32 %v1993, %v2153
        %v2186 = vmul.f32 %v1994, %v2154
        %v2187 = vmul.f32 %v1995, %v2155
        %v2188 = vmul.f32 %v1996, %v2156
        %v2189 = vmul.f32 %v1997, %v2157
        %v2190 = vmul.f32 %v1998, %v2158
        %v2191 = vmul.f32 %v1999, %v2159
        %v2192 = vmul.f32 %v2000, %v2160
        %v2193 = vmul.f32 %v2001, %v2161
        %v2194 = vmul.f32 %v2002, %v2162
        %v2195 = vmul.f32 %v2003, %v2163
        %v2196 = vmul.f32 %v2004, %v2164
        %v2197 = vmul.f32 %v2005, %v2133
        %v2198 = vmul.f32 %v2006, %v2134
        %v2199 = vmul.f32 %v2007, %v2135
        %v2200 = vmul.f32 %v2008, %v2136
        %v2201 = vmul.f32 %v2009, %v2137
        %v2202 = vmul.f32 %v2010, %v2138
        %v2203 = vmul.f32 %v2011, %v2139
        %v2204 = vmul.f32 %v2012, %v2140
        %v2205 = vmul.f32 %v2013, %v2141
        %v2206 = vmul.f32 %v2014, %v2142
        %v2207 = vmul.f32 %v2015, %v2143
        %v2208 = vmul.f32 %v2016, %v2144
        %v2209 = vmul.f32 %v2017, %v2145
        %v2210 = vmul.f32 %v2018, %v2146
        %v2211 = vmul.f32 %v2019, %v2147
        %v2212 = vmul.f32 %v2020, %v2148
        %v2213 = vmul.f32 %v2021, %v2149
        %v2214 = vmul.f32 %v2022, %v2150
        %v2215 = vmul.f32 %v2023, %v2151
        %v2216 = vmul.f32 %v2024, %v2152
        %v2217 = vmul.f32 %v2025, %v2153
        %v2218 = vmul.f32 %v2026, %v2154
        %v2219 = vmul.f32 %v2027, %v2155
        %v2220 = vmul.f32 %v2028, %v2156
        %v2221 = vmul.f32 %v2029, %v2157
        %v2222 = vmul.f32 %v2030, %v2158
        %v2223 = vmul.f32 %v2031, %v2159
        %v2224 = vmul.f32 %v2032, %v2160
        %v2225 = vmul.f32 %v2033, %v2161
        %v2226 = vmul.f32 %v2034, %v2162
        %v2227 = vmul.f32 %v2035, %v2163
        %v2228 = vmul.f32 %v2036, %v2164
        %v2229 = vmul.f32 %v2165, %v2165
        %v2230 = vmul.f32 %v2166, %v2166
        %v2231 = vmul.f32 %v2167, %v2167
        %v2232 = vmul.f32 %v2168, %v2168
        %v2233 = vmul.f32 %v2169, %v2169
        %v2234 = vmul.f32 %v2170, %v2170
        %v2235 = vmul.f32 %v2171, %v2171
        %v2236 = vmul.f32 %v2172, %v2172
        %v2237 = vmul.f32 %v2173, %v2173
        %v2238 = vmul.f32 %v2174, %v2174
        %v2239 = vmul.f32 %v2175, %v2175
        %v2240 = vmul.f32 %v2176, %v2176
        %v2241 = vmul.f32 %v2177, %v2177
        %v2242 = vmul.f32 %v2178, %v2178
        %v2243 = vmul.f32 %v2179, %v2179
        %v2244 = vmul.f32 %v2180, %v2180
        %v2245 = vmul.f32 %v2181, %v2181
        %v2246 = vmul.f32 %v2182, %v2182
        %v2247 = vmul.f32 %v2183, %v2183
        %v2248 = vmul.f32 %v2184, %v2184
        %v2249 = vmul.f32 %v2185, %v2185
        %v2250 = vmul.f32 %v2186, %v2186
        %v2251 = vmul.f32 %v2187, %v2187
        %v2252 = vmul.f32 %v2188, %v2188
        %v2253 = vmul.f32 %v2189, %v2189
        %v2254 = vmul.f32 %v2190, %v2190
        %v2255 = vmul.f32 %v2191, %v2191
        %v2256 = vmul.f32 %v2192, %v2192
        %v2257 = vmul.f32 %v2193, %v2193
        %v2258 = vmul.f32 %v2194, %v2194
        %v2259 = vmul.f32 %v2195, %v2195
        %v2260 = vmul.f32 %v2196, %v2196
        %v2261 = vmul.f32 %v2229, %v1841
        %v2262 = vmul.f32 %v2230, %v1842
        %v2263 = vmul.f32 %v2231, %v1843
        %v2264 = vmul.f32 %v2232, %v1844
        %v2265 = vmul.f32 %v2233, %v1845
        %v2266 = vmul.f32 %v2234, %v1846
        %v2267 = vmul.f32 %v2235, %v1847
        %v2268 = vmul.f32 %v2236, %v1848
        %v2269 = vmul.f32 %v2237, %v1849
        %v2270 = vmul.f32 %v2238, %v1850
        %v2271 = vmul.f32 %v2239, %v1851
        %v2272 = vmul.f32 %v2240, %v1852
        %v2273 = vmul.f32 %v2241, %v1853
        %v2274 = vmul.f32 %v2242, %v1854
        %v2275 = vmul.f32 %v2243, %v1855
        %v2276 = vmul.f32 %v2244, %v1856
        %v2277 = vmul.f32 %v2245, %v1857
        %v2278 = vmul.f32 %v2246, %v1858
        %v2279 = vmul.f32 %v2247, %v1859
        %v2280 = vmul.f32 %v2248, %v1860
        %v2281 = vmul.f32 %v2249, %v1861
        %v2282 = vmul.f32 %v2250, %v1862
        %v2283 = vmul.f32 %v2251, %v1863
        %v2284 = vmul.f32 %v2252, %v1864
        %v2285 = vmul.f32 %v2253, %v1865
        %v2286 = vmul.f32 %v2254, %v1866
        %v2287 = vmul.f32 %v2255, %v1867
        %v2288 = vmul.f32 %v2256, %v1868
        %v2289 = vmul.f32 %v2257, %v1869
        %v2290 = vmul.f32 %v2258, %v1870
        %v2291 = vmul.f32 %v2259, %v1871
        %v2292 = vmul.f32 %v2260, %v1872
        %v2293 = vmul.f32 %v2165, 2.0
        %v2294 = vmul.f32 %v2166, 2.0
        %v2295 = vmul.f32 %v2167, 2.0
        %v2296 = vmul.f32 %v2168, 2.0
        %v2297 = vmul.f32 %v2169, 2.0
        %v2298 = vmul.f32 %v2170, 2.0
        %v2299 = vmul.f32 %v2171, 2.0
        %v2300 = vmul.f32 %v2172, 2.0
        %v2301 = vmul.f32 %v2173, 2.0
        %v2302 = vmul.f32 %v2174, 2.0
        %v2303 = vmul.f32 %v2175, 2.0
        %v2304 = vmul.f32 %v2176, 2.0
        %v2305 = vmul.f32 %v2177, 2.0
        %v2306 = vmul.f32 %v2178, 2.0
        %v2307 = vmul.f32 %v2179, 2.0
        %v2308 = vmul.f32 %v2180, 2.0
        %v2309 = vmul.f32 %v2181, 2.0
        %v2310 = vmul.f32 %v2182, 2.0
        %v2311 = vmul.f32 %v2183, 2.0
        %v2312 = vmul.f32 %v2184, 2.0
        %v2313 = vmul.f32 %v2185, 2.0
        %v2314 = vmul.f32 %v2186, 2.0
        %v2315 = vmul.f32 %v2187, 2.0
        %v2316 = vmul.f32 %v2188, 2.0
        %v2317 = vmul.f32 %v2189, 2.0
        %v2318 = vmul.f32 %v2190, 2.0
        %v2319 = vmul.f32 %v2191, 2.0
        %v2320 = vmul.f32 %v2192, 2.0
        %v2321 = vmul.f32 %v2193, 2.0
        %v2322 = vmul.f32 %v2194, 2.0
        %v2323 = vmul.f32 %v2195, 2.0
        %v2324 = vmul.f32 %v2196, 2.0
        %v2325 = vmul.f32 %v2293, %v2197
        %v2326 = vmul.f32 %v2294, %v2198
        %v2327 = vmul.f32 %v2295, %v2199
        %v2328 = vmul.f32 %v2296, %v2200
        %v2329 = vmul.f32 %v2297, %v2201
        %v2330 = vmul.f32 %v2298, %v2202
        %v2331 = vmul.f32 %v2299, %v2203
        %v2332 = vmul.f32 %v2300, %v2204
        %v2333 = vmul.f32 %v2301, %v2205
        %v2334 = vmul.f32 %v2302, %v2206
        %v2335 = vmul.f32 %v2303, %v2207
        %v2336 = vmul.f32 %v2304, %v2208
        %v2337 = vmul.f32 %v2305, %v2209
        %v2338 = vmul.f32 %v2306, %v2210
        %v2339 = vmul.f32 %v2307, %v2211
        %v2340 = vmul.f32 %v2308, %v2212
        %v2341 = vmul.f32 %v2309, %v2213
        %v2342 = vmul.f32 %v2310, %v2214
        %v2343 = vmul.f32 %v2311, %v2215
        %v2344 = vmul.f32 %v2312, %v2216
        %v2345 = vmul.f32 %v2313, %v2217
        %v2346 = vmul.f32 %v2314, %v2218
        %v2347 = vmul.f32 %v2315, %v2219
        %v2348 = vmul.f32 %v2316, %v2220
        %v2349 = vmul.f32 %v2317, %v2221
        %v2350 = vmul.f32 %v2318, %v2222
        %v2351 = vmul.f32 %v2319, %v2223
        %v2352 = vmul.f32 %v2320, %v2224
        %v2353 = vmul.f32 %v2321, %v2225
        %v2354 = vmul.f32 %v2322, %v2226
        %v2355 = vmul.f32 %v2323, %v2227
        %v2356 = vmul.f32 %v2324, %v2228
        %v2357 = vmul.f32 %v2325, %v1873
        %v2358 = vmul.f32 %v2326, %v1874
        %v2359 = vmul.f32 %v2327, %v1875
        %v2360 = vmul.f32 %v2328, %v1876
        %v2361 = vmul.f32 %v2329, %v1877
        %v2362 = vmul.f32 %v2330, %v1878
        %v2363 = vmul.f32 %v2331, %v1879
        %v2364 = vmul.f32 %v2332, %v1880
        %v2365 = vmul.f32 %v2333, %v1881
        %v2366 = vmul.f32 %v2334, %v1882
        %v2367 = vmul.f32 %v2335, %v1883
        %v2368 = vmul.f32 %v2336, %v1884
        %v2369 = vmul.f32 %v2337, %v1885
        %v2370 = vmul.f32 %v2338, %v1886
        %v2371 = vmul.f32 %v2339, %v1887
        %v2372 = vmul.f32 %v2340, %v1888
        %v2373 = vmul.f32 %v2341, %v1889
        %v2374 = vmul.f32 %v2342, %v1890
        %v2375 = vmul.f32 %v2343, %v1891
        %v2376 = vmul.f32 %v2344, %v1892
        %v2377 = vmul.f32 %v2345, %v1893
        %v2378 = vmul.f32 %v2346, %v1894
        %v2379 = vmul.f32 %v2347, %v1895
        %v2380 = vmul.f32 %v2348, %v1896
        %v2381 = vmul.f32 %v2349, %v1897
        %v2382 = vmul.f32 %v2350, %v1898
        %v2383 = vmul.f32 %v2351, %v1899
        %v2384 = vmul.f32 %v2352, %v1900
        %v2385 = vmul.f32 %v2353, %v1901
        %v2386 = vmul.f32 %v2354, %v1902
        %v2387 = vmul.f32 %v2355, %v1903
        %v2388 = vmul.f32 %v2356, %v1904
        %v2389 = vadd.f32 %v2261, %v2357
        %v2390 = vadd.f32 %v2262, %v2358
        %v2391 = vadd.f32 %v2263, %v2359
        %v2392 = vadd.f32 %v2264, %v2360
        %v2393 = vadd.f32 %v2265, %v2361
        %v2394 = vadd.f32 %v2266, %v2362
        %v2395 = vadd.f32 %v2267, %v2363
        %v2396 = vadd.f32 %v2268, %v2364
        %v2397 = vadd.f32 %v2269, %v2365
        %v2398 = vadd.f32 %v2270, %v2366
        %v2399 = vadd.f32 %v2271, %v2367
        %v2400 = vadd.f32 %v2272, %v2368
        %v2401 = vadd.f32 %v2273, %v2369
        %v2402 = vadd.f32 %v2274, %v2370
        %v2403 = vadd.f32 %v2275, %v2371
        %v2404 = vadd.f32 %v2276, %v2372
        %v2405 = vadd.f32 %v2277, %v2373
        %v2406 = vadd.f32 %v2278, %v2374
        %v2407 = vadd.f32 %v2279, %v2375
        %v2408 = vadd.f32 %v2280, %v2376
        %v2409 = vadd.f32 %v2281, %v2377
        %v2410 = vadd.f32 %v2282, %v2378
        %v2411 = vadd.f32 %v2283, %v2379
        %v2412 = vadd.f32 %v2284, %v2380
        %v2413 = vadd.f32 %v2285, %v2381
        %v2414 = vadd.f32 %v2286, %v2382
        %v2415 = vadd.f32 %v2287, %v2383
        %v2416 = vadd.f32 %v2288, %v2384
        %v2417 = vadd.f32 %v2289, %v2385
        %v2418 = vadd.f32 %v2290, %v2386
        %v2419 = vadd.f32 %v2291, %v2387
        %v2420 = vadd.f32 %v2292, %v2388
        %v2421 = vmul.f32 %v2197, %v2197
        %v2422 = vmul.f32 %v2198, %v2198
        %v2423 = vmul.f32 %v2199, %v2199
        %v2424 = vmul.f32 %v2200, %v2200
        %v2425 = vmul.f32 %v2201, %v2201
        %v2426 = vmul.f32 %v2202, %v2202
        %v2427 = vmul.f32 %v2203, %v2203
        %v2428 = vmul.f32 %v2204, %v2204
        %v2429 = vmul.f32 %v2205, %v2205
        %v2430 = vmul.f32 %v2206, %v2206
        %v2431 = vmul.f32 %v2207, %v2207
        %v2432 = vmul.f32 %v2208, %v2208
        %v2433 = vmul.f32 %v2209, %v2209
        %v2434 = vmul.f32 %v2210, %v2210
        %v2435 = vmul.f32 %v2211, %v2211
        %v2436 = vmul.f32 %v2212, %v2212
        %v2437 = vmul.f32 %v2213, %v2213
        %v2438 = vmul.f32 %v2214, %v2214
        %v2439 = vmul.f32 %v2215, %v2215
        %v2440 = vmul.f32 %v2216, %v2216
        %v2441 = vmul.f32 %v2217, %v2217
        %v2442 = vmul.f32 %v2218, %v2218
        %v2443 = vmul.f32 %v2219, %v2219
        %v2444 = vmul.f32 %v2220, %v2220
        %v2445 = vmul.f32 %v2221, %v2221
        %v2446 = vmul.f32 %v2222, %v2222
        %v2447 = vmul.f32 %v2223, %v2223
        %v2448 = vmul.f32 %v2224, %v2224
        %v2449 = vmul.f32 %v2225, %v2225
        %v2450 = vmul.f32 %v2226, %v2226
        %v2451 = vmul.f32 %v2227, %v2227
        %v2452 = vmul.f32 %v2228, %v2228
        %v2453 = vmul.f32 %v2421, %v1972
        %v2454 = vmul.f32 %v2422, %v1972
        %v2455 = vmul.f32 %v2423, %v1972
        %v2456 = vmul.f32 %v2424, %v1972
        %v2457 = vmul.f32 %v2425, %v1972
        %v2458 = vmul.f32 %v2426, %v1972
        %v2459 = vmul.f32 %v2427, %v1972
        %v2460 = vmul.f32 %v2428, %v1972
        %v2461 = vmul.f32 %v2429, %v1972
        %v2462 = vmul.f32 %v2430, %v1972
        %v2463 = vmul.f32 %v2431, %v1972
        %v2464 = vmul.f32 %v2432, %v1972
        %v2465 = vmul.f32 %v2433, %v1972
        %v2466 = vmul.f32 %v2434, %v1972
        %v2467 = vmul.f32 %v2435, %v1972
        %v2468 = vmul.f32 %v2436, %v1972
        %v2469 = vmul.f32 %v2437, %v1972
        %v2470 = vmul.f32 %v2438, %v1972
        %v2471 = vmul.f32 %v2439, %v1972
        %v2472 = vmul.f32 %v2440, %v1972
        %v2473 = vmul.f32 %v2441, %v1972
        %v2474 = vmul.f32 %v2442, %v1972
        %v2475 = vmul.f32 %v2443, %v1972
        %v2476 = vmul.f32 %v2444, %v1972
        %v2477 = vmul.f32 %v2445, %v1972
        %v2478 = vmul.f32 %v2446, %v1972
        %v2479 = vmul.f32 %v2447, %v1972
        %v2480 = vmul.f32 %v2448, %v1972
        %v2481 = vmul.f32 %v2449, %v1972
        %v2482 = vmul.f32 %v2450, %v1972
        %v2483 = vmul.f32 %v2451, %v1972
        %v2484 = vmul.f32 %v2452, %v1972
        %v2485 = vadd.f32 %v2389, %v2453
        %v2486 = vadd.f32 %v2390, %v2454
        %v2487 = vadd.f32 %v2391, %v2455
        %v2488 = vadd.f32 %v2392, %v2456
        %v2489 = vadd.f32 %v2393, %v2457
        %v2490 = vadd.f32 %v2394, %v2458
        %v2491 = vadd.f32 %v2395, %v2459
        %v2492 = vadd.f32 %v2396, %v2460
        %v2493 = vadd.f32 %v2397, %v2461
        %v2494 = vadd.f32 %v2398, %v2462
        %v2495 = vadd.f32 %v2399, %v2463
        %v2496 = vadd.f32 %v2400, %v2464
        %v2497 = vadd.f32 %v2401, %v2465
        %v2498 = vadd.f32 %v2402, %v2466
        %v2499 = vadd.f32 %v2403, %v2467
        %v2500 = vadd.f32 %v2404, %v2468
        %v2501 = vadd.f32 %v2405, %v2469
        %v2502 = vadd.f32 %v2406, %v2470
        %v2503 = vadd.f32 %v2407, %v2471
        %v2504 = vadd.f32 %v2408, %v2472
        %v2505 = vadd.f32 %v2409, %v2473
        %v2506 = vadd.f32 %v2410, %v2474
        %v2507 = vadd.f32 %v2411, %v2475
        %v2508 = vadd.f32 %v2412, %v2476
        %v2509 = vadd.f32 %v2413, %v2477
        %v2510 = vadd.f32 %v2414, %v2478
        %v2511 = vadd.f32 %v2415, %v2479
        %v2512 = vadd.f32 %v2416, %v2480
        %v2513 = vadd.f32 %v2417, %v2481
        %v2514 = vadd.f32 %v2418, %v2482
        %v2515 = vadd.f32 %v2419, %v2483
        %v2516 = vadd.f32 %v2420, %v2484
        %v2517 = vmax.f32 %v2485, 1e-30
        %v2518 = vmax.f32 %v2486, 1e-30
        %v2519 = vmax.f32 %v2487, 1e-30
        %v2520 = vmax.f32 %v2488, 1e-30
        %v2521 = vmax.f32 %v2489, 1e-30
        %v2522 = vmax.f32 %v2490, 1e-30
        %v2523 = vmax.f32 %v2491, 1e-30
        %v2524 = vmax.f32 %v2492, 1e-30
        %v2525 = vmax.f32 %v2493, 1e-30
        %v2526 = vmax.f32 %v2494, 1e-30
        %v2527 = vmax.f32 %v2495, 1e-30
        %v2528 = vmax.f32 %v2496, 1e-30
        %v2529 = vmax.f32 %v2497, 1e-30
        %v2530 = vmax.f32 %v2498, 1e-30
        %v2531 = vmax.f32 %v2499, 1e-30
        %v2532 = vmax.f32 %v2500, 1e-30
        %v2533 = vmax.f32 %v2501, 1e-30
        %v2534 = vmax.f32 %v2502, 1e-30
        %v2535 = vmax.f32 %v2503, 1e-30
        %v2536 = vmax.f32 %v2504, 1e-30
        %v2537 = vmax.f32 %v2505, 1e-30
        %v2538 = vmax.f32 %v2506, 1e-30
        %v2539 = vmax.f32 %v2507, 1e-30
        %v2540 = vmax.f32 %v2508, 1e-30
        %v2541 = vmax.f32 %v2509, 1e-30
        %v2542 = vmax.f32 %v2510, 1e-30
        %v2543 = vmax.f32 %v2511, 1e-30
        %v2544 = vmax.f32 %v2512, 1e-30
        %v2545 = vmax.f32 %v2513, 1e-30
        %v2546 = vmax.f32 %v2514, 1e-30
        %v2547 = vmax.f32 %v2515, 1e-30
        %v2548 = vmax.f32 %v2516, 1e-30
        %v2549 = vrsqrt.pop %v2517
        %v2550 = vrsqrt.pop %v2518
        %v2551 = vrsqrt.pop %v2519
        %v2552 = vrsqrt.pop %v2520
        %v2553 = vrsqrt.pop %v2521
        %v2554 = vrsqrt.pop %v2522
        %v2555 = vrsqrt.pop %v2523
        %v2556 = vrsqrt.pop %v2524
        %v2557 = vrsqrt.pop %v2525
        %v2558 = vrsqrt.pop %v2526
        %v2559 = vrsqrt.pop %v2527
        %v2560 = vrsqrt.pop %v2528
        %v2561 = vrsqrt.pop %v2529
        %v2562 = vrsqrt.pop %v2530
        %v2563 = vrsqrt.pop %v2531
        %v2564 = vrsqrt.pop %v2532
        %v2565 = vrsqrt.pop %v2533
        %v2566 = vrsqrt.pop %v2534
        %v2567 = vrsqrt.pop %v2535
        %v2568 = vrsqrt.pop %v2536
        %v2569 = vrsqrt.pop %v2537
        %v2570 = vrsqrt.pop %v2538
        %v2571 = vrsqrt.pop %v2539
        %v2572 = vrsqrt.pop %v2540
        %v2573 = vrsqrt.pop %v2541
        %v2574 = vrsqrt.pop %v2542
        %v2575 = vrsqrt.pop %v2543
        %v2576 = vrsqrt.pop %v2544
        %v2577 = vrsqrt.pop %v2545
        %v2578 = vrsqrt.pop %v2546
        %v2579 = vrsqrt.pop %v2547
        %v2580 = vrsqrt.pop %v2548
        %vm2581 = vcmp.gt.f32.partialorder %v2485, 0.992016
        %vm2582 = vcmp.gt.f32.partialorder %v2486, 0.992016
        %vm2583 = vcmp.gt.f32.partialorder %v2487, 0.992016
        %vm2584 = vcmp.gt.f32.partialorder %v2488, 0.992016
        %vm2585 = vcmp.gt.f32.partialorder %v2489, 0.992016
        %vm2586 = vcmp.gt.f32.partialorder %v2490, 0.992016
        %vm2587 = vcmp.gt.f32.partialorder %v2491, 0.992016
        %vm2588 = vcmp.gt.f32.partialorder %v2492, 0.992016
        %vm2589 = vcmp.gt.f32.partialorder %v2493, 0.992016
        %vm2590 = vcmp.gt.f32.partialorder %v2494, 0.992016
        %vm2591 = vcmp.gt.f32.partialorder %v2495, 0.992016
        %vm2592 = vcmp.gt.f32.partialorder %v2496, 0.992016
        %vm2593 = vcmp.gt.f32.partialorder %v2497, 0.992016
        %vm2594 = vcmp.gt.f32.partialorder %v2498, 0.992016
        %vm2595 = vcmp.gt.f32.partialorder %v2499, 0.992016
        %vm2596 = vcmp.gt.f32.partialorder %v2500, 0.992016
        %vm2597 = vcmp.gt.f32.partialorder %v2501, 0.992016
        %vm2598 = vcmp.gt.f32.partialorder %v2502, 0.992016
        %vm2599 = vcmp.gt.f32.partialorder %v2503, 0.992016
        %vm2600 = vcmp.gt.f32.partialorder %v2504, 0.992016
        %vm2601 = vcmp.gt.f32.partialorder %v2505, 0.992016
        %vm2602 = vcmp.gt.f32.partialorder %v2506, 0.992016
        %vm2603 = vcmp.gt.f32.partialorder %v2507, 0.992016
        %vm2604 = vcmp.gt.f32.partialorder %v2508, 0.992016
        %vm2605 = vcmp.gt.f32.partialorder %v2509, 0.992016
        %vm2606 = vcmp.gt.f32.partialorder %v2510, 0.992016
        %vm2607 = vcmp.gt.f32.partialorder %v2511, 0.992016
        %vm2608 = vcmp.gt.f32.partialorder %v2512, 0.992016
        %vm2609 = vcmp.gt.f32.partialorder %v2513, 0.992016
        %vm2610 = vcmp.gt.f32.partialorder %v2514, 0.992016
        %vm2611 = vcmp.gt.f32.partialorder %v2515, 0.992016
        %vm2612 = vcmp.gt.f32.partialorder %v2516, 0.992016
        %v2613 = vmul.f32 %v2549, 0.996
        %v2614 = vmul.f32 %v2550, 0.996
        %v2615 = vmul.f32 %v2551, 0.996
        %v2616 = vmul.f32 %v2552, 0.996
        %v2617 = vmul.f32 %v2553, 0.996
        %v2618 = vmul.f32 %v2554, 0.996
        %v2619 = vmul.f32 %v2555, 0.996
        %v2620 = vmul.f32 %v2556, 0.996
        %v2621 = vmul.f32 %v2557, 0.996
        %v2622 = vmul.f32 %v2558, 0.996
        %v2623 = vmul.f32 %v2559, 0.996
        %v2624 = vmul.f32 %v2560, 0.996
        %v2625 = vmul.f32 %v2561, 0.996
        %v2626 = vmul.f32 %v2562, 0.996
        %v2627 = vmul.f32 %v2563, 0.996
        %v2628 = vmul.f32 %v2564, 0.996
        %v2629 = vmul.f32 %v2565, 0.996
        %v2630 = vmul.f32 %v2566, 0.996
        %v2631 = vmul.f32 %v2567, 0.996
        %v2632 = vmul.f32 %v2568, 0.996
        %v2633 = vmul.f32 %v2569, 0.996
        %v2634 = vmul.f32 %v2570, 0.996
        %v2635 = vmul.f32 %v2571, 0.996
        %v2636 = vmul.f32 %v2572, 0.996
        %v2637 = vmul.f32 %v2573, 0.996
        %v2638 = vmul.f32 %v2574, 0.996
        %v2639 = vmul.f32 %v2575, 0.996
        %v2640 = vmul.f32 %v2576, 0.996
        %v2641 = vmul.f32 %v2577, 0.996
        %v2642 = vmul.f32 %v2578, 0.996
        %v2643 = vmul.f32 %v2579, 0.996
        %v2644 = vmul.f32 %v2580, 0.996
        %v2645 = vsel %vm2581, %v2613, 1.0
        %v2646 = vsel %vm2582, %v2614, 1.0
        %v2647 = vsel %vm2583, %v2615, 1.0
        %v2648 = vsel %vm2584, %v2616, 1.0
        %v2649 = vsel %vm2585, %v2617, 1.0
        %v2650 = vsel %vm2586, %v2618, 1.0
        %v2651 = vsel %vm2587, %v2619, 1.0
        %v2652 = vsel %vm2588, %v2620, 1.0
        %v2653 = vsel %vm2589, %v2621, 1.0
        %v2654 = vsel %vm2590, %v2622, 1.0
        %v2655 = vsel %vm2591, %v2623, 1.0
        %v2656 = vsel %vm2592, %v2624, 1.0
        %v2657 = vsel %vm2593, %v2625, 1.0
        %v2658 = vsel %vm2594, %v2626, 1.0
        %v2659 = vsel %vm2595, %v2627, 1.0
        %v2660 = vsel %vm2596, %v2628, 1.0
        %v2661 = vsel %vm2597, %v2629, 1.0
        %v2662 = vsel %vm2598, %v2630, 1.0
        %v2663 = vsel %vm2599, %v2631, 1.0
        %v2664 = vsel %vm2600, %v2632, 1.0
        %v2665 = vsel %vm2601, %v2633, 1.0
        %v2666 = vsel %vm2602, %v2634, 1.0
        %v2667 = vsel %vm2603, %v2635, 1.0
        %v2668 = vsel %vm2604, %v2636, 1.0
        %v2669 = vsel %vm2605, %v2637, 1.0
        %v2670 = vsel %vm2606, %v2638, 1.0
        %v2671 = vsel %vm2607, %v2639, 1.0
        %v2672 = vsel %vm2608, %v2640, 1.0
        %v2673 = vsel %vm2609, %v2641, 1.0
        %v2674 = vsel %vm2610, %v2642, 1.0
        %v2675 = vsel %vm2611, %v2643, 1.0
        %v2676 = vsel %vm2612, %v2644, 1.0
        %v2677 = vmul.f32 %v2645, %v2165
        %v2678 = vmul.f32 %v2646, %v2166
        %v2679 = vmul.f32 %v2647, %v2167
        %v2680 = vmul.f32 %v2648, %v2168
        %v2681 = vmul.f32 %v2649, %v2169
        %v2682 = vmul.f32 %v2650, %v2170
        %v2683 = vmul.f32 %v2651, %v2171
        %v2684 = vmul.f32 %v2652, %v2172
        %v2685 = vmul.f32 %v2653, %v2173
        %v2686 = vmul.f32 %v2654, %v2174
        %v2687 = vmul.f32 %v2655, %v2175
        %v2688 = vmul.f32 %v2656, %v2176
        %v2689 = vmul.f32 %v2657, %v2177
        %v2690 = vmul.f32 %v2658, %v2178
        %v2691 = vmul.f32 %v2659, %v2179
        %v2692 = vmul.f32 %v2660, %v2180
        %v2693 = vmul.f32 %v2661, %v2181
        %v2694 = vmul.f32 %v2662, %v2182
        %v2695 = vmul.f32 %v2663, %v2183
        %v2696 = vmul.f32 %v2664, %v2184
        %v2697 = vmul.f32 %v2665, %v2185
        %v2698 = vmul.f32 %v2666, %v2186
        %v2699 = vmul.f32 %v2667, %v2187
        %v2700 = vmul.f32 %v2668, %v2188
        %v2701 = vmul.f32 %v2669, %v2189
        %v2702 = vmul.f32 %v2670, %v2190
        %v2703 = vmul.f32 %v2671, %v2191
        %v2704 = vmul.f32 %v2672, %v2192
        %v2705 = vmul.f32 %v2673, %v2193
        %v2706 = vmul.f32 %v2674, %v2194
        %v2707 = vmul.f32 %v2675, %v2195
        %v2708 = vmul.f32 %v2676, %v2196
        %v2709 = vmul.f32 %v2677, %v1777
        %v2710 = vmul.f32 %v2678, %v1778
        %v2711 = vmul.f32 %v2679, %v1779
        %v2712 = vmul.f32 %v2680, %v1780
        %v2713 = vmul.f32 %v2681, %v1781
        %v2714 = vmul.f32 %v2682, %v1782
        %v2715 = vmul.f32 %v2683, %v1783
        %v2716 = vmul.f32 %v2684, %v1784
        %v2717 = vmul.f32 %v2685, %v1785
        %v2718 = vmul.f32 %v2686, %v1786
        %v2719 = vmul.f32 %v2687, %v1787
        %v2720 = vmul.f32 %v2688, %v1788
        %v2721 = vmul.f32 %v2689, %v1789
        %v2722 = vmul.f32 %v2690, %v1790
        %v2723 = vmul.f32 %v2691, %v1791
        %v2724 = vmul.f32 %v2692, %v1792
        %v2725 = vmul.f32 %v2693, %v1793
        %v2726 = vmul.f32 %v2694, %v1794
        %v2727 = vmul.f32 %v2695, %v1795
        %v2728 = vmul.f32 %v2696, %v1796
        %v2729 = vmul.f32 %v2697, %v1797
        %v2730 = vmul.f32 %v2698, %v1798
        %v2731 = vmul.f32 %v2699, %v1799
        %v2732 = vmul.f32 %v2700, %v1800
        %v2733 = vmul.f32 %v2701, %v1801
        %v2734 = vmul.f32 %v2702, %v1802
        %v2735 = vmul.f32 %v2703, %v1803
        %v2736 = vmul.f32 %v2704, %v1804
        %v2737 = vmul.f32 %v2705, %v1805
        %v2738 = vmul.f32 %v2706, %v1806
        %v2739 = vmul.f32 %v2707, %v1807
        %v2740 = vmul.f32 %v2708, %v1808
        %v2741 = vmul.f32 %v2645, %v2197
        %v2742 = vmul.f32 %v2646, %v2198
        %v2743 = vmul.f32 %v2647, %v2199
        %v2744 = vmul.f32 %v2648, %v2200
        %v2745 = vmul.f32 %v2649, %v2201
        %v2746 = vmul.f32 %v2650, %v2202
        %v2747 = vmul.f32 %v2651, %v2203
        %v2748 = vmul.f32 %v2652, %v2204
        %v2749 = vmul.f32 %v2653, %v2205
        %v2750 = vmul.f32 %v2654, %v2206
        %v2751 = vmul.f32 %v2655, %v2207
        %v2752 = vmul.f32 %v2656, %v2208
        %v2753 = vmul.f32 %v2657, %v2209
        %v2754 = vmul.f32 %v2658, %v2210
        %v2755 = vmul.f32 %v2659, %v2211
        %v2756 = vmul.f32 %v2660, %v2212
        %v2757 = vmul.f32 %v2661, %v2213
        %v2758 = vmul.f32 %v2662, %v2214
        %v2759 = vmul.f32 %v2663, %v2215
        %v2760 = vmul.f32 %v2664, %v2216
        %v2761 = vmul.f32 %v2665, %v2217
        %v2762 = vmul.f32 %v2666, %v2218
        %v2763 = vmul.f32 %v2667, %v2219
        %v2764 = vmul.f32 %v2668, %v2220
        %v2765 = vmul.f32 %v2669, %v2221
        %v2766 = vmul.f32 %v2670, %v2222
        %v2767 = vmul.f32 %v2671, %v2223
        %v2768 = vmul.f32 %v2672, %v2224
        %v2769 = vmul.f32 %v2673, %v2225
        %v2770 = vmul.f32 %v2674, %v2226
        %v2771 = vmul.f32 %v2675, %v2227
        %v2772 = vmul.f32 %v2676, %v2228
        %2774 = vset.pattern.permute.xlu0 0
        %2775 = vperm.xlu0 %2774, %v2709
        %v2776 = vpop.permute.xlu0 %2775
        %2779 = vset.pattern.permute.xlu0 0
        %2780 = vperm.xlu0 %2779, %v2710
        %v2781 = vpop.permute.xlu0 %2780
        %2784 = vset.pattern.permute.xlu0 0
        %2785 = vperm.xlu0 %2784, %v2711
        %v2786 = vpop.permute.xlu0 %2785
        %2789 = vset.pattern.permute.xlu0 0
        %2790 = vperm.xlu0 %2789, %v2712
        %v2791 = vpop.permute.xlu0 %2790
        %2794 = vset.pattern.permute.xlu0 0
        %2795 = vperm.xlu0 %2794, %v2713
        %v2796 = vpop.permute.xlu0 %2795
        %2799 = vset.pattern.permute.xlu0 0
        %2800 = vperm.xlu0 %2799, %v2714
        %v2801 = vpop.permute.xlu0 %2800
        %2804 = vset.pattern.permute.xlu0 0
        %2805 = vperm.xlu0 %2804, %v2715
        %v2806 = vpop.permute.xlu0 %2805
        %2809 = vset.pattern.permute.xlu0 0
        %2810 = vperm.xlu0 %2809, %v2716
        %v2811 = vpop.permute.xlu0 %2810
        %2814 = vset.pattern.permute.xlu0 0
        %2815 = vperm.xlu0 %2814, %v2717
        %v2816 = vpop.permute.xlu0 %2815
        %2819 = vset.pattern.permute.xlu0 0
        %2820 = vperm.xlu0 %2819, %v2718
        %v2821 = vpop.permute.xlu0 %2820
        %2824 = vset.pattern.permute.xlu0 0
        %2825 = vperm.xlu0 %2824, %v2719
        %v2826 = vpop.permute.xlu0 %2825
        %2829 = vset.pattern.permute.xlu0 0
        %2830 = vperm.xlu0 %2829, %v2720
        %v2831 = vpop.permute.xlu0 %2830
        %2834 = vset.pattern.permute.xlu0 0
        %2835 = vperm.xlu0 %2834, %v2721
        %v2836 = vpop.permute.xlu0 %2835
        %2839 = vset.pattern.permute.xlu0 0
        %2840 = vperm.xlu0 %2839, %v2722
        %v2841 = vpop.permute.xlu0 %2840
        %2844 = vset.pattern.permute.xlu0 0
        %2845 = vperm.xlu0 %2844, %v2723
        %v2846 = vpop.permute.xlu0 %2845
        %2849 = vset.pattern.permute.xlu0 0
        %2850 = vperm.xlu0 %2849, %v2724
        %v2851 = vpop.permute.xlu0 %2850
        %2854 = vset.pattern.permute.xlu0 0
        %2855 = vperm.xlu0 %2854, %v2725
        %v2856 = vpop.permute.xlu0 %2855
        %2859 = vset.pattern.permute.xlu0 0
        %2860 = vperm.xlu0 %2859, %v2726
        %v2861 = vpop.permute.xlu0 %2860
        %2864 = vset.pattern.permute.xlu0 0
        %2865 = vperm.xlu0 %2864, %v2727
        %v2866 = vpop.permute.xlu0 %2865
        %2869 = vset.pattern.permute.xlu0 0
        %2870 = vperm.xlu0 %2869, %v2728
        %v2871 = vpop.permute.xlu0 %2870
        %2874 = vset.pattern.permute.xlu0 0
        %2875 = vperm.xlu0 %2874, %v2729
        %v2876 = vpop.permute.xlu0 %2875
        %2879 = vset.pattern.permute.xlu0 0
        %2880 = vperm.xlu0 %2879, %v2730
        %v2881 = vpop.permute.xlu0 %2880
        %2884 = vset.pattern.permute.xlu0 0
        %2885 = vperm.xlu0 %2884, %v2731
        %v2886 = vpop.permute.xlu0 %2885
        %2889 = vset.pattern.permute.xlu0 0
        %2890 = vperm.xlu0 %2889, %v2732
        %v2891 = vpop.permute.xlu0 %2890
        %2894 = vset.pattern.permute.xlu0 0
        %2895 = vperm.xlu0 %2894, %v2733
        %v2896 = vpop.permute.xlu0 %2895
        %2899 = vset.pattern.permute.xlu0 0
        %2900 = vperm.xlu0 %2899, %v2734
        %v2901 = vpop.permute.xlu0 %2900
        %2904 = vset.pattern.permute.xlu0 0
        %2905 = vperm.xlu0 %2904, %v2735
        %v2906 = vpop.permute.xlu0 %2905
        %2909 = vset.pattern.permute.xlu0 0
        %2910 = vperm.xlu0 %2909, %v2736
        %v2911 = vpop.permute.xlu0 %2910
        %2914 = vset.pattern.permute.xlu0 0
        %2915 = vperm.xlu0 %2914, %v2737
        %v2916 = vpop.permute.xlu0 %2915
        %2919 = vset.pattern.permute.xlu0 0
        %2920 = vperm.xlu0 %2919, %v2738
        %v2921 = vpop.permute.xlu0 %2920
        %2924 = vset.pattern.permute.xlu0 0
        %2925 = vperm.xlu0 %2924, %v2739
        %v2926 = vpop.permute.xlu0 %2925
        %2929 = vset.pattern.permute.xlu0 0
        %2930 = vperm.xlu0 %2929, %v2740
        %v2931 = vpop.permute.xlu0 %2930
        %v2933 = vmul.f32 %v2776, %v365
        %v2934 = vmul.f32 %v2781, %v368
        %v2935 = vmul.f32 %v2786, %v373
        %v2936 = vmul.f32 %v2791, %v376
        %v2937 = vmul.f32 %v2796, %v381
        %v2938 = vmul.f32 %v2801, %v384
        %v2939 = vmul.f32 %v2806, %v389
        %v2940 = vmul.f32 %v2811, %v392
        %v2941 = vmul.f32 %v2816, %v397
        %v2942 = vmul.f32 %v2821, %v400
        %v2943 = vmul.f32 %v2826, %v405
        %v2944 = vmul.f32 %v2831, %v408
        %v2945 = vmul.f32 %v2836, %v413
        %v2946 = vmul.f32 %v2841, %v416
        %v2947 = vmul.f32 %v2846, %v421
        %v2948 = vmul.f32 %v2851, %v424
        %v2949 = vmul.f32 %v2856, %v429
        %v2950 = vmul.f32 %v2861, %v432
        %v2951 = vmul.f32 %v2866, %v437
        %v2952 = vmul.f32 %v2871, %v440
        %v2953 = vmul.f32 %v2876, %v445
        %v2954 = vmul.f32 %v2881, %v448
        %v2955 = vmul.f32 %v2886, %v453
        %v2956 = vmul.f32 %v2891, %v456
        %v2957 = vmul.f32 %v2896, %v461
        %v2958 = vmul.f32 %v2901, %v464
        %v2959 = vmul.f32 %v2906, %v469
        %v2960 = vmul.f32 %v2911, %v472
        %v2961 = vmul.f32 %v2916, %v477
        %v2962 = vmul.f32 %v2921, %v480
        %v2963 = vmul.f32 %v2926, %v485
        %v2964 = vmul.f32 %v2931, %v488
        %2966 = vset.pattern.permute.xlu0 0
        %2967 = vperm.xlu0 %2966, %v2741
        %v2968 = vpop.permute.xlu0 %2967
        %2971 = vset.pattern.permute.xlu0 0
        %2972 = vperm.xlu0 %2971, %v2742
        %v2973 = vpop.permute.xlu0 %2972
        %2976 = vset.pattern.permute.xlu0 0
        %2977 = vperm.xlu0 %2976, %v2743
        %v2978 = vpop.permute.xlu0 %2977
        %2981 = vset.pattern.permute.xlu0 0
        %2982 = vperm.xlu0 %2981, %v2744
        %v2983 = vpop.permute.xlu0 %2982
        %2986 = vset.pattern.permute.xlu0 0
        %2987 = vperm.xlu0 %2986, %v2745
        %v2988 = vpop.permute.xlu0 %2987
        %2991 = vset.pattern.permute.xlu0 0
        %2992 = vperm.xlu0 %2991, %v2746
        %v2993 = vpop.permute.xlu0 %2992
        %2996 = vset.pattern.permute.xlu0 0
        %2997 = vperm.xlu0 %2996, %v2747
        %v2998 = vpop.permute.xlu0 %2997
        %3001 = vset.pattern.permute.xlu0 0
        %3002 = vperm.xlu0 %3001, %v2748
        %v3003 = vpop.permute.xlu0 %3002
        %3006 = vset.pattern.permute.xlu0 0
        %3007 = vperm.xlu0 %3006, %v2749
        %v3008 = vpop.permute.xlu0 %3007
        %3011 = vset.pattern.permute.xlu0 0
        %3012 = vperm.xlu0 %3011, %v2750
        %v3013 = vpop.permute.xlu0 %3012
        %3016 = vset.pattern.permute.xlu0 0
        %3017 = vperm.xlu0 %3016, %v2751
        %v3018 = vpop.permute.xlu0 %3017
        %3021 = vset.pattern.permute.xlu0 0
        %3022 = vperm.xlu0 %3021, %v2752
        %v3023 = vpop.permute.xlu0 %3022
        %3026 = vset.pattern.permute.xlu0 0
        %3027 = vperm.xlu0 %3026, %v2753
        %v3028 = vpop.permute.xlu0 %3027
        %3031 = vset.pattern.permute.xlu0 0
        %3032 = vperm.xlu0 %3031, %v2754
        %v3033 = vpop.permute.xlu0 %3032
        %3036 = vset.pattern.permute.xlu0 0
        %3037 = vperm.xlu0 %3036, %v2755
        %v3038 = vpop.permute.xlu0 %3037
        %3041 = vset.pattern.permute.xlu0 0
        %3042 = vperm.xlu0 %3041, %v2756
        %v3043 = vpop.permute.xlu0 %3042
        %3046 = vset.pattern.permute.xlu0 0
        %3047 = vperm.xlu0 %3046, %v2757
        %v3048 = vpop.permute.xlu0 %3047
        %3051 = vset.pattern.permute.xlu0 0
        %3052 = vperm.xlu0 %3051, %v2758
        %v3053 = vpop.permute.xlu0 %3052
        %3056 = vset.pattern.permute.xlu0 0
        %3057 = vperm.xlu0 %3056, %v2759
        %v3058 = vpop.permute.xlu0 %3057
        %3061 = vset.pattern.permute.xlu0 0
        %3062 = vperm.xlu0 %3061, %v2760
        %v3063 = vpop.permute.xlu0 %3062
        %3066 = vset.pattern.permute.xlu0 0
        %3067 = vperm.xlu0 %3066, %v2761
        %v3068 = vpop.permute.xlu0 %3067
        %3071 = vset.pattern.permute.xlu0 0
        %3072 = vperm.xlu0 %3071, %v2762
        %v3073 = vpop.permute.xlu0 %3072
        %3076 = vset.pattern.permute.xlu0 0
        %3077 = vperm.xlu0 %3076, %v2763
        %v3078 = vpop.permute.xlu0 %3077
        %3081 = vset.pattern.permute.xlu0 0
        %3082 = vperm.xlu0 %3081, %v2764
        %v3083 = vpop.permute.xlu0 %3082
        %3086 = vset.pattern.permute.xlu0 0
        %3087 = vperm.xlu0 %3086, %v2765
        %v3088 = vpop.permute.xlu0 %3087
        %3091 = vset.pattern.permute.xlu0 0
        %3092 = vperm.xlu0 %3091, %v2766
        %v3093 = vpop.permute.xlu0 %3092
        %3096 = vset.pattern.permute.xlu0 0
        %3097 = vperm.xlu0 %3096, %v2767
        %v3098 = vpop.permute.xlu0 %3097
        %3101 = vset.pattern.permute.xlu0 0
        %3102 = vperm.xlu0 %3101, %v2768
        %v3103 = vpop.permute.xlu0 %3102
        %3106 = vset.pattern.permute.xlu0 0
        %3107 = vperm.xlu0 %3106, %v2769
        %v3108 = vpop.permute.xlu0 %3107
        %3111 = vset.pattern.permute.xlu0 0
        %3112 = vperm.xlu0 %3111, %v2770
        %v3113 = vpop.permute.xlu0 %3112
        %3116 = vset.pattern.permute.xlu0 0
        %3117 = vperm.xlu0 %3116, %v2771
        %v3118 = vpop.permute.xlu0 %3117
        %3121 = vset.pattern.permute.xlu0 0
        %3122 = vperm.xlu0 %3121, %v2772
        %v3123 = vpop.permute.xlu0 %3122
        %v3126 = vlaneseq
        %v3127 = vshrl.u32 %v3126, 7
        %v3128 = vsub.s32 0, %v3127
        %v3129 = vrot.slane %v236, %v3128
        %v3131 = vmul.f32 %v2968, %v3129
        %v3132 = vmul.f32 %v2973, %v3129
        %v3133 = vmul.f32 %v2978, %v3129
        %v3134 = vmul.f32 %v2983, %v3129
        %v3135 = vmul.f32 %v2988, %v3129
        %v3136 = vmul.f32 %v2993, %v3129
        %v3137 = vmul.f32 %v2998, %v3129
        %v3138 = vmul.f32 %v3003, %v3129
        %v3139 = vmul.f32 %v3008, %v3129
        %v3140 = vmul.f32 %v3013, %v3129
        %v3141 = vmul.f32 %v3018, %v3129
        %v3142 = vmul.f32 %v3023, %v3129
        %v3143 = vmul.f32 %v3028, %v3129
        %v3144 = vmul.f32 %v3033, %v3129
        %v3145 = vmul.f32 %v3038, %v3129
        %v3146 = vmul.f32 %v3043, %v3129
        %v3147 = vmul.f32 %v3048, %v3129
        %v3148 = vmul.f32 %v3053, %v3129
        %v3149 = vmul.f32 %v3058, %v3129
        %v3150 = vmul.f32 %v3063, %v3129
        %v3151 = vmul.f32 %v3068, %v3129
        %v3152 = vmul.f32 %v3073, %v3129
        %v3153 = vmul.f32 %v3078, %v3129
        %v3154 = vmul.f32 %v3083, %v3129
        %v3155 = vmul.f32 %v3088, %v3129
        %v3156 = vmul.f32 %v3093, %v3129
        %v3157 = vmul.f32 %v3098, %v3129
        %v3158 = vmul.f32 %v3103, %v3129
        %v3159 = vmul.f32 %v3108, %v3129
        %v3160 = vmul.f32 %v3113, %v3129
        %v3161 = vmul.f32 %v3118, %v3129
        %v3162 = vmul.f32 %v3123, %v3129
        %v3163 = vadd.f32 %v2933, %v3131
        %v3164 = vadd.f32 %v2934, %v3132
        %v3165 = vadd.f32 %v2935, %v3133
        %v3166 = vadd.f32 %v2936, %v3134
        %v3167 = vadd.f32 %v2937, %v3135
        %v3168 = vadd.f32 %v2938, %v3136
        %v3169 = vadd.f32 %v2939, %v3137
        %v3170 = vadd.f32 %v2940, %v3138
        %v3171 = vadd.f32 %v2941, %v3139
        %v3172 = vadd.f32 %v2942, %v3140
        %v3173 = vadd.f32 %v2943, %v3141
        %v3174 = vadd.f32 %v2944, %v3142
        %v3175 = vadd.f32 %v2945, %v3143
        %v3176 = vadd.f32 %v2946, %v3144
        %v3177 = vadd.f32 %v2947, %v3145
        %v3178 = vadd.f32 %v2948, %v3146
        %v3179 = vadd.f32 %v2949, %v3147
        %v3180 = vadd.f32 %v2950, %v3148
        %v3181 = vadd.f32 %v2951, %v3149
        %v3182 = vadd.f32 %v2952, %v3150
        %v3183 = vadd.f32 %v2953, %v3151
        %v3184 = vadd.f32 %v2954, %v3152
        %v3185 = vadd.f32 %v2955, %v3153
        %v3186 = vadd.f32 %v2956, %v3154
        %v3187 = vadd.f32 %v2957, %v3155
        %v3188 = vadd.f32 %v2958, %v3156
        %v3189 = vadd.f32 %v2959, %v3157
        %v3190 = vadd.f32 %v2960, %v3158
        %v3191 = vadd.f32 %v2961, %v3159
        %v3192 = vadd.f32 %v2962, %v3160
        %v3193 = vadd.f32 %v2963, %v3161
        %v3194 = vadd.f32 %v2964, %v3162
        %3195 = vst [vmem:[%s191] sm:$0xff] %v3163
        %3196 = vst [vmem:[%s191 + $0x8] sm:$0xff] %v3164
        %3197 = vst [vmem:[%s191 + $0x10] sm:$0xff] %v3165
        %3198 = vst [vmem:[%s191 + $0x18] sm:$0xff] %v3166
        %3199 = vst [vmem:[%s191 + $0x20] sm:$0xff] %v3167
        %3200 = vst [vmem:[%s191 + $0x28] sm:$0xff] %v3168
        %3201 = vst [vmem:[%s191 + $0x30] sm:$0xff] %v3169
        %3202 = vst [vmem:[%s191 + $0x38] sm:$0xff] %v3170
        %3203 = vst [vmem:[%s191 + $0x40] sm:$0xff] %v3171
        %3204 = vst [vmem:[%s191 + $0x48] sm:$0xff] %v3172
        %3205 = vst [vmem:[%s191 + $0x50] sm:$0xff] %v3173
        %3206 = vst [vmem:[%s191 + $0x58] sm:$0xff] %v3174
        %3207 = vst [vmem:[%s191 + $0x60] sm:$0xff] %v3175
        %3208 = vst [vmem:[%s191 + $0x68] sm:$0xff] %v3176
        %3209 = vst [vmem:[%s191 + $0x70] sm:$0xff] %v3177
        %3210 = vst [vmem:[%s191 + $0x78] sm:$0xff] %v3178
        %3211 = vst [vmem:[%s191 + $0x80] sm:$0xff] %v3179
        %3212 = vst [vmem:[%s191 + $0x88] sm:$0xff] %v3180
        %3213 = vst [vmem:[%s191 + $0x90] sm:$0xff] %v3181
        %3214 = vst [vmem:[%s191 + $0x98] sm:$0xff] %v3182
        %3215 = vst [vmem:[%s191 + $0xa0] sm:$0xff] %v3183
        %3216 = vst [vmem:[%s191 + $0xa8] sm:$0xff] %v3184
        %3217 = vst [vmem:[%s191 + $0xb0] sm:$0xff] %v3185
        %3218 = vst [vmem:[%s191 + $0xb8] sm:$0xff] %v3186
        %3219 = vst [vmem:[%s191 + $0xc0] sm:$0xff] %v3187
        %3220 = vst [vmem:[%s191 + $0xc8] sm:$0xff] %v3188
        %3221 = vst [vmem:[%s191 + $0xd0] sm:$0xff] %v3189
        %3222 = vst [vmem:[%s191 + $0xd8] sm:$0xff] %v3190
        %3223 = vst [vmem:[%s191 + $0xe0] sm:$0xff] %v3191
        %3224 = vst [vmem:[%s191 + $0xe8] sm:$0xff] %v3192
        %3225 = vst [vmem:[%s191 + $0xf0] sm:$0xff] %v3193
        %3226 = vst [vmem:[%s191 + $0xf8] sm:$0xff] %v3194
        %s3227 = sand.u32 %s115, 1
        %s3228 = scalar_lea.sflag [#allocation3], %s3227
        %s3229 = sand.u32 %s115, 1
        %s3230 = smul.addr %s3229, 256
        %s3231 = scalar_lea.vmem [#allocation2], %s3230
        // Predicated region
        $region37: #{tpu_custom_call.1} parent=35 // pred_check
          %p3232 = pneg %p125
        $region38: #{tpu_custom_call.1} parent=35 // pred_check_branch
          %3234 = sbr.rel (%p3232) target = $region40
        $region39: #{tpu_custom_call.1} parent=35 // pred_region
          %s3235 = smul.u32 32, %s18
          %s3237 = ssub.s32 4096, 4096
          %3238 = vsyncadd %s3228, %s3237
          %s3239 = smul.addr %s3235, 128
          %s3240 = scalar_lea.hbm %s4, %s3239
          %s3241 = sshll.u32 %s3231, 4
          %s3242 = int_to_ptr.vmem [resolvable:$true] %s3241
          %3247 = dma.vmem_to_hbm [thread:$0]  %s3242, 4096, %s3240, %s3228, 128, 128, 8
        $region40: #{tpu_custom_call.1} parent=35 // pred_fallthru
          _
      $region36: #{tpu_custom_call.1} parent=5 // pred_fallthru
        _
      %p3248 = scmp.le.s32.totalorder 2, %s13
      // Predicated region
      $region41: #{tpu_custom_call.1} parent=5 // pred_check
        %p3249 = pneg %p3248
      $region42: #{tpu_custom_call.1} parent=5 // pred_check_branch
        %3251 = sbr.rel (%p3249) target = $region44
      $region43: #{tpu_custom_call.1} parent=5 // pred_region
        %s3252 = ssub.s32 %s13, 2
        // Predicated region
        $region45: #{tpu_custom_call.1} parent=43 // pred_check
          %p3253 = pneg %p131
        $region46: #{tpu_custom_call.1} parent=43 // pred_check_branch
          %3255 = sbr.rel (%p3253) target = $region48
        $region47: #{tpu_custom_call.1} parent=43 // pred_region
          %s3256 = sand.u32 %s116, 1
          %s3257 = scalar_lea.sflag [#allocation3], %s3256
          %s3258 = sand.u32 %s116, 1
          %s3259 = smul.addr %s3258, 256
          %s3260 = scalar_lea.vmem [#allocation2], %s3259
          %3261 = dma.done %s3257, 4096
        $region48: #{tpu_custom_call.1} parent=43 // pred_fallthru
          _
      $region44: #{tpu_custom_call.1} parent=5 // pred_fallthru
        _
    $region6: #{tpu_custom_call.1} parent=1 // loop_footer
      %s17 = sadd.s32 1, %s13
    $region7: #{tpu_custom_call.1} parent=1 // loop_footer_branch
      %12 = sbr.rel target = $region3
    $region8: #{tpu_custom_call.1} parent=1 // loop_exit
      _
    %3262 = vsyncpa [#allocation3], 1
    %s3263 = scalar_lea.sflag [#allocation3], 1
    %3264 = vsyncpa %s3263, 1

</llo_original>
